<compile_context>
chip_gen: v5e
topology: v5e:2x2
jax: 0.10.0
libtpu: 0.0.40
codegen_flags: <defaults>
</compile_context>

<pallas_src>
import math
import functools
import numpy as np
import jax
import jax.numpy as jnp
from jax import lax
from jax.experimental import pallas as pl
from jax.experimental.pallas import tpu as pltpu

# ---------------- anti-alias filter construction (host-side, numpy) ----------------
RATIO = 2
KF = int(6 * RATIO // 2) * 2          # 12-tap kaiser-windowed sinc filter


def kaiser_sinc_filter1d(cutoff, half_width, kernel_size):
    even = kernel_size % 2 == 0
    half_size = kernel_size // 2
    delta_f = 4.0 * half_width
    A = 2.285 * (half_size - 1) * math.pi * delta_f + 7.95
    if A > 50.0:
        beta = 0.1102 * (A - 8.7)
    elif A >= 21.0:
        beta = 0.5842 * (A - 21.0) ** 0.4 + 0.07886 * (A - 21.0)
    else:
        beta = 0.0
    window = np.kaiser(kernel_size, beta)
    if even:
        time = np.arange(-half_size, half_size) + 0.5
    else:
        time = np.arange(kernel_size) - half_size
    filt = 2.0 * cutoff * window * np.sinc(2.0 * cutoff * time)
    filt = filt / filt.sum()
    return filt.astype(np.float32)


_TAPS = kaiser_sinc_filter1d(0.5 / RATIO, 0.6 / RATIO, KF)     # symmetric, sums to 1
_F = [float(v) for v in _TAPS]

# Polyphase decomposition of the 2x transposed-conv upsample (gain RATIO folded in).
#   even 2x samples  u[2m]   = sum_o UP_E[o] * x_clip[m + o - 3]
#   odd  2x samples  u[2m+1] = sum_o UP_O[o] * x_clip[m + o - 2]
UP_E = [RATIO * _F[11 - 2 * o] for o in range(6)]
UP_O = [RATIO * _F[10 - 2 * o] for o in range(6)]
# Polyphase decomposition of the stride-2 low-pass (only the kept / even outputs):
#   out[t] = sum_j DN_O[j]*so[t+j-3] + DN_E[j]*se[t+j-2]
DN_E = [_F[2 * j + 1] for j in range(6)]
DN_O = [_F[2 * j] for j in range(6)]

# constants of the non-polyphase reference formulation (pure-JAX check only)
UP_PAD = KF // RATIO - 1                          # 5
UP_CROP_L = UP_PAD * RATIO + (KF - RATIO) // 2    # 15
DOWN_PAD_L = KF // 2 - 1                          # 5
DOWN_PAD_R = KF // 2                              # 6


# ------------------------------ tile-size selection --------------------------------
def _vmem_capacity_bytes():
    cap = 128 * 1024 * 1024
    try:
        cap = int(getattr(pltpu.get_tpu_info(), "vmem_capacity_bytes", cap))
    except Exception:
        pass
    return min(max(cap, 16 * 1024 * 1024), 128 * 1024 * 1024)


def _vmem_limit_bytes():
    # explicit per-kernel scoped-VMEM limit: ~25% headroom under the physical per-core
    # VMEM (v5e/v6e 128 MiB -> 96 MiB, v7x 64 MiB -> 48 MiB); never rely on the default.
    return int(min(_vmem_capacity_bytes() * 3 // 4, 100 * 1024 * 1024))


def _pick_time_tile(C, T, B):
    # Live working set of the fused kernel is ~20 (C, TT)-f32 buffers: double-buffered
    # in/out/residual tiles, the window/phase/activation scratch and FIR temporaries.
    budget = _vmem_limit_bytes()
    tt = (budget // (20 * 4 * max(C, 8))) // 128 * 128
    tt = max(128, min(tt, 8192))
    tt = min(tt, -(-T // 128) * 128)          # no point tiling past the sequence
    if B == 1 and T > 128:
        # keep at least two time tiles so both v7x TensorCores get work at batch 1
        tt = min(tt, max(128, (-(-T // 256)) * 128))
    return int(tt)


# ------------------------------- fused Pallas kernel -------------------------------
def _aa_conv_kernel(*refs, K, dil, p, TT, T, mxu_dtype, with_res):
    """Fused AntiAliasActivation + weight-normalized Conv1d for one (batch, time-tile).

    inputs : xl (1,C,128) left-halo block, x (1,C,TT) tile, xr (1,C,128) right-halo
             block, p (C,2) [alpha, 1/(alpha+1e-9)], w (K,Cout,Cin) MXU dtype,
             b (Cout,1) f32, [res (1,Cout,TT) f32]
    output : o (1,Cout,TT) f32 = conv(AA(x))[tile] (+ residual)
    scratch: win (C,TT+2p+12) f32, se/so (C,TT+2p+6) f32, y (C,TT+2p) f32
    """
    if with_res:
        (xl_ref, x_ref, xr_ref, p_ref, w_ref, b_ref, res_ref, o_ref,
         win_ref, se_ref, so_ref, y_ref) = refs
    else:
        (xl_ref, x_ref, xr_ref, p_ref, w_ref, b_ref, o_ref,
         win_ref, se_ref, so_ref, y_ref) = refs
        res_ref = None

    C = x_ref.shape[1]
    Co = o_ref.shape[1]
    Q = p + 6                   # input halo each side (conv 'same' pad + FIR reach)
    WL = TT + 2 * Q             # input window length
    N = TT + 2 * p + 6          # phase-array (se/so) length
    TTe = TT + 2 * p            # decimated samples the conv needs
    ti = pl.program_id(1)
    t0 = ti * TT
    # does any index used by this tile (window / phase / conv input) reach past T-1?
    right_edge = t0 + TT + p + 5 >= T

    # ---- input window x[t0-Q : t0+TT+Q)  (single VMEM copy; serves the whole FIR) ----
    win_ref[...] = jnp.concatenate(
        [xl_ref[0][:, 128 - Q:], x_ref[0], xr_ref[0][:, :Q]], axis=-1)

    # replicate padding of the upsampler input at the sequence ends (edge tiles only)
    @pl.when(ti == 0)
    def _():
        win_ref[:, :Q] = jnp.broadcast_to(win_ref[:, Q:Q + 1], (C, Q))

    @pl.when(right_edge)
    def _():
        g = (t0 - Q) + lax.broadcasted_iota(jnp.int32, (1, WL), 1)
        w_all = win_ref[...]
        x_last = jnp.sum(jnp.where(g == T - 1, w_all, 0.0), axis=1, keepdims=True)
        win_ref[...] = jnp.where(g > T - 1, x_last, w_all)

    # ---- polyphase 2x upsample: two 6-tap FIRs on the un-stuffed signal (VPU) ----
    sl = [win_ref[:, o:o + N] for o in range(7)]      # 7 shifted loads, shared by phases
    ue = UP_E[0] * sl[0]
    uo = UP_O[0] * sl[1]
    for o in range(1, 6):
        ue = ue + UP_E[o] * sl[o]
        uo = uo + UP_O[o] * sl[o + 1]

    # ---- Snake(alpha): v + (1/alpha) * sin(alpha v)^2   (1/alpha precomputed in glue) ----
    alpha = p_ref[:, 0:1]
    inv_a = p_ref[:, 1:2]
    se_ref[...] = ue + inv_a * jnp.square(jnp.sin(alpha * ue))   # even 2x samples y[2m]
    so_ref[...] = uo + inv_a * jnp.square(jnp.sin(alpha * uo))   # odd  2x samples y[2m+1]

    # ---- phase-exact replicate padding of the virtual 2x-rate signal (edge tiles) ----
    # (the reference pads the *interleaved* signal: indices < 0 read y[0] = even phase
    #  at m = 0, indices > 2T-1 read y[2T-1] = odd phase at m = T-1)
    @pl.when(ti == 0)
    def _():
        left = se_ref[:, p + 3:p + 4]                 # y[0]
        se_ref[:, :p + 3] = jnp.broadcast_to(left, (C, p + 3))
        so_ref[:, :p + 3] = jnp.broadcast_to(left, (C, p + 3))

    @pl.when(right_edge)
    def _():
        m = (t0 - p - 3) + lax.broadcasted_iota(jnp.int32, (1, N), 1)
        so_v = so_ref[...]
        right = jnp.sum(jnp.where(m == T - 1, so_v, 0.0), axis=1, keepdims=True)  # y[2T-1]
        se_ref[...] = jnp.where(m > T - 1, right, se_ref[...])
        so_ref[...] = jnp.where(m > T - 1, right, so_v)

    # ---- polyphase low-pass + 2x decimation: only the kept outputs are formed ----
    acc = DN_O[0] * so_ref[:, 0:TTe] + DN_E[0] * se_ref[:, 1:1 + TTe]
    for j in range(1, 6):
        acc = acc + DN_O[j] * so_ref[:, j:j + TTe] + DN_E[j] * se_ref[:, j + 1:j + 1 + TTe]
    y_ref[...] = acc

    # ---- the conv's zero padding: activation outside [0, T) contributes zero ----
    if p > 0:
        @pl.when(ti == 0)
        def _():
            y_ref[:, :p] = jnp.zeros((C, p), y_ref.dtype)

    @pl.when(right_edge)
    def _():
        s = (t0 - p) + lax.broadcasted_iota(jnp.int32, (1, TTe), 1)
        y_ref[...] = jnp.where(s > T - 1, 0.0, y_ref[...])

    # ---- weight-normalized Conv1d: K accumulating MXU matmuls (no im2col buffer) ----
    out = jnp.zeros((Co, TT), jnp.float32)
    for k in range(K):
        d = k * dil
        out = out + jnp.dot(w_ref[k], y_ref[:, d:d + TT].astype(mxu_dtype),
                            preferred_element_type=jnp.float32)
    out = out + b_ref[...]                     # bias in f32
    if res_ref is not None:
        out = out + res_ref[0]                 # fused residual skip: x + conv2(...)
    o_ref[0] = out


# ------------------------------- pallas_call wrapper -------------------------------
def _fused_aa_conv(x_buf, snake_p, w_kcc, bias, *, K, dil, T, TT, mxu_dtype,
                   vmem_limit, residual=None):
    """conv(AA(x_buf)) (+ residual) on (B, C, T_pad) buffers; columns >= T are garbage
    by construction and must be cropped / are overridden by downstream consumers."""
    B, C, T_pad = x_buf.shape
    Co = w_kcc.shape[1]
    p = (K - 1) * dil // 2
    Q = p + 6
    assert TT % 128 == 0 and T_pad % TT == 0
    assert Q <= 128, "halo exceeds one 128-lane block; enlarge the halo BlockSpec"
    NT = T_pad // TT
    hb = TT // 128
    nb = T_pad // 128

    kernel = functools.partial(_aa_conv_kernel, K=K, dil=dil, p=p, TT=TT, T=T,
                               mxu_dtype=mxu_dtype, with_res=residual is not None)
    in_specs = [
        pl.BlockSpec((1, C, 128),
                     lambda b, ti: (b, 0, jnp.maximum(ti * hb - 1, 0))),      # left halo
        pl.BlockSpec((1, C, TT), lambda b, ti: (b, 0, ti)),                   # tile
        pl.BlockSpec((1, C, 128),
                     lambda b, ti: (b, 0, jnp.minimum(ti * hb + hb, nb - 1))),  # right halo
        pl.BlockSpec((C, 2), lambda b, ti: (0, 0)),
        pl.BlockSpec((K, Co, C), lambda b, ti: (0, 0, 0)),
        pl.BlockSpec((Co, 1), lambda b, ti: (0, 0)),
    ]
    args = [x_buf, x_buf, x_buf, snake_p, w_kcc, bias.reshape(Co, 1)]
    if residual is not None:
        in_specs.append(pl.BlockSpec((1, Co, TT), lambda b, ti: (b, 0, ti)))
        args.append(residual)

    scratch_shapes = [
        pltpu.VMEM((C, TT + 2 * Q), jnp.float32),        # input window
        pltpu.VMEM((C, TT + 2 * p + 6), jnp.float32),    # even-phase Snake output
        pltpu.VMEM((C, TT + 2 * p + 6), jnp.float32),    # odd-phase Snake output
        pltpu.VMEM((C, TT + 2 * p), jnp.float32),        # decimated activation (conv rhs)
    ]
    return pl.pallas_call(
        kernel,
        out_shape=jax.ShapeDtypeStruct((B, Co, T_pad), jnp.float32),
        grid=(B, NT),
        in_specs=in_specs,
        out_specs=pl.BlockSpec((1, Co, TT), lambda b, ti: (b, 0, ti)),
        scratch_shapes=scratch_shapes,
        compiler_params=pltpu.CompilerParams(
            dimension_semantics=("parallel", "parallel"),
            vmem_limit_bytes=int(vmem_limit)),
    )(*args)


# ------------------------------ module composition ---------------------------------
def weight_norm_weight(v, g):
    # PyTorch weight_norm on Conv1d: weight = g * v / ||v||, norm over (Cin, K) per Cout
    norm = jnp.sqrt(jnp.sum(v * v, axis=(1, 2), keepdims=True))
    return (g[:, None, None] * v) / norm


def amp_layer_forward(x, params, dilation, *, mxu_dtype=jnp.bfloat16, time_tile=None):
    B, C, T = x.shape
    K = params["v1"].shape[2]
    assert K % 2 == 1, "AMPLayer uses odd kernel sizes ('same' convolutions)"
    TT = _pick_time_tile(C, T, B) if time_tile is None else int(time_tile)
    assert TT % 128 == 0
    vmem_limit = _vmem_limit_bytes()
    NT = pl.cdiv(T, TT)
    T_pad = NT * TT

    xg = jnp.pad(x, ((0, 0), (0, 0), (0, T_pad - T)))          # the only pad in the layer
    # weight-normalized conv weights, (K, Cout, Cin), cast to the MXU dtype once in glue.
    # TODO(synk): for best MXU utilisation pad the channel count to a multiple of 128
    #   (v5e) / 256 (v6e, v7x) at model-build time; real vocoder widths already are.
    w1 = jnp.transpose(weight_norm_weight(params["v1"], params["g1"]),
                       (2, 0, 1)).astype(mxu_dtype)
    w2 = jnp.transpose(weight_norm_weight(params["v2"], params["g2"]),
                       (2, 0, 1)).astype(mxu_dtype)
    sp1 = jnp.stack([params["alpha1"], 1.0 / (params["alpha1"] + 1e-9)], axis=1)
    sp2 = jnp.stack([params["alpha2"], 1.0 / (params["alpha2"] + 1e-9)], axis=1)

    y = _fused_aa_conv(xg, sp1, w1, params["b1"], K=K, dil=dilation, T=T, TT=TT,
                       mxu_dtype=mxu_dtype, vmem_limit=vmem_limit)
    y = _fused_aa_conv(y, sp2, w2, params["b2"], K=K, dil=1, T=T, TT=TT,
                       mxu_dtype=mxu_dtype, vmem_limit=vmem_limit, residual=xg)
    return y[..., :T]                                          # the only crop in the layer


# ------------------- plain-JAX reference (same module semantics) -------------------
def _ref_anti_alias_activation(x, alpha):
    B, C, T = x.shape
    xp = jnp.pad(x, ((0, 0), (0, 0), (UP_PAD, UP_PAD)), mode="edge")
    xs = jnp.zeros((B, C, RATIO * (T + 2 * UP_PAD) - 1), x.dtype)
    xs = xs.at[..., ::RATIO].set(xp)                                     # zero-stuff
    z = jnp.pad(xs, ((0, 0), (0, 0), (KF - 1, KF - 1)))
    zin = z[..., UP_CROP_L:UP_CROP_L + RATIO * T + KF - 1]
    u = sum(_F[k] * zin[..., k:k + RATIO * T] for k in range(KF)) * RATIO
    a = alpha[None, :, None]
    y = u + (1.0 / (a + 1e-9)) * jnp.sin(a * u) ** 2
    yp = jnp.pad(y, ((0, 0), (0, 0), (DOWN_PAD_L, DOWN_PAD_R)), mode="edge")
    y = sum(_F[k] * yp[..., k:k + RATIO * T] for k in range(KF))
    return y[..., ::RATIO]


def _ref_conv1d(x, w, b, dilation, pad):
    K = w.shape[2]
    T = x.shape[-1]
    xp = jnp.pad(x, ((0, 0), (0, 0), (pad, pad)))
    out = sum(jnp.einsum("oi,bit->bot", w[:, :, k],
                         xp[..., k * dilation:k * dilation + T],
                         precision=lax.Precision.HIGHEST) for k in range(K))
    return out + b[None, :, None]


def _ref_forward(x, params, dilation):
    K = params["v1"].shape[2]
    w1 = weight_norm_weight(params["v1"], params["g1"])
    w2 = weight_norm_weight(params["v2"], params["g2"])
    y = _ref_anti_alias_activation(x, params["alpha1"])
    y = _ref_conv1d(y, w1, params["b1"], dilation, (K * dilation - dilation) // 2)
    y = _ref_anti_alias_activation(y, params["alpha2"])
    y = _ref_conv1d(y, w2, params["b2"], 1, K // 2)
    return x + y


if __name__ == "__main__":
    B, C, K, DIL = 2, 8, 3, 3
    key = jax.random.PRNGKey(0)
    ks = jax.random.split(key, 10)
    params = {
        "v1": 0.1 * jax.random.normal(ks[0], (C, C, K), jnp.float32),
        "g1": jax.random.uniform(ks[1], (C,), jnp.float32, 0.5, 1.5),
        "b1": 0.1 * jax.random.normal(ks[2], (C,), jnp.float32),
        "v2": 0.1 * jax.random.normal(ks[3], (C, C, K), jnp.float32),
        "g2": jax.random.uniform(ks[4], (C,), jnp.float32, 0.5, 1.5),
        "b2": 0.1 * jax.random.normal(ks[5], (C,), jnp.float32),
        "alpha1": 1.0 + 0.1 * jax.random.normal(ks[6], (C,), jnp.float32),
        "alpha2": 1.0 + 0.1 * jax.random.normal(ks[7], (C,), jnp.float32),
    }

    # --- multi-tile check: T=300 with forced 128-lane tiles -> 3 time tiles per batch,
    #     exercising cross-tile halos and the first/interior/last-tile edge patches. ---
    T = 300
    x = jax.random.normal(ks[8], (B, C, T), jnp.float32)
    ref = _ref_forward(x, params, DIL)

    # f32-MXU path: tight tolerance, catches logic / indexing bugs
    fwd_f32 = jax.jit(functools.partial(amp_layer_forward, dilation=DIL,
                                        mxu_dtype=jnp.float32, time_tile=128))
    out_f32 = jax.block_until_ready(fwd_f32(x, params))
    assert out_f32.shape == (B, C, T) and out_f32.dtype == jnp.float32
    err_f32 = float(jnp.max(jnp.abs(out_f32 - ref)))
    assert err_f32 < 2e-3, f"f32-MXU multi-tile mismatch vs reference: {err_f32}"

    # default bf16-MXU path: looser tolerance (bf16 matmul operands, f32 accumulation)
    fwd_bf16 = jax.jit(functools.partial(amp_layer_forward, dilation=DIL, time_tile=128))
    out_bf16 = jax.block_until_ready(fwd_bf16(x, params))
    err_bf16 = float(jnp.max(jnp.abs(out_bf16 - ref)))
    assert err_bf16 < 1e-1, f"bf16-MXU multi-tile mismatch vs reference: {err_bf16}"

    # --- small single-tile smoke test (T << TT) with the default VMEM-derived tile ---
    T2 = 16
    x2 = jax.random.normal(ks[9], (B, C, T2), jnp.float32)
    fwd2 = jax.jit(functools.partial(amp_layer_forward, dilation=DIL))
    out2 = jax.block_until_ready(fwd2(x2, params))
    assert out2.shape == (B, C, T2)
    err2 = float(jnp.max(jnp.abs(out2 - _ref_forward(x2, params, DIL))))
    assert err2 < 1e-1, f"single-tile mismatch vs reference: {err2}"

    print("KERNEL_OK")
</pallas_src>

<mosaic_0001>
module attributes {stable_mosaic.version = 11 : i64} {
  func.func @_aa_conv_kernel(%arg0: i32, %arg1: i32, %arg2: memref<1x8x128xf32, #tpu.memory_space<vmem>>, %arg3: memref<1x8x128xf32, #tpu.memory_space<vmem>>, %arg4: memref<1x8x128xf32, #tpu.memory_space<vmem>>, %arg5: memref<8x2xf32, #tpu.memory_space<vmem>>, %arg6: memref<3x8x8xf32, #tpu.memory_space<vmem>>, %arg7: memref<8x1xf32, #tpu.memory_space<vmem>>, %arg8: memref<1x8x128xf32, #tpu.memory_space<vmem>>, %arg9: memref<1x8x128xf32, #tpu.memory_space<vmem>>, %arg10: memref<8x142xf32, #tpu.memory_space<vmem>>, %arg11: memref<8x136xf32, #tpu.memory_space<vmem>>, %arg12: memref<8x136xf32, #tpu.memory_space<vmem>>, %arg13: memref<8x130xf32, #tpu.memory_space<vmem>>) attributes {dimension_semantics = [#tpu.dimension_semantics<parallel>, #tpu.dimension_semantics<parallel>], iteration_bounds = array<i64: 2, 3>, scalar_prefetch = 0 : i64, scratch_operands = 4 : i64, tpu.core_type = #tpu.core_type<tc>, window_params = [{transform_indices = @transform_0, window_bounds = array<i64: 1, 8, 128>}, {transform_indices = @transform_1, window_bounds = array<i64: 1, 8, 128>}, {transform_indices = @transform_2, window_bounds = array<i64: 1, 8, 128>}, {pipeline_mode = #tpu.pipeline_mode<synchronous>, transform_indices = @transform_3, window_bounds = array<i64: 8, 2>}, {pipeline_mode = #tpu.pipeline_mode<synchronous>, transform_indices = @transform_4, window_bounds = array<i64: 3, 8, 8>}, {pipeline_mode = #tpu.pipeline_mode<synchronous>, transform_indices = @transform_5, window_bounds = array<i64: 8, 1>}, {transform_indices = @transform_6, window_bounds = array<i64: 1, 8, 128>}, {transform_indices = @transform_7, window_bounds = array<i64: 1, 8, 128>}]} {
    %c128_i32 = arith.constant 128 : i32
    %0 = arith.muli %arg1, %c128_i32 : i32
    %c128_i32_0 = arith.constant 128 : i32
    %1 = arith.addi %0, %c128_i32_0 : i32
    %c1_i32 = arith.constant 1 : i32
    %2 = arith.addi %1, %c1_i32 : i32
    %c5_i32 = arith.constant 5 : i32
    %3 = arith.addi %2, %c5_i32 : i32
    %c300_i32 = arith.constant 300 : i32
    %4 = arith.cmpi sge, %3, %c300_i32 : i32
    %c0 = arith.constant 0 : index
    %c0_1 = arith.constant 0 : index
    %c0_2 = arith.constant 0 : index
    %5 = vector.load %arg2[%c0, %c0_1, %c0_2] : memref<1x8x128xf32, #tpu.memory_space<vmem>>, vector<1x8x128xf32>
    %6 = vector.shape_cast %5 : vector<1x8x128xf32> to vector<8x128xf32>
    %7 = vector.extract_strided_slice %6 {offsets = [0, 121], sizes = [8, 7], strides = [1, 1]} : vector<8x128xf32> to vector<8x7xf32>
    %c0_3 = arith.constant 0 : index
    %c0_4 = arith.constant 0 : index
    %c0_5 = arith.constant 0 : index
    %8 = vector.load %arg3[%c0_3, %c0_4, %c0_5] : memref<1x8x128xf32, #tpu.memory_space<vmem>>, vector<1x8x128xf32>
    %9 = vector.shape_cast %8 : vector<1x8x128xf32> to vector<8x128xf32>
    %c0_6 = arith.constant 0 : index
    %c0_7 = arith.constant 0 : index
    %c0_8 = arith.constant 0 : index
    %10 = vector.load %arg4[%c0_6, %c0_7, %c0_8] : memref<1x8x128xf32, #tpu.memory_space<vmem>>, vector<1x8x128xf32>
    %11 = vector.shape_cast %10 : vector<1x8x128xf32> to vector<8x128xf32>
    %12 = vector.extract_strided_slice %11 {offsets = [0, 0], sizes = [8, 7], strides = [1, 1]} : vector<8x128xf32> to vector<8x7xf32>
    %13 = tpu.concatenate %7, %9, %12 in 1 : vector<8x7xf32>, vector<8x128xf32>, vector<8x7xf32> -> vector<8x142xf32>
    %c0_9 = arith.constant 0 : index
    %c0_10 = arith.constant 0 : index
    %14 = vector.load %arg10[%c0_9, %c0_10] : memref<8x142xf32, #tpu.memory_space<vmem>>, vector<8x142xf32>
    tpu.vector_store %arg10[%c0_9, %c0_10], %13 {strides = array<i32>} : memref<8x142xf32, #tpu.memory_space<vmem>>, vector<8x142xf32>,
    %c0_i32 = arith.constant 0 : i32
    %15 = arith.cmpi eq, %arg1, %c0_i32 : i32
    %16 = arith.extui %15 : i1 to i32
    %c0_i32_11 = arith.constant 0 : i32
    %17 = arith.cmpi ne, %16, %c0_i32_11 : i32
    scf.if %17 {
      %c0_111 = arith.constant 0 : index
      %c7 = arith.constant 7 : index
      %162 = vector.load %arg10[%c0_111, %c7] : memref<8x142xf32, #tpu.memory_space<vmem>>, vector<8x1xf32>
      %163 = vector.shape_cast %162 : vector<8x1xf32> to vector<8x1xf32>
      %164 = vector.broadcast %163 : vector<8x1xf32> to vector<8x7xf32>
      %c0_112 = arith.constant 0 : index
      %c0_113 = arith.constant 0 : index
      %165 = vector.load %arg10[%c0_112, %c0_113] : memref<8x142xf32, #tpu.memory_space<vmem>>, vector<8x7xf32>
      tpu.vector_store %arg10[%c0_112, %c0_113], %164 {strides = array<i32>} : memref<8x142xf32, #tpu.memory_space<vmem>>, vector<8x7xf32>,
    } else {
    }
    %18 = arith.extui %4 : i1 to i32
    %c0_i32_12 = arith.constant 0 : i32
    %19 = arith.cmpi ne, %18, %c0_i32_12 : i32
    scf.if %19 {
      %c7_i32 = arith.constant 7 : i32
      %162 = arith.subi %0, %c7_i32 : i32
      %163 = tpu.iota {dimensions = array<i32: 1>} : vector<1x142xi32>
      %164 = vector.broadcast %162 : i32 to vector<1x142xi32>
      %165 = arith.addi %164, %163 : vector<1x142xi32>
      %c0_111 = arith.constant 0 : index
      %c0_112 = arith.constant 0 : index
      %166 = vector.load %arg10[%c0_111, %c0_112] : memref<8x142xf32, #tpu.memory_space<vmem>>, vector<8x142xf32>
      %c299_i32 = arith.constant 299 : i32
      %167 = vector.broadcast %c299_i32 : i32 to vector<1x142xi32>
      %168 = arith.cmpi eq, %165, %167 : vector<1x142xi32>
      %cst_113 = arith.constant 0.000000e+00 : f32
      %169 = vector.shape_cast %168 : vector<1x142xi1> to vector<1x142xi1>
      %170 = vector.broadcast %169 : vector<1x142xi1> to vector<8x142xi1>
      %171 = vector.broadcast %cst_113 : f32 to vector<8x142xf32>
      %172 = arith.select %170, %166, %171 : vector<8x142xi1>, vector<8x142xf32>
      %cst_114 = arith.constant dense<0.000000e+00> : vector<8xf32>
      %173 = vector.multi_reduction <add>, %172, %cst_114 [1] : vector<8x142xf32> to vector<8xf32>
      %174 = vector.shape_cast %173 : vector<8xf32> to vector<8x1xf32>
      %c299_i32_115 = arith.constant 299 : i32
      %175 = vector.broadcast %c299_i32_115 : i32 to vector<1x142xi32>
      %176 = arith.cmpi sgt, %165, %175 : vector<1x142xi32>
      %177 = vector.shape_cast %176 : vector<1x142xi1> to vector<1x142xi1>
      %178 = vector.broadcast %177 : vector<1x142xi1> to vector<8x142xi1>
      %179 = vector.shape_cast %174 : vector<8x1xf32> to vector<8x1xf32>
      %180 = vector.broadcast %179 : vector<8x1xf32> to vector<8x142xf32>
      %181 = arith.select %178, %180, %166 : vector<8x142xi1>, vector<8x142xf32>
      %c0_116 = arith.constant 0 : index
      %c0_117 = arith.constant 0 : index
      %182 = vector.load %arg10[%c0_116, %c0_117] : memref<8x142xf32, #tpu.memory_space<vmem>>, vector<8x142xf32>
      tpu.vector_store %arg10[%c0_116, %c0_117], %181 {strides = array<i32>} : memref<8x142xf32, #tpu.memory_space<vmem>>, vector<8x142xf32>,
    } else {
    }
    %c0_13 = arith.constant 0 : index
    %c0_14 = arith.constant 0 : index
    %20 = vector.load %arg10[%c0_13, %c0_14] : memref<8x142xf32, #tpu.memory_space<vmem>>, vector<8x136xf32>
    %c0_15 = arith.constant 0 : index
    %c1 = arith.constant 1 : index
    %21 = vector.load %arg10[%c0_15, %c1] : memref<8x142xf32, #tpu.memory_space<vmem>>, vector<8x136xf32>
    %c0_16 = arith.constant 0 : index
    %c2 = arith.constant 2 : index
    %22 = vector.load %arg10[%c0_16, %c2] : memref<8x142xf32, #tpu.memory_space<vmem>>, vector<8x136xf32>
    %c0_17 = arith.constant 0 : index
    %c3 = arith.constant 3 : index
    %23 = vector.load %arg10[%c0_17, %c3] : memref<8x142xf32, #tpu.memory_space<vmem>>, vector<8x136xf32>
    %c0_18 = arith.constant 0 : index
    %c4 = arith.constant 4 : index
    %24 = vector.load %arg10[%c0_18, %c4] : memref<8x142xf32, #tpu.memory_space<vmem>>, vector<8x136xf32>
    %c0_19 = arith.constant 0 : index
    %c5 = arith.constant 5 : index
    %25 = vector.load %arg10[%c0_19, %c5] : memref<8x142xf32, #tpu.memory_space<vmem>>, vector<8x136xf32>
    %c0_20 = arith.constant 0 : index
    %c6 = arith.constant 6 : index
    %26 = vector.load %arg10[%c0_20, %c6] : memref<8x142xf32, #tpu.memory_space<vmem>>, vector<8x136xf32>
    %cst = arith.constant 0.00405793311 : f32
    %27 = vector.broadcast %cst : f32 to vector<8x136xf32>
    %28 = arith.mulf %27, %20 : vector<8x136xf32>
    %cst_21 = arith.constant 0.0187789276 : f32
    %29 = vector.broadcast %cst_21 : f32 to vector<8x136xf32>
    %30 = arith.mulf %29, %21 : vector<8x136xf32>
    %cst_22 = arith.constant -0.0510869287 : f32
    %31 = vector.broadcast %cst_22 : f32 to vector<8x136xf32>
    %32 = arith.mulf %31, %21 : vector<8x136xf32>
    %33 = arith.addf %28, %32 : vector<8x136xf32>
    %cst_23 = arith.constant -0.115314752 : f32
    %34 = vector.broadcast %cst_23 : f32 to vector<8x136xf32>
    %35 = arith.mulf %34, %22 : vector<8x136xf32>
    %36 = arith.addf %30, %35 : vector<8x136xf32>
    %cst_24 = arith.constant 0.257145226 : f32
    %37 = vector.broadcast %cst_24 : f32 to vector<8x136xf32>
    %38 = arith.mulf %37, %22 : vector<8x136xf32>
    %39 = arith.addf %33, %38 : vector<8x136xf32>
    %cst_25 = arith.constant 0.886419594 : f32
    %40 = vector.broadcast %cst_25 : f32 to vector<8x136xf32>
    %41 = arith.mulf %40, %23 : vector<8x136xf32>
    %42 = arith.addf %36, %41 : vector<8x136xf32>
    %cst_26 = arith.constant 0.886419594 : f32
    %43 = vector.broadcast %cst_26 : f32 to vector<8x136xf32>
    %44 = arith.mulf %43, %23 : vector<8x136xf32>
    %45 = arith.addf %39, %44 : vector<8x136xf32>
    %cst_27 = arith.constant 0.257145226 : f32
    %46 = vector.broadcast %cst_27 : f32 to vector<8x136xf32>
    %47 = arith.mulf %46, %24 : vector<8x136xf32>
    %48 = arith.addf %42, %47 : vector<8x136xf32>
    %cst_28 = arith.constant -0.115314752 : f32
    %49 = vector.broadcast %cst_28 : f32 to vector<8x136xf32>
    %50 = arith.mulf %49, %24 : vector<8x136xf32>
    %51 = arith.addf %45, %50 : vector<8x136xf32>
    %cst_29 = arith.constant -0.0510869287 : f32
    %52 = vector.broadcast %cst_29 : f32 to vector<8x136xf32>
    %53 = arith.mulf %52, %25 : vector<8x136xf32>
    %54 = arith.addf %48, %53 : vector<8x136xf32>
    %cst_30 = arith.constant 0.0187789276 : f32
    %55 = vector.broadcast %cst_30 : f32 to vector<8x136xf32>
    %56 = arith.mulf %55, %25 : vector<8x136xf32>
    %57 = arith.addf %51, %56 : vector<8x136xf32>
    %cst_31 = arith.constant 0.00405793311 : f32
    %58 = vector.broadcast %cst_31 : f32 to vector<8x136xf32>
    %59 = arith.mulf %58, %26 : vector<8x136xf32>
    %60 = arith.addf %54, %59 : vector<8x136xf32>
    %c0_32 = arith.constant 0 : index
    %c0_33 = arith.constant 0 : index
    %61 = vector.load %arg5[%c0_32, %c0_33] : memref<8x2xf32, #tpu.memory_space<vmem>>, vector<8x1xf32>
    %c0_34 = arith.constant 0 : index
    %c1_35 = arith.constant 1 : index
    %62 = vector.load %arg5[%c0_34, %c1_35] : memref<8x2xf32, #tpu.memory_space<vmem>>, vector<8x1xf32>
    %63 = vector.broadcast %61 : vector<8x1xf32> to vector<8x136xf32>
    %64 = arith.mulf %63, %57 : vector<8x136xf32>
    %65 = math.sin %64 : vector<8x136xf32>
    %66 = arith.mulf %65, %65 : vector<8x136xf32>
    %67 = vector.broadcast %62 : vector<8x1xf32> to vector<8x136xf32>
    %68 = arith.mulf %67, %66 : vector<8x136xf32>
    %69 = arith.addf %57, %68 : vector<8x136xf32>
    %c0_36 = arith.constant 0 : index
    %c0_37 = arith.constant 0 : index
    %70 = vector.load %arg11[%c0_36, %c0_37] : memref<8x136xf32, #tpu.memory_space<vmem>>, vector<8x136xf32>
    tpu.vector_store %arg11[%c0_36, %c0_37], %69 {strides = array<i32>} : memref<8x136xf32, #tpu.memory_space<vmem>>, vector<8x136xf32>,
    %71 = vector.broadcast %61 : vector<8x1xf32> to vector<8x136xf32>
    %72 = arith.mulf %71, %60 : vector<8x136xf32>
    %73 = math.sin %72 : vector<8x136xf32>
    %74 = arith.mulf %73, %73 : vector<8x136xf32>
    %75 = vector.broadcast %62 : vector<8x1xf32> to vector<8x136xf32>
    %76 = arith.mulf %75, %74 : vector<8x136xf32>
    %77 = arith.addf %60, %76 : vector<8x136xf32>
    %c0_38 = arith.constant 0 : index
    %c0_39 = arith.constant 0 : index
    %78 = vector.load %arg12[%c0_38, %c0_39] : memref<8x136xf32, #tpu.memory_space<vmem>>, vector<8x136xf32>
    tpu.vector_store %arg12[%c0_38, %c0_39], %77 {strides = array<i32>} : memref<8x136xf32, #tpu.memory_space<vmem>>, vector<8x136xf32>,
    %c0_i32_40 = arith.constant 0 : i32
    %79 = arith.cmpi eq, %arg1, %c0_i32_40 : i32
    %80 = arith.extui %79 : i1 to i32
    %c0_i32_41 = arith.constant 0 : i32
    %81 = arith.cmpi ne, %80, %c0_i32_41 : i32
    scf.if %81 {
      %c0_111 = arith.constant 0 : index
      %c4_112 = arith.constant 4 : index
      %162 = vector.load %arg11[%c0_111, %c4_112] : memref<8x136xf32, #tpu.memory_space<vmem>>, vector<8x1xf32>
      %163 = vector.shape_cast %162 : vector<8x1xf32> to vector<8x1xf32>
      %164 = vector.broadcast %163 : vector<8x1xf32> to vector<8x4xf32>
      %c0_113 = arith.constant 0 : index
      %c0_114 = arith.constant 0 : index
      %165 = vector.load %arg11[%c0_113, %c0_114] : memref<8x136xf32, #tpu.memory_space<vmem>>, vector<8x4xf32>
      tpu.vector_store %arg11[%c0_113, %c0_114], %164 {strides = array<i32>} : memref<8x136xf32, #tpu.memory_space<vmem>>, vector<8x4xf32>,
      %166 = vector.shape_cast %162 : vector<8x1xf32> to vector<8x1xf32>
      %167 = vector.broadcast %166 : vector<8x1xf32> to vector<8x4xf32>
      %c0_115 = arith.constant 0 : index
      %c0_116 = arith.constant 0 : index
      %168 = vector.load %arg12[%c0_115, %c0_116] : memref<8x136xf32, #tpu.memory_space<vmem>>, vector<8x4xf32>
      tpu.vector_store %arg12[%c0_115, %c0_116], %167 {strides = array<i32>} : memref<8x136xf32, #tpu.memory_space<vmem>>, vector<8x4xf32>,
    } else {
    }
    %82 = arith.extui %4 : i1 to i32
    %c0_i32_42 = arith.constant 0 : i32
    %83 = arith.cmpi ne, %82, %c0_i32_42 : i32
    scf.if %83 {
      %c1_i32_111 = arith.constant 1 : i32
      %162 = arith.subi %0, %c1_i32_111 : i32
      %c3_i32 = arith.constant 3 : i32
      %163 = arith.subi %162, %c3_i32 : i32
      %164 = tpu.iota {dimensions = array<i32: 1>} : vector<1x136xi32>
      %165 = vector.broadcast %163 : i32 to vector<1x136xi32>
      %166 = arith.addi %165, %164 : vector<1x136xi32>
      %c0_112 = arith.constant 0 : index
      %c0_113 = arith.constant 0 : index
      %167 = vector.load %arg12[%c0_112, %c0_113] : memref<8x136xf32, #tpu.memory_space<vmem>>, vector<8x136xf32>
      %c299_i32 = arith.constant 299 : i32
      %168 = vector.broadcast %c299_i32 : i32 to vector<1x136xi32>
      %169 = arith.cmpi eq, %166, %168 : vector<1x136xi32>
      %cst_114 = arith.constant 0.000000e+00 : f32
      %170 = vector.shape_cast %169 : vector<1x136xi1> to vector<1x136xi1>
      %171 = vector.broadcast %170 : vector<1x136xi1> to vector<8x136xi1>
      %172 = vector.broadcast %cst_114 : f32 to vector<8x136xf32>
      %173 = arith.select %171, %167, %172 : vector<8x136xi1>, vector<8x136xf32>
      %cst_115 = arith.constant dense<0.000000e+00> : vector<8xf32>
      %174 = vector.multi_reduction <add>, %173, %cst_115 [1] : vector<8x136xf32> to vector<8xf32>
      %175 = vector.shape_cast %174 : vector<8xf32> to vector<8x1xf32>
      %c299_i32_116 = arith.constant 299 : i32
      %176 = vector.broadcast %c299_i32_116 : i32 to vector<1x136xi32>
      %177 = arith.cmpi sgt, %166, %176 : vector<1x136xi32>
      %c0_117 = arith.constant 0 : index
      %c0_118 = arith.constant 0 : index
      %178 = vector.load %arg11[%c0_117, %c0_118] : memref<8x136xf32, #tpu.memory_space<vmem>>, vector<8x136xf32>
      %179 = vector.shape_cast %177 : vector<1x136xi1> to vector<1x136xi1>
      %180 = vector.broadcast %179 : vector<1x136xi1> to vector<8x136xi1>
      %181 = vector.shape_cast %175 : vector<8x1xf32> to vector<8x1xf32>
      %182 = vector.broadcast %181 : vector<8x1xf32> to vector<8x136xf32>
      %183 = arith.select %180, %182, %178 : vector<8x136xi1>, vector<8x136xf32>
      %c0_119 = arith.constant 0 : index
      %c0_120 = arith.constant 0 : index
      %184 = vector.load %arg11[%c0_119, %c0_120] : memref<8x136xf32, #tpu.memory_space<vmem>>, vector<8x136xf32>
      tpu.vector_store %arg11[%c0_119, %c0_120], %183 {strides = array<i32>} : memref<8x136xf32, #tpu.memory_space<vmem>>, vector<8x136xf32>,
      %c299_i32_121 = arith.constant 299 : i32
      %185 = vector.broadcast %c299_i32_121 : i32 to vector<1x136xi32>
      %186 = arith.cmpi sgt, %166, %185 : vector<1x136xi32>
      %187 = vector.shape_cast %186 : vector<1x136xi1> to vector<1x136xi1>
      %188 = vector.broadcast %187 : vector<1x136xi1> to vector<8x136xi1>
      %189 = vector.shape_cast %175 : vector<8x1xf32> to vector<8x1xf32>
      %190 = vector.broadcast %189 : vector<8x1xf32> to vector<8x136xf32>
      %191 = arith.select %188, %190, %167 : vector<8x136xi1>, vector<8x136xf32>
      %c0_122 = arith.constant 0 : index
      %c0_123 = arith.constant 0 : index
      %192 = vector.load %arg12[%c0_122, %c0_123] : memref<8x136xf32, #tpu.memory_space<vmem>>, vector<8x136xf32>
      tpu.vector_store %arg12[%c0_122, %c0_123], %191 {strides = array<i32>} : memref<8x136xf32, #tpu.memory_space<vmem>>, vector<8x136xf32>,
    } else {
    }
    %c0_43 = arith.constant 0 : index
    %c0_44 = arith.constant 0 : index
    %84 = vector.load %arg12[%c0_43, %c0_44] : memref<8x136xf32, #tpu.memory_space<vmem>>, vector<8x130xf32>
    %cst_45 = arith.constant 0.00202896656 : f32
    %85 = vector.broadcast %cst_45 : f32 to vector<8x130xf32>
    %86 = arith.mulf %85, %84 : vector<8x130xf32>
    %c0_46 = arith.constant 0 : index
    %c1_47 = arith.constant 1 : index
    %87 = vector.load %arg11[%c0_46, %c1_47] : memref<8x136xf32, #tpu.memory_space<vmem>>, vector<8x130xf32>
    %cst_48 = arith.constant 0.00938946381 : f32
    %88 = vector.broadcast %cst_48 : f32 to vector<8x130xf32>
    %89 = arith.mulf %88, %87 : vector<8x130xf32>
    %90 = arith.addf %86, %89 : vector<8x130xf32>
    %c0_49 = arith.constant 0 : index
    %c1_50 = arith.constant 1 : index
    %91 = vector.load %arg12[%c0_49, %c1_50] : memref<8x136xf32, #tpu.memory_space<vmem>>, vector<8x130xf32>
    %cst_51 = arith.constant -0.0255434643 : f32
    %92 = vector.broadcast %cst_51 : f32 to vector<8x130xf32>
    %93 = arith.mulf %92, %91 : vector<8x130xf32>
    %94 = arith.addf %90, %93 : vector<8x130xf32>
    %c0_52 = arith.constant 0 : index
    %c2_53 = arith.constant 2 : index
    %95 = vector.load %arg11[%c0_52, %c2_53] : memref<8x136xf32, #tpu.memory_space<vmem>>, vector<8x130xf32>
    %cst_54 = arith.constant -0.0576573759 : f32
    %96 = vector.broadcast %cst_54 : f32 to vector<8x130xf32>
    %97 = arith.mulf %96, %95 : vector<8x130xf32>
    %98 = arith.addf %94, %97 : vector<8x130xf32>
    %c0_55 = arith.constant 0 : index
    %c2_56 = arith.constant 2 : index
    %99 = vector.load %arg12[%c0_55, %c2_56] : memref<8x136xf32, #tpu.memory_space<vmem>>, vector<8x130xf32>
    %cst_57 = arith.constant 0.128572613 : f32
    %100 = vector.broadcast %cst_57 : f32 to vector<8x130xf32>
    %101 = arith.mulf %100, %99 : vector<8x130xf32>
    %102 = arith.addf %98, %101 : vector<8x130xf32>
    %c0_58 = arith.constant 0 : index
    %c3_59 = arith.constant 3 : index
    %103 = vector.load %arg11[%c0_58, %c3_59] : memref<8x136xf32, #tpu.memory_space<vmem>>, vector<8x130xf32>
    %cst_60 = arith.constant 0.443209797 : f32
    %104 = vector.broadcast %cst_60 : f32 to vector<8x130xf32>
    %105 = arith.mulf %104, %103 : vector<8x130xf32>
    %106 = arith.addf %102, %105 : vector<8x130xf32>
    %c0_61 = arith.constant 0 : index
    %c3_62 = arith.constant 3 : index
    %107 = vector.load %arg12[%c0_61, %c3_62] : memref<8x136xf32, #tpu.memory_space<vmem>>, vector<8x130xf32>
    %cst_63 = arith.constant 0.443209797 : f32
    %108 = vector.broadcast %cst_63 : f32 to vector<8x130xf32>
    %109 = arith.mulf %108, %107 : vector<8x130xf32>
    %110 = arith.addf %106, %109 : vector<8x130xf32>
    %c0_64 = arith.constant 0 : index
    %c4_65 = arith.constant 4 : index
    %111 = vector.load %arg11[%c0_64, %c4_65] : memref<8x136xf32, #tpu.memory_space<vmem>>, vector<8x130xf32>
    %cst_66 = arith.constant 0.128572613 : f32
    %112 = vector.broadcast %cst_66 : f32 to vector<8x130xf32>
    %113 = arith.mulf %112, %111 : vector<8x130xf32>
    %114 = arith.addf %110, %113 : vector<8x130xf32>
    %c0_67 = arith.constant 0 : index
    %c4_68 = arith.constant 4 : index
    %115 = vector.load %arg12[%c0_67, %c4_68] : memref<8x136xf32, #tpu.memory_space<vmem>>, vector<8x130xf32>
    %cst_69 = arith.constant -0.0576573759 : f32
    %116 = vector.broadcast %cst_69 : f32 to vector<8x130xf32>
    %117 = arith.mulf %116, %115 : vector<8x130xf32>
    %118 = arith.addf %114, %117 : vector<8x130xf32>
    %c0_70 = arith.constant 0 : index
    %c5_71 = arith.constant 5 : index
    %119 = vector.load %arg11[%c0_70, %c5_71] : memref<8x136xf32, #tpu.memory_space<vmem>>, vector<8x130xf32>
    %cst_72 = arith.constant -0.0255434643 : f32
    %120 = vector.broadcast %cst_72 : f32 to vector<8x130xf32>
    %121 = arith.mulf %120, %119 : vector<8x130xf32>
    %122 = arith.addf %118, %121 : vector<8x130xf32>
    %c0_73 = arith.constant 0 : index
    %c5_74 = arith.constant 5 : index
    %123 = vector.load %arg12[%c0_73, %c5_74] : memref<8x136xf32, #tpu.memory_space<vmem>>, vector<8x130xf32>
    %cst_75 = arith.constant 0.00938946381 : f32
    %124 = vector.broadcast %cst_75 : f32 to vector<8x130xf32>
    %125 = arith.mulf %124, %123 : vector<8x130xf32>
    %126 = arith.addf %122, %125 : vector<8x130xf32>
    %c0_76 = arith.constant 0 : index
    %c6_77 = arith.constant 6 : index
    %127 = vector.load %arg11[%c0_76, %c6_77] : memref<8x136xf32, #tpu.memory_space<vmem>>, vector<8x130xf32>
    %cst_78 = arith.constant 0.00202896656 : f32
    %128 = vector.broadcast %cst_78 : f32 to vector<8x130xf32>
    %129 = arith.mulf %128, %127 : vector<8x130xf32>
    %130 = arith.addf %126, %129 : vector<8x130xf32>
    %c0_79 = arith.constant 0 : index
    %c0_80 = arith.constant 0 : index
    %131 = vector.load %arg13[%c0_79, %c0_80] : memref<8x130xf32, #tpu.memory_space<vmem>>, vector<8x130xf32>
    tpu.vector_store %arg13[%c0_79, %c0_80], %130 {strides = array<i32>} : memref<8x130xf32, #tpu.memory_space<vmem>>, vector<8x130xf32>,
    %c0_i32_81 = arith.constant 0 : i32
    %132 = arith.cmpi eq, %arg1, %c0_i32_81 : i32
    %133 = arith.extui %132 : i1 to i32
    %c0_i32_82 = arith.constant 0 : i32
    %134 = arith.cmpi ne, %133, %c0_i32_82 : i32
    scf.if %134 {
      %cst_111 = arith.constant 0.000000e+00 : f32
      %162 = vector.broadcast %cst_111 : f32 to vector<8x1xf32>
      %c0_112 = arith.constant 0 : index
      %c0_113 = arith.constant 0 : index
      %163 = vector.load %arg13[%c0_112, %c0_113] : memref<8x130xf32, #tpu.memory_space<vmem>>, vector<8x1xf32>
      tpu.vector_store %arg13[%c0_112, %c0_113], %162 {strides = array<i32>} : memref<8x130xf32, #tpu.memory_space<vmem>>, vector<8x1xf32>,
    } else {
    }
    %135 = arith.extui %4 : i1 to i32
    %c0_i32_83 = arith.constant 0 : i32
    %136 = arith.cmpi ne, %135, %c0_i32_83 : i32
    scf.if %136 {
      %c1_i32_111 = arith.constant 1 : i32
      %162 = arith.subi %0, %c1_i32_111 : i32
      %163 = tpu.iota {dimensions = array<i32: 1>} : vector<1x130xi32>
      %164 = vector.broadcast %162 : i32 to vector<1x130xi32>
      %165 = arith.addi %164, %163 : vector<1x130xi32>
      %c299_i32 = arith.constant 299 : i32
      %166 = vector.broadcast %c299_i32 : i32 to vector<1x130xi32>
      %167 = arith.cmpi sgt, %165, %166 : vector<1x130xi32>
      %c0_112 = arith.constant 0 : index
      %c0_113 = arith.constant 0 : index
      %168 = vector.load %arg13[%c0_112, %c0_113] : memref<8x130xf32, #tpu.memory_space<vmem>>, vector<8x130xf32>
      %cst_114 = arith.constant 0.000000e+00 : f32
      %169 = vector.shape_cast %167 : vector<1x130xi1> to vector<1x130xi1>
      %170 = vector.broadcast %169 : vector<1x130xi1> to vector<8x130xi1>
      %171 = vector.broadcast %cst_114 : f32 to vector<8x130xf32>
      %172 = arith.select %170, %171, %168 : vector<8x130xi1>, vector<8x130xf32>
      %c0_115 = arith.constant 0 : index
      %c0_116 = arith.constant 0 : index
      %173 = vector.load %arg13[%c0_115, %c0_116] : memref<8x130xf32, #tpu.memory_space<vmem>>, vector<8x130xf32>
      tpu.vector_store %arg13[%c0_115, %c0_116], %172 {strides = array<i32>} : memref<8x130xf32, #tpu.memory_space<vmem>>, vector<8x130xf32>,
    } else {
    }
    %cst_84 = arith.constant 0.000000e+00 : f32
    %137 = vector.broadcast %cst_84 : f32 to vector<8x128xf32>
    %c0_85 = arith.constant 0 : index
    %c0_86 = arith.constant 0 : index
    %c0_87 = arith.constant 0 : index
    %138 = vector.load %arg6[%c0_85, %c0_86, %c0_87] : memref<3x8x8xf32, #tpu.memory_space<vmem>>, vector<1x8x8xf32>
    %139 = vector.shape_cast %138 : vector<1x8x8xf32> to vector<8x8xf32>
    %c0_88 = arith.constant 0 : index
    %c0_89 = arith.constant 0 : index
    %140 = vector.load %arg13[%c0_88, %c0_89] : memref<8x130xf32, #tpu.memory_space<vmem>>, vector<8x128xf32>
    %cst_90 = arith.constant dense<0.000000e+00> : vector<8x128xf32>
    %141 = tpu.matmul %139, %140, %cst_90 {dimension_numbers = #tpu.dot_dimension_numbers<[1], [0], [0], [1], [0, 0, 1, 1], [], []>} : vector<8x8xf32>, vector<8x128xf32>, vector<8x128xf32> -> vector<8x128xf32>
    %142 = arith.addf %137, %141 : vector<8x128xf32>
    %c1_91 = arith.constant 1 : index
    %c0_92 = arith.constant 0 : index
    %c0_93 = arith.constant 0 : index
    %143 = vector.load %arg6[%c1_91, %c0_92, %c0_93] : memref<3x8x8xf32, #tpu.memory_space<vmem>>, vector<1x8x8xf32>
    %144 = vector.shape_cast %143 : vector<1x8x8xf32> to vector<8x8xf32>
    %c0_94 = arith.constant 0 : index
    %c1_95 = arith.constant 1 : index
    %145 = vector.load %arg13[%c0_94, %c1_95] : memref<8x130xf32, #tpu.memory_space<vmem>>, vector<8x128xf32>
    %cst_96 = arith.constant dense<0.000000e+00> : vector<8x128xf32>
    %146 = tpu.matmul %144, %145, %cst_96 {dimension_numbers = #tpu.dot_dimension_numbers<[1], [0], [0], [1], [0, 0, 1, 1], [], []>} : vector<8x8xf32>, vector<8x128xf32>, vector<8x128xf32> -> vector<8x128xf32>
    %147 = arith.addf %142, %146 : vector<8x128xf32>
    %c2_97 = arith.constant 2 : index
    %c0_98 = arith.constant 0 : index
    %c0_99 = arith.constant 0 : index
    %148 = vector.load %arg6[%c2_97, %c0_98, %c0_99] : memref<3x8x8xf32, #tpu.memory_space<vmem>>, vector<1x8x8xf32>
    %149 = vector.shape_cast %148 : vector<1x8x8xf32> to vector<8x8xf32>
    %c0_100 = arith.constant 0 : index
    %c2_101 = arith.constant 2 : index
    %150 = vector.load %arg13[%c0_100, %c2_101] : memref<8x130xf32, #tpu.memory_space<vmem>>, vector<8x128xf32>
    %cst_102 = arith.constant dense<0.000000e+00> : vector<8x128xf32>
    %151 = tpu.matmul %149, %150, %cst_102 {dimension_numbers = #tpu.dot_dimension_numbers<[1], [0], [0], [1], [0, 0, 1, 1], [], []>} : vector<8x8xf32>, vector<8x128xf32>, vector<8x128xf32> -> vector<8x128xf32>
    %152 = arith.addf %147, %151 : vector<8x128xf32>
    %c0_103 = arith.constant 0 : index
    %c0_104 = arith.constant 0 : index
    %153 = vector.load %arg7[%c0_103, %c0_104] : memref<8x1xf32, #tpu.memory_space<vmem>>, vector<8x1xf32>
    %154 = vector.broadcast %153 : vector<8x1xf32> to vector<8x128xf32>
    %155 = arith.addf %152, %154 : vector<8x128xf32>
    %c0_105 = arith.constant 0 : index
    %c0_106 = arith.constant 0 : index
    %c0_107 = arith.constant 0 : index
    %156 = vector.load %arg8[%c0_105, %c0_106, %c0_107] : memref<1x8x128xf32, #tpu.memory_space<vmem>>, vector<1x8x128xf32>
    %157 = vector.shape_cast %156 : vector<1x8x128xf32> to vector<8x128xf32>
    %158 = arith.addf %155, %157 : vector<8x128xf32>
    %c0_108 = arith.constant 0 : index
    %c0_109 = arith.constant 0 : index
    %c0_110 = arith.constant 0 : index
    %159 = vector.load %arg9[%c0_108, %c0_109, %c0_110] : memref<1x8x128xf32, #tpu.memory_space<vmem>>, vector<1x8x128xf32>
    %160 = vector.shape_cast %159 : vector<1x8x128xf32> to vector<8x128xf32>
    %161 = vector.shape_cast %158 : vector<8x128xf32> to vector<1x8x128xf32>
    tpu.vector_store %arg9[%c0_108, %c0_109, %c0_110], %161 {strides = array<i32>} : memref<1x8x128xf32, #tpu.memory_space<vmem>>, vector<1x8x128xf32>,
    return
  }
  func.func @transform_0(%arg0: i32, %arg1: i32) -> (i32, i32, i32) {
    %c1_i32 = arith.constant 1 : i32
    %0 = arith.muli %arg1, %c1_i32 : i32
    %c1_i32_0 = arith.constant 1 : i32
    %1 = arith.subi %0, %c1_i32_0 : i32
    %c0_i32 = arith.constant 0 : i32
    %2 = arith.maxsi %1, %c0_i32 : i32
    %c0_i32_1 = arith.constant 0 : i32
    %c0_i32_2 = arith.constant 0 : i32
    return %arg0, %c0_i32_1, %2 : i32, i32, i32
  }
  func.func @transform_1(%arg0: i32, %arg1: i32) -> (i32, i32, i32) {
    %c0_i32 = arith.constant 0 : i32
    %c0_i32_0 = arith.constant 0 : i32
    return %arg0, %c0_i32, %arg1 : i32, i32, i32
  }
  func.func @transform_2(%arg0: i32, %arg1: i32) -> (i32, i32, i32) {
    %c1_i32 = arith.constant 1 : i32
    %0 = arith.muli %arg1, %c1_i32 : i32
    %c1_i32_0 = arith.constant 1 : i32
    %1 = arith.addi %0, %c1_i32_0 : i32
    %c2_i32 = arith.constant 2 : i32
    %2 = arith.minsi %1, %c2_i32 : i32
    %c0_i32 = arith.constant 0 : i32
    %c0_i32_1 = arith.constant 0 : i32
    return %arg0, %c0_i32, %2 : i32, i32, i32
  }
  func.func @transform_3(%arg0: i32, %arg1: i32) -> (i32, i32) {
    %c0_i32 = arith.constant 0 : i32
    %c0_i32_0 = arith.constant 0 : i32
    %c0_i32_1 = arith.constant 0 : i32
    return %c0_i32, %c0_i32_0 : i32, i32
  }
  func.func @transform_4(%arg0: i32, %arg1: i32) -> (i32, i32, i32) {
    %c0_i32 = arith.constant 0 : i32
    %c0_i32_0 = arith.constant 0 : i32
    %c0_i32_1 = arith.constant 0 : i32
    %c0_i32_2 = arith.constant 0 : i32
    return %c0_i32, %c0_i32_0, %c0_i32_1 : i32, i32, i32
  }
  func.func @transform_5(%arg0: i32, %arg1: i32) -> (i32, i32) {
    %c0_i32 = arith.constant 0 : i32
    %c0_i32_0 = arith.constant 0 : i32
    %c0_i32_1 = arith.constant 0 : i32
    return %c0_i32, %c0_i32_0 : i32, i32
  }
  func.func @transform_6(%arg0: i32, %arg1: i32) -> (i32, i32, i32) {
    %c0_i32 = arith.constant 0 : i32
    %c0_i32_0 = arith.constant 0 : i32
    return %arg0, %c0_i32, %arg1 : i32, i32, i32
  }
  func.func @transform_7(%arg0: i32, %arg1: i32) -> (i32, i32, i32) {
    %c0_i32 = arith.constant 0 : i32
    %c0_i32_0 = arith.constant 0 : i32
    return %arg0, %c0_i32, %arg1 : i32, i32, i32
  }
}

module attributes {stable_mosaic.version = 11 : i64} {
  func.func @_aa_conv_kernel(%arg0: i32, %arg1: i32, %arg2: memref<1x8x128xf32, #tpu.memory_space<vmem>>, %arg3: memref<1x8x128xf32, #tpu.memory_space<vmem>>, %arg4: memref<1x8x128xf32, #tpu.memory_space<vmem>>, %arg5: memref<8x2xf32, #tpu.memory_space<vmem>>, %arg6: memref<3x8x8xf32, #tpu.memory_space<vmem>>, %arg7: memref<8x1xf32, #tpu.memory_space<vmem>>, %arg8: memref<1x8x128xf32, #tpu.memory_space<vmem>>, %arg9: memref<8x146xf32, #tpu.memory_space<vmem>>, %arg10: memref<8x140xf32, #tpu.memory_space<vmem>>, %arg11: memref<8x140xf32, #tpu.memory_space<vmem>>, %arg12: memref<8x134xf32, #tpu.memory_space<vmem>>) attributes {dimension_semantics = [#tpu.dimension_semantics<parallel>, #tpu.dimension_semantics<parallel>], iteration_bounds = array<i64: 2, 3>, scalar_prefetch = 0 : i64, scratch_operands = 4 : i64, tpu.core_type = #tpu.core_type<tc>, window_params = [{transform_indices = @transform_0, window_bounds = array<i64: 1, 8, 128>}, {transform_indices = @transform_1, window_bounds = array<i64: 1, 8, 128>}, {transform_indices = @transform_2, window_bounds = array<i64: 1, 8, 128>}, {pipeline_mode = #tpu.pipeline_mode<synchronous>, transform_indices = @transform_3, window_bounds = array<i64: 8, 2>}, {pipeline_mode = #tpu.pipeline_mode<synchronous>, transform_indices = @transform_4, window_bounds = array<i64: 3, 8, 8>}, {pipeline_mode = #tpu.pipeline_mode<synchronous>, transform_indices = @transform_5, window_bounds = array<i64: 8, 1>}, {transform_indices = @transform_6, window_bounds = array<i64: 1, 8, 128>}]} {
    %c128_i32 = arith.constant 128 : i32
    %0 = arith.muli %arg1, %c128_i32 : i32
    %c128_i32_0 = arith.constant 128 : i32
    %1 = arith.addi %0, %c128_i32_0 : i32
    %c3_i32 = arith.constant 3 : i32
    %2 = arith.addi %1, %c3_i32 : i32
    %c5_i32 = arith.constant 5 : i32
    %3 = arith.addi %2, %c5_i32 : i32
    %c300_i32 = arith.constant 300 : i32
    %4 = arith.cmpi sge, %3, %c300_i32 : i32
    %c0 = arith.constant 0 : index
    %c0_1 = arith.constant 0 : index
    %c0_2 = arith.constant 0 : index
    %5 = vector.load %arg2[%c0, %c0_1, %c0_2] : memref<1x8x128xf32, #tpu.memory_space<vmem>>, vector<1x8x128xf32>
    %6 = vector.shape_cast %5 : vector<1x8x128xf32> to vector<8x128xf32>
    %7 = vector.extract_strided_slice %6 {offsets = [0, 119], sizes = [8, 9], strides = [1, 1]} : vector<8x128xf32> to vector<8x9xf32>
    %c0_3 = arith.constant 0 : index
    %c0_4 = arith.constant 0 : index
    %c0_5 = arith.constant 0 : index
    %8 = vector.load %arg3[%c0_3, %c0_4, %c0_5] : memref<1x8x128xf32, #tpu.memory_space<vmem>>, vector<1x8x128xf32>
    %9 = vector.shape_cast %8 : vector<1x8x128xf32> to vector<8x128xf32>
    %c0_6 = arith.constant 0 : index
    %c0_7 = arith.constant 0 : index
    %c0_8 = arith.constant 0 : index
    %10 = vector.load %arg4[%c0_6, %c0_7, %c0_8] : memref<1x8x128xf32, #tpu.memory_space<vmem>>, vector<1x8x128xf32>
    %11 = vector.shape_cast %10 : vector<1x8x128xf32> to vector<8x128xf32>
    %12 = vector.extract_strided_slice %11 {offsets = [0, 0], sizes = [8, 9], strides = [1, 1]} : vector<8x128xf32> to vector<8x9xf32>
    %13 = tpu.concatenate %7, %9, %12 in 1 : vector<8x9xf32>, vector<8x128xf32>, vector<8x9xf32> -> vector<8x146xf32>
    %c0_9 = arith.constant 0 : index
    %c0_10 = arith.constant 0 : index
    %14 = vector.load %arg9[%c0_9, %c0_10] : memref<8x146xf32, #tpu.memory_space<vmem>>, vector<8x146xf32>
    tpu.vector_store %arg9[%c0_9, %c0_10], %13 {strides = array<i32>} : memref<8x146xf32, #tpu.memory_space<vmem>>, vector<8x146xf32>,
    %c0_i32 = arith.constant 0 : i32
    %15 = arith.cmpi eq, %arg1, %c0_i32 : i32
    %16 = arith.extui %15 : i1 to i32
    %c0_i32_11 = arith.constant 0 : i32
    %17 = arith.cmpi ne, %16, %c0_i32_11 : i32
    scf.if %17 {
      %c0_108 = arith.constant 0 : index
      %c9 = arith.constant 9 : index
      %159 = vector.load %arg9[%c0_108, %c9] : memref<8x146xf32, #tpu.memory_space<vmem>>, vector<8x1xf32>
      %160 = vector.shape_cast %159 : vector<8x1xf32> to vector<8x1xf32>
      %161 = vector.broadcast %160 : vector<8x1xf32> to vector<8x9xf32>
      %c0_109 = arith.constant 0 : index
      %c0_110 = arith.constant 0 : index
      %162 = vector.load %arg9[%c0_109, %c0_110] : memref<8x146xf32, #tpu.memory_space<vmem>>, vector<8x9xf32>
      tpu.vector_store %arg9[%c0_109, %c0_110], %161 {strides = array<i32>} : memref<8x146xf32, #tpu.memory_space<vmem>>, vector<8x9xf32>,
    } else {
    }
    %18 = arith.extui %4 : i1 to i32
    %c0_i32_12 = arith.constant 0 : i32
    %19 = arith.cmpi ne, %18, %c0_i32_12 : i32
    scf.if %19 {
      %c9_i32 = arith.constant 9 : i32
      %159 = arith.subi %0, %c9_i32 : i32
      %160 = tpu.iota {dimensions = array<i32: 1>} : vector<1x146xi32>
      %161 = vector.broadcast %159 : i32 to vector<1x146xi32>
      %162 = arith.addi %161, %160 : vector<1x146xi32>
      %c0_108 = arith.constant 0 : index
      %c0_109 = arith.constant 0 : index
      %163 = vector.load %arg9[%c0_108, %c0_109] : memref<8x146xf32, #tpu.memory_space<vmem>>, vector<8x146xf32>
      %c299_i32 = arith.constant 299 : i32
      %164 = vector.broadcast %c299_i32 : i32 to vector<1x146xi32>
      %165 = arith.cmpi eq, %162, %164 : vector<1x146xi32>
      %cst_110 = arith.constant 0.000000e+00 : f32
      %166 = vector.shape_cast %165 : vector<1x146xi1> to vector<1x146xi1>
      %167 = vector.broadcast %166 : vector<1x146xi1> to vector<8x146xi1>
      %168 = vector.broadcast %cst_110 : f32 to vector<8x146xf32>
      %169 = arith.select %167, %163, %168 : vector<8x146xi1>, vector<8x146xf32>
      %cst_111 = arith.constant dense<0.000000e+00> : vector<8xf32>
      %170 = vector.multi_reduction <add>, %169, %cst_111 [1] : vector<8x146xf32> to vector<8xf32>
      %171 = vector.shape_cast %170 : vector<8xf32> to vector<8x1xf32>
      %c299_i32_112 = arith.constant 299 : i32
      %172 = vector.broadcast %c299_i32_112 : i32 to vector<1x146xi32>
      %173 = arith.cmpi sgt, %162, %172 : vector<1x146xi32>
      %174 = vector.shape_cast %173 : vector<1x146xi1> to vector<1x146xi1>
      %175 = vector.broadcast %174 : vector<1x146xi1> to vector<8x146xi1>
      %176 = vector.shape_cast %171 : vector<8x1xf32> to vector<8x1xf32>
      %177 = vector.broadcast %176 : vector<8x1xf32> to vector<8x146xf32>
      %178 = arith.select %175, %177, %163 : vector<8x146xi1>, vector<8x146xf32>
      %c0_113 = arith.constant 0 : index
      %c0_114 = arith.constant 0 : index
      %179 = vector.load %arg9[%c0_113, %c0_114] : memref<8x146xf32, #tpu.memory_space<vmem>>, vector<8x146xf32>
      tpu.vector_store %arg9[%c0_113, %c0_114], %178 {strides = array<i32>} : memref<8x146xf32, #tpu.memory_space<vmem>>, vector<8x146xf32>,
    } else {
    }
    %c0_13 = arith.constant 0 : index
    %c0_14 = arith.constant 0 : index
    %20 = vector.load %arg9[%c0_13, %c0_14] : memref<8x146xf32, #tpu.memory_space<vmem>>, vector<8x140xf32>
    %c0_15 = arith.constant 0 : index
    %c1 = arith.constant 1 : index
    %21 = vector.load %arg9[%c0_15, %c1] : memref<8x146xf32, #tpu.memory_space<vmem>>, vector<8x140xf32>
    %c0_16 = arith.constant 0 : index
    %c2 = arith.constant 2 : index
    %22 = vector.load %arg9[%c0_16, %c2] : memref<8x146xf32, #tpu.memory_space<vmem>>, vector<8x140xf32>
    %c0_17 = arith.constant 0 : index
    %c3 = arith.constant 3 : index
    %23 = vector.load %arg9[%c0_17, %c3] : memref<8x146xf32, #tpu.memory_space<vmem>>, vector<8x140xf32>
    %c0_18 = arith.constant 0 : index
    %c4 = arith.constant 4 : index
    %24 = vector.load %arg9[%c0_18, %c4] : memref<8x146xf32, #tpu.memory_space<vmem>>, vector<8x140xf32>
    %c0_19 = arith.constant 0 : index
    %c5 = arith.constant 5 : index
    %25 = vector.load %arg9[%c0_19, %c5] : memref<8x146xf32, #tpu.memory_space<vmem>>, vector<8x140xf32>
    %c0_20 = arith.constant 0 : index
    %c6 = arith.constant 6 : index
    %26 = vector.load %arg9[%c0_20, %c6] : memref<8x146xf32, #tpu.memory_space<vmem>>, vector<8x140xf32>
    %cst = arith.constant 0.00405793311 : f32
    %27 = vector.broadcast %cst : f32 to vector<8x140xf32>
    %28 = arith.mulf %27, %20 : vector<8x140xf32>
    %cst_21 = arith.constant 0.0187789276 : f32
    %29 = vector.broadcast %cst_21 : f32 to vector<8x140xf32>
    %30 = arith.mulf %29, %21 : vector<8x140xf32>
    %cst_22 = arith.constant -0.0510869287 : f32
    %31 = vector.broadcast %cst_22 : f32 to vector<8x140xf32>
    %32 = arith.mulf %31, %21 : vector<8x140xf32>
    %33 = arith.addf %28, %32 : vector<8x140xf32>
    %cst_23 = arith.constant -0.115314752 : f32
    %34 = vector.broadcast %cst_23 : f32 to vector<8x140xf32>
    %35 = arith.mulf %34, %22 : vector<8x140xf32>
    %36 = arith.addf %30, %35 : vector<8x140xf32>
    %cst_24 = arith.constant 0.257145226 : f32
    %37 = vector.broadcast %cst_24 : f32 to vector<8x140xf32>
    %38 = arith.mulf %37, %22 : vector<8x140xf32>
    %39 = arith.addf %33, %38 : vector<8x140xf32>
    %cst_25 = arith.constant 0.886419594 : f32
    %40 = vector.broadcast %cst_25 : f32 to vector<8x140xf32>
    %41 = arith.mulf %40, %23 : vector<8x140xf32>
    %42 = arith.addf %36, %41 : vector<8x140xf32>
    %cst_26 = arith.constant 0.886419594 : f32
    %43 = vector.broadcast %cst_26 : f32 to vector<8x140xf32>
    %44 = arith.mulf %43, %23 : vector<8x140xf32>
    %45 = arith.addf %39, %44 : vector<8x140xf32>
    %cst_27 = arith.constant 0.257145226 : f32
    %46 = vector.broadcast %cst_27 : f32 to vector<8x140xf32>
    %47 = arith.mulf %46, %24 : vector<8x140xf32>
    %48 = arith.addf %42, %47 : vector<8x140xf32>
    %cst_28 = arith.constant -0.115314752 : f32
    %49 = vector.broadcast %cst_28 : f32 to vector<8x140xf32>
    %50 = arith.mulf %49, %24 : vector<8x140xf32>
    %51 = arith.addf %45, %50 : vector<8x140xf32>
    %cst_29 = arith.constant -0.0510869287 : f32
    %52 = vector.broadcast %cst_29 : f32 to vector<8x140xf32>
    %53 = arith.mulf %52, %25 : vector<8x140xf32>
    %54 = arith.addf %48, %53 : vector<8x140xf32>
    %cst_30 = arith.constant 0.0187789276 : f32
    %55 = vector.broadcast %cst_30 : f32 to vector<8x140xf32>
    %56 = arith.mulf %55, %25 : vector<8x140xf32>
    %57 = arith.addf %51, %56 : vector<8x140xf32>
    %cst_31 = arith.constant 0.00405793311 : f32
    %58 = vector.broadcast %cst_31 : f32 to vector<8x140xf32>
    %59 = arith.mulf %58, %26 : vector<8x140xf32>
    %60 = arith.addf %54, %59 : vector<8x140xf32>
    %c0_32 = arith.constant 0 : index
    %c0_33 = arith.constant 0 : index
    %61 = vector.load %arg5[%c0_32, %c0_33] : memref<8x2xf32, #tpu.memory_space<vmem>>, vector<8x1xf32>
    %c0_34 = arith.constant 0 : index
    %c1_35 = arith.constant 1 : index
    %62 = vector.load %arg5[%c0_34, %c1_35] : memref<8x2xf32, #tpu.memory_space<vmem>>, vector<8x1xf32>
    %63 = vector.broadcast %61 : vector<8x1xf32> to vector<8x140xf32>
    %64 = arith.mulf %63, %57 : vector<8x140xf32>
    %65 = math.sin %64 : vector<8x140xf32>
    %66 = arith.mulf %65, %65 : vector<8x140xf32>
    %67 = vector.broadcast %62 : vector<8x1xf32> to vector<8x140xf32>
    %68 = arith.mulf %67, %66 : vector<8x140xf32>
    %69 = arith.addf %57, %68 : vector<8x140xf32>
    %c0_36 = arith.constant 0 : index
    %c0_37 = arith.constant 0 : index
    %70 = vector.load %arg10[%c0_36, %c0_37] : memref<8x140xf32, #tpu.memory_space<vmem>>, vector<8x140xf32>
    tpu.vector_store %arg10[%c0_36, %c0_37], %69 {strides = array<i32>} : memref<8x140xf32, #tpu.memory_space<vmem>>, vector<8x140xf32>,
    %71 = vector.broadcast %61 : vector<8x1xf32> to vector<8x140xf32>
    %72 = arith.mulf %71, %60 : vector<8x140xf32>
    %73 = math.sin %72 : vector<8x140xf32>
    %74 = arith.mulf %73, %73 : vector<8x140xf32>
    %75 = vector.broadcast %62 : vector<8x1xf32> to vector<8x140xf32>
    %76 = arith.mulf %75, %74 : vector<8x140xf32>
    %77 = arith.addf %60, %76 : vector<8x140xf32>
    %c0_38 = arith.constant 0 : index
    %c0_39 = arith.constant 0 : index
    %78 = vector.load %arg11[%c0_38, %c0_39] : memref<8x140xf32, #tpu.memory_space<vmem>>, vector<8x140xf32>
    tpu.vector_store %arg11[%c0_38, %c0_39], %77 {strides = array<i32>} : memref<8x140xf32, #tpu.memory_space<vmem>>, vector<8x140xf32>,
    %c0_i32_40 = arith.constant 0 : i32
    %79 = arith.cmpi eq, %arg1, %c0_i32_40 : i32
    %80 = arith.extui %79 : i1 to i32
    %c0_i32_41 = arith.constant 0 : i32
    %81 = arith.cmpi ne, %80, %c0_i32_41 : i32
    scf.if %81 {
      %c0_108 = arith.constant 0 : index
      %c6_109 = arith.constant 6 : index
      %159 = vector.load %arg10[%c0_108, %c6_109] : memref<8x140xf32, #tpu.memory_space<vmem>>, vector<8x1xf32>
      %160 = vector.shape_cast %159 : vector<8x1xf32> to vector<8x1xf32>
      %161 = vector.broadcast %160 : vector<8x1xf32> to vector<8x6xf32>
      %c0_110 = arith.constant 0 : index
      %c0_111 = arith.constant 0 : index
      %162 = vector.load %arg10[%c0_110, %c0_111] : memref<8x140xf32, #tpu.memory_space<vmem>>, vector<8x6xf32>
      tpu.vector_store %arg10[%c0_110, %c0_111], %161 {strides = array<i32>} : memref<8x140xf32, #tpu.memory_space<vmem>>, vector<8x6xf32>,
      %163 = vector.shape_cast %159 : vector<8x1xf32> to vector<8x1xf32>
      %164 = vector.broadcast %163 : vector<8x1xf32> to vector<8x6xf32>
      %c0_112 = arith.constant 0 : index
      %c0_113 = arith.constant 0 : index
      %165 = vector.load %arg11[%c0_112, %c0_113] : memref<8x140xf32, #tpu.memory_space<vmem>>, vector<8x6xf32>
      tpu.vector_store %arg11[%c0_112, %c0_113], %164 {strides = array<i32>} : memref<8x140xf32, #tpu.memory_space<vmem>>, vector<8x6xf32>,
    } else {
    }
    %82 = arith.extui %4 : i1 to i32
    %c0_i32_42 = arith.constant 0 : i32
    %83 = arith.cmpi ne, %82, %c0_i32_42 : i32
    scf.if %83 {
      %c3_i32_108 = arith.constant 3 : i32
      %159 = arith.subi %0, %c3_i32_108 : i32
      %c3_i32_109 = arith.constant 3 : i32
      %160 = arith.subi %159, %c3_i32_109 : i32
      %161 = tpu.iota {dimensions = array<i32: 1>} : vector<1x140xi32>
      %162 = vector.broadcast %160 : i32 to vector<1x140xi32>
      %163 = arith.addi %162, %161 : vector<1x140xi32>
      %c0_110 = arith.constant 0 : index
      %c0_111 = arith.constant 0 : index
      %164 = vector.load %arg11[%c0_110, %c0_111] : memref<8x140xf32, #tpu.memory_space<vmem>>, vector<8x140xf32>
      %c299_i32 = arith.constant 299 : i32
      %165 = vector.broadcast %c299_i32 : i32 to vector<1x140xi32>
      %166 = arith.cmpi eq, %163, %165 : vector<1x140xi32>
      %cst_112 = arith.constant 0.000000e+00 : f32
      %167 = vector.shape_cast %166 : vector<1x140xi1> to vector<1x140xi1>
      %168 = vector.broadcast %167 : vector<1x140xi1> to vector<8x140xi1>
      %169 = vector.broadcast %cst_112 : f32 to vector<8x140xf32>
      %170 = arith.select %168, %164, %169 : vector<8x140xi1>, vector<8x140xf32>
      %cst_113 = arith.constant dense<0.000000e+00> : vector<8xf32>
      %171 = vector.multi_reduction <add>, %170, %cst_113 [1] : vector<8x140xf32> to vector<8xf32>
      %172 = vector.shape_cast %171 : vector<8xf32> to vector<8x1xf32>
      %c299_i32_114 = arith.constant 299 : i32
      %173 = vector.broadcast %c299_i32_114 : i32 to vector<1x140xi32>
      %174 = arith.cmpi sgt, %163, %173 : vector<1x140xi32>
      %c0_115 = arith.constant 0 : index
      %c0_116 = arith.constant 0 : index
      %175 = vector.load %arg10[%c0_115, %c0_116] : memref<8x140xf32, #tpu.memory_space<vmem>>, vector<8x140xf32>
      %176 = vector.shape_cast %174 : vector<1x140xi1> to vector<1x140xi1>
      %177 = vector.broadcast %176 : vector<1x140xi1> to vector<8x140xi1>
      %178 = vector.shape_cast %172 : vector<8x1xf32> to vector<8x1xf32>
      %179 = vector.broadcast %178 : vector<8x1xf32> to vector<8x140xf32>
      %180 = arith.select %177, %179, %175 : vector<8x140xi1>, vector<8x140xf32>
      %c0_117 = arith.constant 0 : index
      %c0_118 = arith.constant 0 : index
      %181 = vector.load %arg10[%c0_117, %c0_118] : memref<8x140xf32, #tpu.memory_space<vmem>>, vector<8x140xf32>
      tpu.vector_store %arg10[%c0_117, %c0_118], %180 {strides = array<i32>} : memref<8x140xf32, #tpu.memory_space<vmem>>, vector<8x140xf32>,
      %c299_i32_119 = arith.constant 299 : i32
      %182 = vector.broadcast %c299_i32_119 : i32 to vector<1x140xi32>
      %183 = arith.cmpi sgt, %163, %182 : vector<1x140xi32>
      %184 = vector.shape_cast %183 : vector<1x140xi1> to vector<1x140xi1>
      %185 = vector.broadcast %184 : vector<1x140xi1> to vector<8x140xi1>
      %186 = vector.shape_cast %172 : vector<8x1xf32> to vector<8x1xf32>
      %187 = vector.broadcast %186 : vector<8x1xf32> to vector<8x140xf32>
      %188 = arith.select %185, %187, %164 : vector<8x140xi1>, vector<8x140xf32>
      %c0_120 = arith.constant 0 : index
      %c0_121 = arith.constant 0 : index
      %189 = vector.load %arg11[%c0_120, %c0_121] : memref<8x140xf32, #tpu.memory_space<vmem>>, vector<8x140xf32>
      tpu.vector_store %arg11[%c0_120, %c0_121], %188 {strides = array<i32>} : memref<8x140xf32, #tpu.memory_space<vmem>>, vector<8x140xf32>,
    } else {
    }
    %c0_43 = arith.constant 0 : index
    %c0_44 = arith.constant 0 : index
    %84 = vector.load %arg11[%c0_43, %c0_44] : memref<8x140xf32, #tpu.memory_space<vmem>>, vector<8x134xf32>
    %cst_45 = arith.constant 0.00202896656 : f32
    %85 = vector.broadcast %cst_45 : f32 to vector<8x134xf32>
    %86 = arith.mulf %85, %84 : vector<8x134xf32>
    %c0_46 = arith.constant 0 : index
    %c1_47 = arith.constant 1 : index
    %87 = vector.load %arg10[%c0_46, %c1_47] : memref<8x140xf32, #tpu.memory_space<vmem>>, vector<8x134xf32>
    %cst_48 = arith.constant 0.00938946381 : f32
    %88 = vector.broadcast %cst_48 : f32 to vector<8x134xf32>
    %89 = arith.mulf %88, %87 : vector<8x134xf32>
    %90 = arith.addf %86, %89 : vector<8x134xf32>
    %c0_49 = arith.constant 0 : index
    %c1_50 = arith.constant 1 : index
    %91 = vector.load %arg11[%c0_49, %c1_50] : memref<8x140xf32, #tpu.memory_space<vmem>>, vector<8x134xf32>
    %cst_51 = arith.constant -0.0255434643 : f32
    %92 = vector.broadcast %cst_51 : f32 to vector<8x134xf32>
    %93 = arith.mulf %92, %91 : vector<8x134xf32>
    %94 = arith.addf %90, %93 : vector<8x134xf32>
    %c0_52 = arith.constant 0 : index
    %c2_53 = arith.constant 2 : index
    %95 = vector.load %arg10[%c0_52, %c2_53] : memref<8x140xf32, #tpu.memory_space<vmem>>, vector<8x134xf32>
    %cst_54 = arith.constant -0.0576573759 : f32
    %96 = vector.broadcast %cst_54 : f32 to vector<8x134xf32>
    %97 = arith.mulf %96, %95 : vector<8x134xf32>
    %98 = arith.addf %94, %97 : vector<8x134xf32>
    %c0_55 = arith.constant 0 : index
    %c2_56 = arith.constant 2 : index
    %99 = vector.load %arg11[%c0_55, %c2_56] : memref<8x140xf32, #tpu.memory_space<vmem>>, vector<8x134xf32>
    %cst_57 = arith.constant 0.128572613 : f32
    %100 = vector.broadcast %cst_57 : f32 to vector<8x134xf32>
    %101 = arith.mulf %100, %99 : vector<8x134xf32>
    %102 = arith.addf %98, %101 : vector<8x134xf32>
    %c0_58 = arith.constant 0 : index
    %c3_59 = arith.constant 3 : index
    %103 = vector.load %arg10[%c0_58, %c3_59] : memref<8x140xf32, #tpu.memory_space<vmem>>, vector<8x134xf32>
    %cst_60 = arith.constant 0.443209797 : f32
    %104 = vector.broadcast %cst_60 : f32 to vector<8x134xf32>
    %105 = arith.mulf %104, %103 : vector<8x134xf32>
    %106 = arith.addf %102, %105 : vector<8x134xf32>
    %c0_61 = arith.constant 0 : index
    %c3_62 = arith.constant 3 : index
    %107 = vector.load %arg11[%c0_61, %c3_62] : memref<8x140xf32, #tpu.memory_space<vmem>>, vector<8x134xf32>
    %cst_63 = arith.constant 0.443209797 : f32
    %108 = vector.broadcast %cst_63 : f32 to vector<8x134xf32>
    %109 = arith.mulf %108, %107 : vector<8x134xf32>
    %110 = arith.addf %106, %109 : vector<8x134xf32>
    %c0_64 = arith.constant 0 : index
    %c4_65 = arith.constant 4 : index
    %111 = vector.load %arg10[%c0_64, %c4_65] : memref<8x140xf32, #tpu.memory_space<vmem>>, vector<8x134xf32>
    %cst_66 = arith.constant 0.128572613 : f32
    %112 = vector.broadcast %cst_66 : f32 to vector<8x134xf32>
    %113 = arith.mulf %112, %111 : vector<8x134xf32>
    %114 = arith.addf %110, %113 : vector<8x134xf32>
    %c0_67 = arith.constant 0 : index
    %c4_68 = arith.constant 4 : index
    %115 = vector.load %arg11[%c0_67, %c4_68] : memref<8x140xf32, #tpu.memory_space<vmem>>, vector<8x134xf32>
    %cst_69 = arith.constant -0.0576573759 : f32
    %116 = vector.broadcast %cst_69 : f32 to vector<8x134xf32>
    %117 = arith.mulf %116, %115 : vector<8x134xf32>
    %118 = arith.addf %114, %117 : vector<8x134xf32>
    %c0_70 = arith.constant 0 : index
    %c5_71 = arith.constant 5 : index
    %119 = vector.load %arg10[%c0_70, %c5_71] : memref<8x140xf32, #tpu.memory_space<vmem>>, vector<8x134xf32>
    %cst_72 = arith.constant -0.0255434643 : f32
    %120 = vector.broadcast %cst_72 : f32 to vector<8x134xf32>
    %121 = arith.mulf %120, %119 : vector<8x134xf32>
    %122 = arith.addf %118, %121 : vector<8x134xf32>
    %c0_73 = arith.constant 0 : index
    %c5_74 = arith.constant 5 : index
    %123 = vector.load %arg11[%c0_73, %c5_74] : memref<8x140xf32, #tpu.memory_space<vmem>>, vector<8x134xf32>
    %cst_75 = arith.constant 0.00938946381 : f32
    %124 = vector.broadcast %cst_75 : f32 to vector<8x134xf32>
    %125 = arith.mulf %124, %123 : vector<8x134xf32>
    %126 = arith.addf %122, %125 : vector<8x134xf32>
    %c0_76 = arith.constant 0 : index
    %c6_77 = arith.constant 6 : index
    %127 = vector.load %arg10[%c0_76, %c6_77] : memref<8x140xf32, #tpu.memory_space<vmem>>, vector<8x134xf32>
    %cst_78 = arith.constant 0.00202896656 : f32
    %128 = vector.broadcast %cst_78 : f32 to vector<8x134xf32>
    %129 = arith.mulf %128, %127 : vector<8x134xf32>
    %130 = arith.addf %126, %129 : vector<8x134xf32>
    %c0_79 = arith.constant 0 : index
    %c0_80 = arith.constant 0 : index
    %131 = vector.load %arg12[%c0_79, %c0_80] : memref<8x134xf32, #tpu.memory_space<vmem>>, vector<8x134xf32>
    tpu.vector_store %arg12[%c0_79, %c0_80], %130 {strides = array<i32>} : memref<8x134xf32, #tpu.memory_space<vmem>>, vector<8x134xf32>,
    %c0_i32_81 = arith.constant 0 : i32
    %132 = arith.cmpi eq, %arg1, %c0_i32_81 : i32
    %133 = arith.extui %132 : i1 to i32
    %c0_i32_82 = arith.constant 0 : i32
    %134 = arith.cmpi ne, %133, %c0_i32_82 : i32
    scf.if %134 {
      %cst_108 = arith.constant 0.000000e+00 : f32
      %159 = vector.broadcast %cst_108 : f32 to vector<8x3xf32>
      %c0_109 = arith.constant 0 : index
      %c0_110 = arith.constant 0 : index
      %160 = vector.load %arg12[%c0_109, %c0_110] : memref<8x134xf32, #tpu.memory_space<vmem>>, vector<8x3xf32>
      tpu.vector_store %arg12[%c0_109, %c0_110], %159 {strides = array<i32>} : memref<8x134xf32, #tpu.memory_space<vmem>>, vector<8x3xf32>,
    } else {
    }
    %135 = arith.extui %4 : i1 to i32
    %c0_i32_83 = arith.constant 0 : i32
    %136 = arith.cmpi ne, %135, %c0_i32_83 : i32
    scf.if %136 {
      %c3_i32_108 = arith.constant 3 : i32
      %159 = arith.subi %0, %c3_i32_108 : i32
      %160 = tpu.iota {dimensions = array<i32: 1>} : vector<1x134xi32>
      %161 = vector.broadcast %159 : i32 to vector<1x134xi32>
      %162 = arith.addi %161, %160 : vector<1x134xi32>
      %c299_i32 = arith.constant 299 : i32
      %163 = vector.broadcast %c299_i32 : i32 to vector<1x134xi32>
      %164 = arith.cmpi sgt, %162, %163 : vector<1x134xi32>
      %c0_109 = arith.constant 0 : index
      %c0_110 = arith.constant 0 : index
      %165 = vector.load %arg12[%c0_109, %c0_110] : memref<8x134xf32, #tpu.memory_space<vmem>>, vector<8x134xf32>
      %cst_111 = arith.constant 0.000000e+00 : f32
      %166 = vector.shape_cast %164 : vector<1x134xi1> to vector<1x134xi1>
      %167 = vector.broadcast %166 : vector<1x134xi1> to vector<8x134xi1>
      %168 = vector.broadcast %cst_111 : f32 to vector<8x134xf32>
      %169 = arith.select %167, %168, %165 : vector<8x134xi1>, vector<8x134xf32>
      %c0_112 = arith.constant 0 : index
      %c0_113 = arith.constant 0 : index
      %170 = vector.load %arg12[%c0_112, %c0_113] : memref<8x134xf32, #tpu.memory_space<vmem>>, vector<8x134xf32>
      tpu.vector_store %arg12[%c0_112, %c0_113], %169 {strides = array<i32>} : memref<8x134xf32, #tpu.memory_space<vmem>>, vector<8x134xf32>,
    } else {
    }
    %cst_84 = arith.constant 0.000000e+00 : f32
    %137 = vector.broadcast %cst_84 : f32 to vector<8x128xf32>
    %c0_85 = arith.constant 0 : index
    %c0_86 = arith.constant 0 : index
    %c0_87 = arith.constant 0 : index
    %138 = vector.load %arg6[%c0_85, %c0_86, %c0_87] : memref<3x8x8xf32, #tpu.memory_space<vmem>>, vector<1x8x8xf32>
    %139 = vector.shape_cast %138 : vector<1x8x8xf32> to vector<8x8xf32>
    %c0_88 = arith.constant 0 : index
    %c0_89 = arith.constant 0 : index
    %140 = vector.load %arg12[%c0_88, %c0_89] : memref<8x134xf32, #tpu.memory_space<vmem>>, vector<8x128xf32>
    %cst_90 = arith.constant dense<0.000000e+00> : vector<8x128xf32>
    %141 = tpu.matmul %139, %140, %cst_90 {dimension_numbers = #tpu.dot_dimension_numbers<[1], [0], [0], [1], [0, 0, 1, 1], [], []>} : vector<8x8xf32>, vector<8x128xf32>, vector<8x128xf32> -> vector<8x128xf32>
    %142 = arith.addf %137, %141 : vector<8x128xf32>
    %c1_91 = arith.constant 1 : index
    %c0_92 = arith.constant 0 : index
    %c0_93 = arith.constant 0 : index
    %143 = vector.load %arg6[%c1_91, %c0_92, %c0_93] : memref<3x8x8xf32, #tpu.memory_space<vmem>>, vector<1x8x8xf32>
    %144 = vector.shape_cast %143 : vector<1x8x8xf32> to vector<8x8xf32>
    %c0_94 = arith.constant 0 : index
    %c3_95 = arith.constant 3 : index
    %145 = vector.load %arg12[%c0_94, %c3_95] : memref<8x134xf32, #tpu.memory_space<vmem>>, vector<8x128xf32>
    %cst_96 = arith.constant dense<0.000000e+00> : vector<8x128xf32>
    %146 = tpu.matmul %144, %145, %cst_96 {dimension_numbers = #tpu.dot_dimension_numbers<[1], [0], [0], [1], [0, 0, 1, 1], [], []>} : vector<8x8xf32>, vector<8x128xf32>, vector<8x128xf32> -> vector<8x128xf32>
    %147 = arith.addf %142, %146 : vector<8x128xf32>
    %c2_97 = arith.constant 2 : index
    %c0_98 = arith.constant 0 : index
    %c0_99 = arith.constant 0 : index
    %148 = vector.load %arg6[%c2_97, %c0_98, %c0_99] : memref<3x8x8xf32, #tpu.memory_space<vmem>>, vector<1x8x8xf32>
    %149 = vector.shape_cast %148 : vector<1x8x8xf32> to vector<8x8xf32>
    %c0_100 = arith.constant 0 : index
    %c6_101 = arith.constant 6 : index
    %150 = vector.load %arg12[%c0_100, %c6_101] : memref<8x134xf32, #tpu.memory_space<vmem>>, vector<8x128xf32>
    %cst_102 = arith.constant dense<0.000000e+00> : vector<8x128xf32>
    %151 = tpu.matmul %149, %150, %cst_102 {dimension_numbers = #tpu.dot_dimension_numbers<[1], [0], [0], [1], [0, 0, 1, 1], [], []>} : vector<8x8xf32>, vector<8x128xf32>, vector<8x128xf32> -> vector<8x128xf32>
    %152 = arith.addf %147, %151 : vector<8x128xf32>
    %c0_103 = arith.constant 0 : index
    %c0_104 = arith.constant 0 : index
    %153 = vector.load %arg7[%c0_103, %c0_104] : memref<8x1xf32, #tpu.memory_space<vmem>>, vector<8x1xf32>
    %154 = vector.broadcast %153 : vector<8x1xf32> to vector<8x128xf32>
    %155 = arith.addf %152, %154 : vector<8x128xf32>
    %c0_105 = arith.constant 0 : index
    %c0_106 = arith.constant 0 : index
    %c0_107 = arith.constant 0 : index
    %156 = vector.load %arg8[%c0_105, %c0_106, %c0_107] : memref<1x8x128xf32, #tpu.memory_space<vmem>>, vector<1x8x128xf32>
    %157 = vector.shape_cast %156 : vector<1x8x128xf32> to vector<8x128xf32>
    %158 = vector.shape_cast %155 : vector<8x128xf32> to vector<1x8x128xf32>
    tpu.vector_store %arg8[%c0_105, %c0_106, %c0_107], %158 {strides = array<i32>} : memref<1x8x128xf32, #tpu.memory_space<vmem>>, vector<1x8x128xf32>,
    return
  }
  func.func @transform_0(%arg0: i32, %arg1: i32) -> (i32, i32, i32) {
    %c1_i32 = arith.constant 1 : i32
    %0 = arith.muli %arg1, %c1_i32 : i32
    %c1_i32_0 = arith.constant 1 : i32
    %1 = arith.subi %0, %c1_i32_0 : i32
    %c0_i32 = arith.constant 0 : i32
    %2 = arith.maxsi %1, %c0_i32 : i32
    %c0_i32_1 = arith.constant 0 : i32
    %c0_i32_2 = arith.constant 0 : i32
    return %arg0, %c0_i32_1, %2 : i32, i32, i32
  }
  func.func @transform_1(%arg0: i32, %arg1: i32) -> (i32, i32, i32) {
    %c0_i32 = arith.constant 0 : i32
    %c0_i32_0 = arith.constant 0 : i32
    return %arg0, %c0_i32, %arg1 : i32, i32, i32
  }
  func.func @transform_2(%arg0: i32, %arg1: i32) -> (i32, i32, i32) {
    %c1_i32 = arith.constant 1 : i32
    %0 = arith.muli %arg1, %c1_i32 : i32
    %c1_i32_0 = arith.constant 1 : i32
    %1 = arith.addi %0, %c1_i32_0 : i32
    %c2_i32 = arith.constant 2 : i32
    %2 = arith.minsi %1, %c2_i32 : i32
    %c0_i32 = arith.constant 0 : i32
    %c0_i32_1 = arith.constant 0 : i32
    return %arg0, %c0_i32, %2 : i32, i32, i32
  }
  func.func @transform_3(%arg0: i32, %arg1: i32) -> (i32, i32) {
    %c0_i32 = arith.constant 0 : i32
    %c0_i32_0 = arith.constant 0 : i32
    %c0_i32_1 = arith.constant 0 : i32
    return %c0_i32, %c0_i32_0 : i32, i32
  }
  func.func @transform_4(%arg0: i32, %arg1: i32) -> (i32, i32, i32) {
    %c0_i32 = arith.constant 0 : i32
    %c0_i32_0 = arith.constant 0 : i32
    %c0_i32_1 = arith.constant 0 : i32
    %c0_i32_2 = arith.constant 0 : i32
    return %c0_i32, %c0_i32_0, %c0_i32_1 : i32, i32, i32
  }
  func.func @transform_5(%arg0: i32, %arg1: i32) -> (i32, i32) {
    %c0_i32 = arith.constant 0 : i32
    %c0_i32_0 = arith.constant 0 : i32
    %c0_i32_1 = arith.constant 0 : i32
    return %c0_i32, %c0_i32_0 : i32, i32
  }
  func.func @transform_6(%arg0: i32, %arg1: i32) -> (i32, i32, i32) {
    %c0_i32 = arith.constant 0 : i32
    %c0_i32_0 = arith.constant 0 : i32
    return %arg0, %c0_i32, %arg1 : i32, i32, i32
  }
}

</mosaic_0001>

<llo_original>
// kernel: amp_layer_forward.2
$region0: #{amp_layer_forward.2}
  #allocation0 [shape = 'u32[]', space=smem, size = 0x4, offset = 0x4, fixed_abs, tag = 'smem constant byte address 0x4 - core index']
  #allocation1 [shape = 'u32[72,128]{1,0:T(1,128)}', space=vmem, size = 0x9000, scoped, tag = 'internal scratch']
  #allocation2 [shape = 'f32[8,146]{1,0:T(8,128)}', space=vmem, size = 0x2000, scoped, tag = 'scratch operand']
  #allocation3 [shape = 'f32[8,140]{1,0:T(8,128)}', space=vmem, size = 0x2000, scoped, tag = 'scratch operand']
  #allocation4 [shape = 'f32[8,140]{1,0:T(8,128)}', space=vmem, size = 0x2000, scoped, tag = 'scratch operand']
  #allocation5 [shape = 'f32[8,134]{1,0:T(8,128)}', space=vmem, size = 0x2000, scoped, tag = 'scratch operand']
  %s0 = inlined_call_operand.vmem [shape: f32[2,8,384], index: 0, kind: input, shape index: {}, may-alias: {0,1,2}]
  %s1 = inlined_call_operand.vmem [shape: f32[2,8,384], index: 1, kind: input, shape index: {}, may-alias: {0,1,2}]
  %s2 = inlined_call_operand.vmem [shape: f32[2,8,384], index: 2, kind: input, shape index: {}, may-alias: {0,1,2}]
  %s3 = inlined_call_operand.vmem [shape: f32[8,2], index: 3, kind: input, shape index: {}]
  %s4 = inlined_call_operand.vmem [shape: f32[3,8,8], index: 4, kind: input, shape index: {}]
  %s5 = inlined_call_operand.vmem [shape: f32[8,1], index: 5, kind: input, shape index: {}]
  %s6 = inlined_call_operand.vmem [shape: f32[2,8,384], index: 6, kind: output, shape index: {}]
  %s7 = sld [smem:[#allocation0]]
  $region81: #{amp_layer_forward.2} parent=0
    _
  %s9 = ssub.s32 1, %s7
  %s10 = scalar_select 0, %s9, %s7
  loop: start=0, step=1, limit=8
  $region2: #{amp_layer_forward.2} parent=0 // loop_pre_header
    _
  $region3: #{amp_layer_forward.2} parent=0 // loop_header
    %s12 = sphi 0, %s16
    %p13 = scmp.ge.s32.totalorder %s12, 8
    %s19 = sphi 0, %s31
    %s20 = sphi 0, %s27
    %s21 = sphi 0, %s19
    %s22 = sphi 0, %s20
    %s23 = sphi 0, %s21
    %s24 = sphi 0, %s22
    %s42 = sphi 0, %s44
    %s45 = sphi 0, %s42
    %s46 = sphi 0, %s45
    %s62 = sphi 0, %s46
    %s70 = sphi 0, %s72
    %s73 = sphi 0, %s70
    %s74 = sphi 0, %s73
    %s90 = sphi 0, %s74
    %s104 = sphi 0, %s106
    %s107 = sphi 0, %s104
    %s108 = sphi 0, %s107
    %s124 = sphi 0, %s108
    %s128 = sphi 0, %s128
    %s130 = sphi 0, %s128
    %s131 = sphi 0, %s130
    %s145 = sphi 0, %s131
    %s149 = sphi 0, %s149
    %s151 = sphi 0, %s149
    %s152 = sphi 0, %s151
    %s166 = sphi 0, %s152
    %s170 = sphi 0, %s170
    %s172 = sphi 0, %s170
    %s173 = sphi 0, %s172
    %s187 = sphi 0, %s173
    %s195 = sphi 0, %s197
    %s198 = sphi 0, %s195
    %s199 = sphi 0, %s198
    %s215 = sphi 0, %s199
  $region4: #{amp_layer_forward.2} parent=0 // loop_header_branch
    %15 = sbr.rel (%p13) target = $region8
  $region5: #{amp_layer_forward.2} parent=0 // loop_body
    %s17 = ssub.s32 %s12, 1
    %s18 = ssub.s32 %s12, 2
    %s25 = sadd.s32 1, %s20
    %p26 = scmp.ge.s32.totalorder %s25, 3
    %s27 = scalar_select %p26, 0, %s25
    %s28 = sadd.s32 1, %s19
    %s29 = scalar_select %p26, %s28, %s19
    %p30 = scmp.ge.s32.totalorder %s29, 2
    %s31 = scalar_select %p30, 0, %s29
    %s32 = ssub.s32 %s20, 1
    %p33 = scmp.gt.s32.totalorder %s32, 0
    %s34 = scalar_select %p33, %s32, 0
    %s35 = ssub.s32 %s27, 1
    %p36 = scmp.gt.s32.totalorder %s35, 0
    %s37 = scalar_select %p36, %s35, 0
    %s38 = ssub.s32 %s19, %s31
    %s39 = ssub.s32 %s34, %s37
    %s40 = sor.u32 %s38, %s39
    %p41 = scmp.eq.s32.totalorder %s40, 0
    %s43 = sadd.s32 %s42, 1
    %s44 = scalar_select %p41, %s42, %s43
    %p47 = pneg %p41
    %p48 = scmp.eq.s32.totalorder %s12, 5
    %p49 = por %p47, %p48
    %p50 = scmp.ne.s32.totalorder %s42, %s45
    %p51 = scmp.eq.s32.totalorder %s12, 0
    %p52 = por %p50, %p51
    %p53 = scmp.ne.s32.totalorder %s42, %s45
    %p54 = scmp.eq.s32.totalorder %s17, 5
    %p55 = por %p53, %p54
    %p56 = scmp.ne.s32.totalorder %s45, %s46
    %p57 = scmp.eq.s32.totalorder %s17, 0
    %p58 = por %p56, %p57
    %p59 = scmp.ne.s32.totalorder %s45, %s46
    %p60 = scmp.eq.s32.totalorder %s18, 5
    %p61 = por %p59, %p60
    %p63 = scmp.ne.s32.totalorder %s46, %s62
    %p64 = scmp.eq.s32.totalorder %s18, 0
    %p65 = por %p63, %p64
    %s66 = ssub.s32 %s19, %s31
    %s67 = ssub.s32 %s20, %s27
    %s68 = sor.u32 %s66, %s67
    %p69 = scmp.eq.s32.totalorder %s68, 0
    %s71 = sadd.s32 %s70, 1
    %s72 = scalar_select %p69, %s70, %s71
    %p75 = pneg %p69
    %p76 = scmp.eq.s32.totalorder %s12, 5
    %p77 = por %p75, %p76
    %p78 = scmp.ne.s32.totalorder %s70, %s73
    %p79 = scmp.eq.s32.totalorder %s12, 0
    %p80 = por %p78, %p79
    %p81 = scmp.ne.s32.totalorder %s70, %s73
    %p82 = scmp.eq.s32.totalorder %s17, 5
    %p83 = por %p81, %p82
    %p84 = scmp.ne.s32.totalorder %s73, %s74
    %p85 = scmp.eq.s32.totalorder %s17, 0
    %p86 = por %p84, %p85
    %p87 = scmp.ne.s32.totalorder %s73, %s74
    %p88 = scmp.eq.s32.totalorder %s18, 5
    %p89 = por %p87, %p88
    %p91 = scmp.ne.s32.totalorder %s74, %s90
    %p92 = scmp.eq.s32.totalorder %s18, 0
    %p93 = por %p91, %p92
    %s94 = sadd.s32 %s20, 1
    %p95 = scmp.lt.s32.totalorder %s94, 2
    %s96 = scalar_select %p95, %s94, 2
    %s97 = sadd.s32 %s27, 1
    %p98 = scmp.lt.s32.totalorder %s97, 2
    %s99 = scalar_select %p98, %s97, 2
    %s100 = ssub.s32 %s19, %s31
    %s101 = ssub.s32 %s96, %s99
    %s102 = sor.u32 %s100, %s101
    %p103 = scmp.eq.s32.totalorder %s102, 0
    %s105 = sadd.s32 %s104, 1
    %s106 = scalar_select %p103, %s104, %s105
    %p109 = pneg %p103
    %p110 = scmp.eq.s32.totalorder %s12, 5
    %p111 = por %p109, %p110
    %p112 = scmp.ne.s32.totalorder %s104, %s107
    %p113 = scmp.eq.s32.totalorder %s12, 0
    %p114 = por %p112, %p113
    %p115 = scmp.ne.s32.totalorder %s104, %s107
    %p116 = scmp.eq.s32.totalorder %s17, 5
    %p117 = por %p115, %p116
    %p118 = scmp.ne.s32.totalorder %s107, %s108
    %p119 = scmp.eq.s32.totalorder %s17, 0
    %p120 = por %p118, %p119
    %p121 = scmp.ne.s32.totalorder %s107, %s108
    %p122 = scmp.eq.s32.totalorder %s18, 5
    %p123 = por %p121, %p122
    %p125 = scmp.ne.s32.totalorder %s108, %s124
    %p126 = scmp.eq.s32.totalorder %s18, 0
    %p127 = por %p125, %p126
    %s129 = sadd.s32 %s128, 1
    %p132 = scmp.eq.s32.totalorder %s12, 5
    %p133 = scmp.ne.s32.totalorder %s128, %s130
    %p134 = scmp.eq.s32.totalorder %s12, 0
    %p135 = por %p133, %p134
    %p136 = scmp.ne.s32.totalorder %s128, %s130
    %p137 = scmp.eq.s32.totalorder %s17, 5
    %p138 = por %p136, %p137
    %p139 = scmp.ne.s32.totalorder %s130, %s131
    %p140 = scmp.eq.s32.totalorder %s17, 0
    %p141 = por %p139, %p140
    %p142 = scmp.ne.s32.totalorder %s130, %s131
    %p143 = scmp.eq.s32.totalorder %s18, 5
    %p144 = por %p142, %p143
    %p146 = scmp.ne.s32.totalorder %s131, %s145
    %p147 = scmp.eq.s32.totalorder %s18, 0
    %p148 = por %p146, %p147
    %s150 = sadd.s32 %s149, 1
    %p153 = scmp.eq.s32.totalorder %s12, 5
    %p154 = scmp.ne.s32.totalorder %s149, %s151
    %p155 = scmp.eq.s32.totalorder %s12, 0
    %p156 = por %p154, %p155
    %p157 = scmp.ne.s32.totalorder %s149, %s151
    %p158 = scmp.eq.s32.totalorder %s17, 5
    %p159 = por %p157, %p158
    %p160 = scmp.ne.s32.totalorder %s151, %s152
    %p161 = scmp.eq.s32.totalorder %s17, 0
    %p162 = por %p160, %p161
    %p163 = scmp.ne.s32.totalorder %s151, %s152
    %p164 = scmp.eq.s32.totalorder %s18, 5
    %p165 = por %p163, %p164
    %p167 = scmp.ne.s32.totalorder %s152, %s166
    %p168 = scmp.eq.s32.totalorder %s18, 0
    %p169 = por %p167, %p168
    %s171 = sadd.s32 %s170, 1
    %p174 = scmp.eq.s32.totalorder %s12, 5
    %p175 = scmp.ne.s32.totalorder %s170, %s172
    %p176 = scmp.eq.s32.totalorder %s12, 0
    %p177 = por %p175, %p176
    %p178 = scmp.ne.s32.totalorder %s170, %s172
    %p179 = scmp.eq.s32.totalorder %s17, 5
    %p180 = por %p178, %p179
    %p181 = scmp.ne.s32.totalorder %s172, %s173
    %p182 = scmp.eq.s32.totalorder %s17, 0
    %p183 = por %p181, %p182
    %p184 = scmp.ne.s32.totalorder %s172, %s173
    %p185 = scmp.eq.s32.totalorder %s18, 5
    %p186 = por %p184, %p185
    %p188 = scmp.ne.s32.totalorder %s173, %s187
    %p189 = scmp.eq.s32.totalorder %s18, 0
    %p190 = por %p188, %p189
    %s191 = ssub.s32 %s19, %s31
    %s192 = ssub.s32 %s20, %s27
    %s193 = sor.u32 %s191, %s192
    %p194 = scmp.eq.s32.totalorder %s193, 0
    %s196 = sadd.s32 %s195, 1
    %s197 = scalar_select %p194, %s195, %s196
    %p200 = pneg %p194
    %p201 = scmp.eq.s32.totalorder %s12, 5
    %p202 = por %p200, %p201
    %p203 = scmp.ne.s32.totalorder %s195, %s198
    %p204 = scmp.eq.s32.totalorder %s12, 0
    %p205 = por %p203, %p204
    %p206 = scmp.ne.s32.totalorder %s195, %s198
    %p207 = scmp.eq.s32.totalorder %s17, 5
    %p208 = por %p206, %p207
    %p209 = scmp.ne.s32.totalorder %s198, %s199
    %p210 = scmp.eq.s32.totalorder %s17, 0
    %p211 = por %p209, %p210
    %p212 = scmp.ne.s32.totalorder %s198, %s199
    %p213 = scmp.eq.s32.totalorder %s18, 5
    %p214 = por %p212, %p213
    %p216 = scmp.ne.s32.totalorder %s199, %s215
    %p217 = scmp.eq.s32.totalorder %s18, 0
    %p218 = por %p216, %p217
    %p219 = scmp.le.s32.totalorder 1, %s12
    %p220 = scmp.lt.s32.totalorder %s12, 7
    %p221 = pnand %p219, %p220
    %p222 = pneg %p221
    // Predicated region
    $region9: #{amp_layer_forward.2} parent=5 // pred_check
      _
    $region10: #{amp_layer_forward.2} parent=5 // pred_check_branch
      %224 = sbr.rel (%p221) target = $region12
    $region11: #{amp_layer_forward.2} parent=5 // pred_region
      %s225 = ssub.s32 %s12, 1
      // Predicated region
      $region13: #{amp_layer_forward.2} parent=11 // pred_check
        %p226 = pneg %p141
      $region14: #{amp_layer_forward.2} parent=11 // pred_check_branch
        %228 = sbr.rel (%p226) target = $region16
      $region15: #{amp_layer_forward.2} parent=11 // pred_region
        _
      $region16: #{amp_layer_forward.2} parent=11 // pred_fallthru
        _
      // Predicated region
      $region17: #{amp_layer_forward.2} parent=11 // pred_check
        %p229 = pneg %p162
      $region18: #{amp_layer_forward.2} parent=11 // pred_check_branch
        %231 = sbr.rel (%p229) target = $region20
      $region19: #{amp_layer_forward.2} parent=11 // pred_region
        _
      $region20: #{amp_layer_forward.2} parent=11 // pred_fallthru
        _
      // Predicated region
      $region21: #{amp_layer_forward.2} parent=11 // pred_check
        %p232 = pneg %p183
      $region22: #{amp_layer_forward.2} parent=11 // pred_check_branch
        %234 = sbr.rel (%p232) target = $region24
      $region23: #{amp_layer_forward.2} parent=11 // pred_region
        _
      $region24: #{amp_layer_forward.2} parent=11 // pred_fallthru
        _
    $region12: #{amp_layer_forward.2} parent=5 // pred_fallthru
      _
    %p235 = scmp.lt.s32.totalorder %s12, 6
    // Predicated region
    $region25: #{amp_layer_forward.2} parent=5 // pred_check
      %p236 = pneg %p235
    $region26: #{amp_layer_forward.2} parent=5 // pred_check_branch
      %238 = sbr.rel (%p236) target = $region28
    $region27: #{amp_layer_forward.2} parent=5 // pred_region
      // Predicated region
      $region29: #{amp_layer_forward.2} parent=27 // pred_check
        %p239 = pneg %p52
      $region30: #{amp_layer_forward.2} parent=27 // pred_check_branch
        %241 = sbr.rel (%p239) target = $region32
      $region31: #{amp_layer_forward.2} parent=27 // pred_region
        %s242 = ssub.s32 %s20, 1
        %p243 = scmp.gt.s32.totalorder %s242, 0
        %s244 = scalar_select %p243, %s242, 0
        %p245 = scmp.lt.s32.totalorder %s19, 1
        %s246 = scalar_select %p245, %s19, 1
        %p247 = scmp.lt.s32.totalorder %s244, 2
        %s248 = scalar_select %p247, %s244, 2
        %s249 = smul.addr %s246, 3
        %s250 = sadd.s32 %s248, %s249
        %s251 = smul.addr %s250, 8
        %s252 = scalar_lea.vmem %s0, %s251
        %s253 = ssub.s32 %s20, 1
        %p254 = scmp.gt.s32.totalorder %s253, 0
        %s255 = scalar_select %p254, %s253, 0
      $region32: #{amp_layer_forward.2} parent=27 // pred_fallthru
        _
      // Predicated region
      $region33: #{amp_layer_forward.2} parent=27 // pred_check
        %p256 = pneg %p80
      $region34: #{amp_layer_forward.2} parent=27 // pred_check_branch
        %258 = sbr.rel (%p256) target = $region36
      $region35: #{amp_layer_forward.2} parent=27 // pred_region
        %p259 = scmp.lt.s32.totalorder %s19, 1
        %s260 = scalar_select %p259, %s19, 1
        %p261 = scmp.lt.s32.totalorder %s20, 2
        %s262 = scalar_select %p261, %s20, 2
        %s263 = smul.addr %s260, 3
        %s264 = sadd.s32 %s262, %s263
        %s265 = smul.addr %s264, 8
        %s266 = scalar_lea.vmem %s1, %s265
      $region36: #{amp_layer_forward.2} parent=27 // pred_fallthru
        _
      // Predicated region
      $region37: #{amp_layer_forward.2} parent=27 // pred_check
        %p267 = pneg %p114
      $region38: #{amp_layer_forward.2} parent=27 // pred_check_branch
        %269 = sbr.rel (%p267) target = $region40
      $region39: #{amp_layer_forward.2} parent=27 // pred_region
        %s270 = sadd.s32 %s20, 1
        %p271 = scmp.lt.s32.totalorder %s270, 2
        %s272 = scalar_select %p271, %s270, 2
        %p273 = scmp.lt.s32.totalorder %s19, 1
        %s274 = scalar_select %p273, %s19, 1
        %p275 = scmp.lt.s32.totalorder %s272, 2
        %s276 = scalar_select %p275, %s272, 2
        %s277 = smul.addr %s274, 3
        %s278 = sadd.s32 %s276, %s277
        %s279 = smul.addr %s278, 8
        %s280 = scalar_lea.vmem %s2, %s279
        %s281 = sadd.s32 %s20, 1
        %p282 = scmp.lt.s32.totalorder %s281, 2
        %s283 = scalar_select %p282, %s281, 2
      $region40: #{amp_layer_forward.2} parent=27 // pred_fallthru
        _
    $region28: #{amp_layer_forward.2} parent=5 // pred_fallthru
      _
    %p284 = scmp.le.s32.totalorder 1, %s12
    %p285 = scmp.lt.s32.totalorder %s12, 7
    %p286 = pnand %p284, %p285
    %p287 = pneg %p286
    // Predicated region
    $region41: #{amp_layer_forward.2} parent=5 // pred_check
      _
    $region42: #{amp_layer_forward.2} parent=5 // pred_check_branch
      %289 = sbr.rel (%p286) target = $region44
    $region43: #{amp_layer_forward.2} parent=5 // pred_region
      %s290 = ssub.s32 %s12, 1
      %s291 = ssub.s32 %s22, 1
      %p292 = scmp.gt.s32.totalorder %s291, 0
      %s293 = scalar_select %p292, %s291, 0
      %p294 = scmp.lt.s32.totalorder %s21, 1
      %s295 = scalar_select %p294, %s21, 1
      %p296 = scmp.lt.s32.totalorder %s293, 2
      %s297 = scalar_select %p296, %s293, 2
      %s298 = smul.addr %s295, 3
      %s299 = sadd.s32 %s297, %s298
      %s300 = smul.addr %s299, 8
      %s301 = scalar_lea.vmem %s0, %s300
      %p302 = pneg %p58
      %p303 = pneg %p55
      %p304 = scmp.lt.s32.totalorder %s21, 1
      %s305 = scalar_select %p304, %s21, 1
      %p306 = scmp.lt.s32.totalorder %s22, 2
      %s307 = scalar_select %p306, %s22, 2
      %s308 = smul.addr %s305, 3
      %s309 = sadd.s32 %s307, %s308
      %s310 = smul.addr %s309, 8
      %s311 = scalar_lea.vmem %s1, %s310
      %p312 = pneg %p86
      %p313 = pneg %p83
      %s314 = sadd.s32 %s22, 1
      %p315 = scmp.lt.s32.totalorder %s314, 2
      %s316 = scalar_select %p315, %s314, 2
      %p317 = scmp.lt.s32.totalorder %s21, 1
      %s318 = scalar_select %p317, %s21, 1
      %p319 = scmp.lt.s32.totalorder %s316, 2
      %s320 = scalar_select %p319, %s316, 2
      %s321 = smul.addr %s318, 3
      %s322 = sadd.s32 %s320, %s321
      %s323 = smul.addr %s322, 8
      %s324 = scalar_lea.vmem %s2, %s323
      %p325 = pneg %p120
      %p326 = pneg %p117
      %p327 = pneg %p141
      %p328 = pneg %p138
      %p329 = pneg %p162
      %p330 = pneg %p159
      %p331 = pneg %p183
      %p332 = pneg %p180
      %p333 = pneg %p211
      %p334 = pneg %p208
      %p335 = scmp.lt.s32.totalorder %s21, 1
      %s336 = scalar_select %p335, %s21, 1
      %p337 = scmp.lt.s32.totalorder %s22, 2
      %s338 = scalar_select %p337, %s22, 2
      %s339 = smul.addr %s336, 3
      %s340 = sadd.s32 %s338, %s339
      %s341 = smul.addr %s340, 8
      %s342 = scalar_lea.vmem %s6, %s341
      %s343 = ssub.s32 %s22, 1
      %p344 = scmp.gt.s32.totalorder %s343, 0
      %s345 = scalar_select %p344, %s343, 0
      %p346 = scmp.lt.s32.totalorder %s21, 1
      %s347 = scalar_select %p346, %s21, 1
      %p348 = scmp.lt.s32.totalorder %s345, 2
      %s349 = scalar_select %p348, %s345, 2
      %s350 = smul.addr %s347, 3
      %s351 = sadd.s32 %s349, %s350
      %s352 = smul.addr %s351, 8
      %s353 = scalar_lea.vmem %s0, %s352
      %s354 = ssub.s32 %s22, 1
      %p355 = scmp.gt.s32.totalorder %s354, 0
      %s356 = scalar_select %p355, %s354, 0
      %p357 = scmp.lt.s32.totalorder %s21, 1
      %s358 = scalar_select %p357, %s21, 1
      %p359 = scmp.lt.s32.totalorder %s22, 2
      %s360 = scalar_select %p359, %s22, 2
      %s361 = smul.addr %s358, 3
      %s362 = sadd.s32 %s360, %s361
      %s363 = smul.addr %s362, 8
      %s364 = scalar_lea.vmem %s1, %s363
      %s365 = sadd.s32 %s22, 1
      %p366 = scmp.lt.s32.totalorder %s365, 2
      %s367 = scalar_select %p366, %s365, 2
      %p368 = scmp.lt.s32.totalorder %s21, 1
      %s369 = scalar_select %p368, %s21, 1
      %p370 = scmp.lt.s32.totalorder %s367, 2
      %s371 = scalar_select %p370, %s367, 2
      %s372 = smul.addr %s369, 3
      %s373 = sadd.s32 %s371, %s372
      %s374 = smul.addr %s373, 8
      %s375 = scalar_lea.vmem %s2, %s374
      %s376 = sadd.s32 %s22, 1
      %p377 = scmp.lt.s32.totalorder %s376, 2
      %s378 = scalar_select %p377, %s376, 2
      %p379 = scmp.lt.s32.totalorder %s21, 1
      %s380 = scalar_select %p379, %s21, 1
      %p381 = scmp.lt.s32.totalorder %s22, 2
      %s382 = scalar_select %p381, %s22, 2
      %s383 = smul.addr %s380, 3
      %s384 = sadd.s32 %s382, %s383
      %s385 = smul.addr %s384, 8
      %s386 = scalar_lea.vmem %s6, %s385
      %s387 = smul.u32 %s22, 128
      %s388 = sadd.s32 %s387, 136
      %p389 = scmp.ge.s32.totalorder %s388, 300
      %v390 = vld [vmem:[%s353] sm:$0xff]
      %v391 = vld [vmem:[%s364] sm:$0xff]
      %v392 = vld [vmem:[%s375] sm:$0xff]
      %394 = vrot.lane.b32.xlu0 %v390, 9
      %v395 = vpop.permute.xlu0 %394
      %398 = vrot.lane.b32.xlu0 %v391, 9
      %v399 = vpop.permute.xlu0 %398
      %402 = vrot.lane.b32.xlu0 %v392, 9
      %v403 = vpop.permute.xlu0 %402
      %vm405 = vcmask 72704
      %v406 = vsel %vm405, %v395, %v399
      %v407 = vsel %vm405, %v399, %v403
      %408 = vst [vmem:[#allocation2] sm:$0xff] %v406
      %vm409 = vcmask 146432
      %410 = vst.msk [vmem:[#allocation2 + $0x8] sm:$0xff] %vm409, %v407
      %p411 = scmp.eq.s32.totalorder %s22, 0
      // Predicated region
      $region45: #{amp_layer_forward.2} parent=43 // pred_check
        %p412 = pneg %p411
      $region46: #{amp_layer_forward.2} parent=43 // pred_check_branch
        %414 = sbr.rel (%p412) target = $region48
      $region47: #{amp_layer_forward.2} parent=43 // pred_region
        %v415 = vld [vmem:[#allocation2] sm:$0xff]
        %417 = vset.pattern.permute.xlu0 9
        %418 = vperm.xlu0 %417, %v415
        %v419 = vpop.permute.xlu0 %418
        %421 = vst.msk [vmem:[#allocation2] sm:$0xff] %vm405, %v419
      $region48: #{amp_layer_forward.2} parent=43 // pred_fallthru
        _
      // Predicated region
      $region49: #{amp_layer_forward.2} parent=43 // pred_check
        %p422 = pneg %p389
      $region50: #{amp_layer_forward.2} parent=43 // pred_check_branch
        %424 = sbr.rel (%p422) target = $region52
      $region51: #{amp_layer_forward.2} parent=43 // pred_region
        %s425 = ssub.s32 %s387, 9
        %v426 = vlaneseq
        %v427 = vand.u32 %v426, 127
        %v428 = vadd.s32 %v427, 128
        %v429 = vstv %s425
        %v430 = vadd.s32 %v429, %v427
        %v431 = vadd.s32 %v429, %v428
        %v432 = vld [vmem:[#allocation2] sm:$0xff]
        %v433 = vld [vmem:[#allocation2 + $0x8] sm:$0xff]
        %vm434 = vcmp.eq.s32.totalorder %v430, 299
        %vm435 = vcmp.eq.s32.totalorder %v431, 299
        %v436 = vsel %vm434, 1, 0
        %v437 = vsel %vm435, 1, 0
        %vm438 = vcmp.eq.s32.totalorder %v436, 1
        %vm439 = vcmp.eq.s32.totalorder %v437, 1
        %v440 = vsel %vm438, %v432, 0.0
        %v441 = vsel %vm439, %v433, 0.0
        %v442 = vsel %vm409, %v441, 0.0
        %v443 = vadd.f32 %v440, %v442
        %444 = vadd.xlane.f32.xlu0 %v443
        %v445 = vpop.xlane.xlu0 %444
        %vm446 = vcmp.gt.s32.totalorder %v430, 299
        %vm447 = vcmp.gt.s32.totalorder %v431, 299
        %v448 = vsel %vm446, 1, 0
        %v449 = vsel %vm447, 1, 0
        %vm450 = vcmp.eq.s32.totalorder %v448, 1
        %vm451 = vcmp.eq.s32.totalorder %v449, 1
        %v452 = vsel %vm450, %v445, %v432
        %v453 = vsel %vm451, %v445, %v433
        %454 = vst [vmem:[#allocation2] sm:$0xff] %v452
        %455 = vst.msk [vmem:[#allocation2 + $0x8] sm:$0xff] %vm409, %v453
      $region52: #{amp_layer_forward.2} parent=43 // pred_fallthru
        _
      %v456 = vld [vmem:[#allocation2] sm:$0xff]
      %v457 = vld [vmem:[#allocation2 + $0x8] sm:$0xff]
      %v458 = vmul.f32 %v456, 0.004057933
      %v459 = vmul.f32 %v457, 0.004057933
      %v460 = vmul.f32 %v456, 0.018778928
      %v461 = vmul.f32 %v457, 0.018778928
      %v462 = vmul.f32 %v456, -0.05108693
      %v463 = vmul.f32 %v457, -0.05108693
      %466 = vrot.lane.b32.xlu0 %v462, 127
      %v467 = vpop.permute.xlu0 %466
      %468 = vrot.lane.b32.xlu0 %v463, 127
      %v469 = vpop.permute.xlu0 %468
      %vm470 = vcmask 1039360
      %v471 = vsel %vm470, %v467, %v469
      %v474 = vadd.f32 %v458, %v471
      %v475 = vadd.f32 %v459, %v469
      %v476 = vmul.f32 %v456, -0.11531475
      %v477 = vmul.f32 %v457, -0.11531475
      %480 = vrot.lane.b32.xlu0 %v476, 127
      %v481 = vpop.permute.xlu0 %480
      %482 = vrot.lane.b32.xlu0 %v477, 127
      %v483 = vpop.permute.xlu0 %482
      %v484 = vsel %vm470, %v481, %v483
      %v487 = vadd.f32 %v460, %v484
      %v488 = vadd.f32 %v461, %v483
      %v489 = vmul.f32 %v456, 0.25714523
      %v490 = vmul.f32 %v457, 0.25714523
      %493 = vrot.lane.b32.xlu0 %v489, 126
      %v494 = vpop.permute.xlu0 %493
      %495 = vrot.lane.b32.xlu0 %v490, 126
      %v496 = vpop.permute.xlu0 %495
      %vm497 = vcmask 1031168
      %v498 = vsel %vm497, %v494, %v496
      %v501 = vadd.f32 %v474, %v498
      %v502 = vadd.f32 %v475, %v496
      %v503 = vmul.f32 %v456, 0.8864196
      %v504 = vmul.f32 %v457, 0.8864196
      %507 = vrot.lane.b32.xlu0 %v503, 126
      %v508 = vpop.permute.xlu0 %507
      %509 = vrot.lane.b32.xlu0 %v504, 126
      %v510 = vpop.permute.xlu0 %509
      %v511 = vsel %vm497, %v508, %v510
      %v514 = vadd.f32 %v487, %v511
      %v515 = vadd.f32 %v488, %v510
      %516 = vrot.lane.b32.xlu0 %v503, 125
      %v517 = vpop.permute.xlu0 %516
      %518 = vrot.lane.b32.xlu0 %v504, 125
      %v519 = vpop.permute.xlu0 %518
      %vm520 = vcmask 1022976
      %v521 = vsel %vm520, %v517, %v519
      %v524 = vadd.f32 %v501, %v521
      %v525 = vadd.f32 %v502, %v519
      %526 = vrot.lane.b32.xlu0 %v489, 125
      %v527 = vpop.permute.xlu0 %526
      %528 = vrot.lane.b32.xlu0 %v490, 125
      %v529 = vpop.permute.xlu0 %528
      %v530 = vsel %vm520, %v527, %v529
      %v533 = vadd.f32 %v514, %v530
      %v534 = vadd.f32 %v515, %v529
      %535 = vrot.lane.b32.xlu0 %v476, 124
      %v536 = vpop.permute.xlu0 %535
      %537 = vrot.lane.b32.xlu0 %v477, 124
      %v538 = vpop.permute.xlu0 %537
      %vm539 = vcmask 1014784
      %v540 = vsel %vm539, %v536, %v538
      %v543 = vadd.f32 %v524, %v540
      %v544 = vadd.f32 %v525, %v538
      %545 = vrot.lane.b32.xlu0 %v462, 124
      %v546 = vpop.permute.xlu0 %545
      %547 = vrot.lane.b32.xlu0 %v463, 124
      %v548 = vpop.permute.xlu0 %547
      %v549 = vsel %vm539, %v546, %v548
      %v552 = vadd.f32 %v533, %v549
      %v553 = vadd.f32 %v534, %v548
      %556 = vrot.lane.b32.xlu0 %v460, 123
      %v557 = vpop.permute.xlu0 %556
      %558 = vrot.lane.b32.xlu0 %v461, 123
      %v559 = vpop.permute.xlu0 %558
      %vm560 = vcmask 1006592
      %v561 = vsel %vm560, %v557, %v559
      %v564 = vadd.f32 %v543, %v561
      %v565 = vadd.f32 %v544, %v559
      %568 = vrot.lane.b32.xlu0 %v458, 123
      %v569 = vpop.permute.xlu0 %568
      %570 = vrot.lane.b32.xlu0 %v459, 123
      %v571 = vpop.permute.xlu0 %570
      %v572 = vsel %vm560, %v569, %v571
      %v575 = vadd.f32 %v552, %v572
      %v576 = vadd.f32 %v553, %v571
      %v577 = vld [vmem:[%s3] sm:$0xff]
      %579 = vset.pattern.permute.xlu0 0
      %580 = vperm.xlu0 %579, %v577
      %v581 = vpop.permute.xlu0 %580
      %v583 = vmul.f32 %v581, %v564
      %v584 = vmul.f32 %v581, %v565
      %v585 = vand.u32 2147483647, %v583
      %vm586 = vcmp.le.f32.partialorder %v585, 0.7853982
      %vm587 = vcmp.lt.s32.totalorder %v583, 0
      %v588 = vand.u32 %v583, 2139095040
      %v589 = vshrl.u32 %v588, 23
      %v590 = vsub.s32 %v589, 127
      %v591 = vand.u32 2147483647, %v583
      %v592 = vand.u32 %v591, 8388607
      %v593 = vor.u32 %v592, 8388608
      %v594 = vsub.s32 0, %v593
      %v595 = vadd.s32 %v590, 1
      %vm596 = vcmp.gt.s32.totalorder %v595, 0
      %v597 = vsel %vm596, %v595, 0
      %v598 = vshrl.u32 %v597, 5
      %v599 = vand.u32 %v597, 31
      %v600 = vsub.s32 32, %v599
      %v601 = vshrl.u32 683565275, %v600
      %v602 = vshll.u32 683565275, %v599
      %v603 = vshrl.u32 2475754826, %v600
      %v604 = vor.u32 %v602, %v603
      %v605 = vshll.u32 2475754826, %v599
      %v606 = vshrl.u32 2131351028, %v600
      %v607 = vor.u32 %v605, %v606
      %v608 = vshll.u32 2131351028, %v599
      %v609 = vshrl.u32 2102212464, %v600
      %v610 = vor.u32 %v608, %v609
      %v611 = vshll.u32 2102212464, %v599
      %v612 = vshrl.u32 920167782, %v600
      %v613 = vor.u32 %v611, %v612
      %v614 = vshll.u32 920167782, %v599
      %v615 = vshrl.u32 1326507024, %v600
      %v616 = vor.u32 %v614, %v615
      %vm617 = vcmp.lt.s32.totalorder %v598, 1
      %vm618 = vcmp.lt.s32.totalorder %v598, 2
      %vm619 = vcmp.lt.s32.totalorder %v598, 3
      %vm620 = vcmp.lt.s32.totalorder %v598, 4
      %v621 = vsel %vm617, %v601, %v604
      %v622 = vsel %vm620, %v610, 2102212464
      %v623 = vsel %vm619, %v607, %v622
      %v624 = vsel %vm618, %v621, %v623
      %v625 = vsel %vm617, %v604, %v607
      %v626 = vsel %vm620, %v613, 920167782
      %v627 = vsel %vm619, %v610, %v626
      %v628 = vsel %vm618, %v625, %v627
      %v629 = vsel %vm617, %v607, %v610
      %v630 = vsel %vm620, %v616, 1326507024
      %v631 = vsel %vm619, %v613, %v630
      %v632 = vsel %vm618, %v629, %v631
      %v633 = vshll.u32 %v593, 8
      %v634 = vand.u32 %v633, 65535
      %v635 = vshrl.u32 %v633, 16
      %v636 = vand.u32 %v632, 65535
      %v637 = vshrl.u32 %v632, 16
      %v638 = vmul.u32 %v634, %v636
      %v639 = vmul.u32 %v634, %v637
      %v640 = vmul.u32 %v635, %v636
      %v641 = vmul.u32 %v635, %v637
      %v642 = vshll.u32 %v639, 16
      %v643 = vshrl.u32 %v639, 16
      %v644 = vshll.u32 %v640, 16
      %v645 = vshrl.u32 %v640, 16
      %vm646 = vc.u32 %v638, %v642
      %v647 = vsel %vm646, 1, 0
      %v648 = vadd.s32 %v638, %v642
      %v649 = vadd.s32 %v641, %v647
      %vm650 = vc.u32 %v648, %v644
      %v651 = vsel %vm650, 1, 0
      %v652 = vadd.s32 %v648, %v644
      %v653 = vadd.s32 %v649, %v651
      %v654 = vadd.s32 %v653, %v643
      %v655 = vadd.s32 %v654, %v645
      %v656 = vand.u32 %v633, 65535
      %v657 = vshrl.u32 %v633, 16
      %v658 = vand.u32 %v628, 65535
      %v659 = vshrl.u32 %v628, 16
      %v660 = vmul.u32 %v656, %v658
      %v661 = vmul.u32 %v656, %v659
      %v662 = vmul.u32 %v657, %v658
      %v663 = vmul.u32 %v657, %v659
      %v664 = vshll.u32 %v661, 16
      %v665 = vshrl.u32 %v661, 16
      %v666 = vshll.u32 %v662, 16
      %v667 = vshrl.u32 %v662, 16
      %vm668 = vc.u32 %v660, %v664
      %v669 = vsel %vm668, 1, 0
      %v670 = vadd.s32 %v660, %v664
      %v671 = vadd.s32 %v663, %v669
      %vm672 = vc.u32 %v670, %v666
      %v673 = vsel %vm672, 1, 0
      %v674 = vadd.s32 %v670, %v666
      %v675 = vadd.s32 %v671, %v673
      %v676 = vadd.s32 %v675, %v665
      %v677 = vadd.s32 %v676, %v667
      %v678 = vmul.u32 %v633, %v624
      %v679 = vadd.s32 %v655, %v674
      %vm680 = vc.u32 %v655, %v674
      %v681 = vadd.s32 %v677, 1
      %v682 = vsel %vm680, %v681, %v677
      %v683 = vadd.s32 %v678, %v682
      %v684 = vadd.s32 %v683, 536870912
      %v685 = vshrl.u32 %v684, 30
      %v686 = vshll.u32 %v685, 30
      %v687 = vsub.s32 %v683, %v686
      %vm688 = vcmp.lt.s32.totalorder %v687, 0
      %v689 = vsub.s32 0, %v687
      %v690 = vsel %vm688, %v689, %v687
      %v691 = vclz %v690
      %v692 = vsub.s32 %v691, 2
      %vm693 = vcmp.gt.s32.totalorder 0, %v692
      %v694 = vsel %vm693, 0, %v692
      %v695 = vsub.s32 32, %v694
      %v696 = vshll.u32 %v687, %v694
      %v697 = vshrl.u32 %v679, %v695
      %v698 = vor.u32 %v696, %v697
      %v699 = vsub.s32 4294967266, %v694
      %v700 = vadd.s32 %v699, 127
      %v701 = vshll.u32 %v700, 23
      %v702 = vor.u32 4788187, %v701
      %v703 = vand.u32 2147483647, %v702
      %v705 = vcvt.s32.f32 %v698
      %v706 = vmul.f32 %v705, %v703
      %v707 = vxor.u32 %v706, 2147483648
      %v708 = vsel %vm587, %v707, %v706
      %v709 = vsub.s32 4, %v685
      %v710 = vsel %vm587, %v709, %v685
      %v711 = vsel %vm586, %v583, %v708
      %v712 = vsel %vm586, 0, %v710
      %v713 = vmul.f32 %v711, %v711
      %v714 = vmul.f32 %v713, -0.001358992
      %v715 = vadd.f32 %v714, 0.041655596
      %v716 = vmul.f32 %v713, %v715
      %v717 = vadd.f32 %v716, -0.4999988
      %v718 = vmul.f32 %v713, %v717
      %v719 = vadd.f32 1.0, %v718
      %v720 = vmul.f32 %v711, %v711
      %v721 = vmul.f32 %v720, -0.00019511016
      %v722 = vadd.f32 %v721, 0.008332121
      %v723 = vmul.f32 %v720, %v722
      %v724 = vadd.f32 %v723, -0.16666654
      %v725 = vmul.f32 %v720, %v724
      %v726 = vadd.f32 %v725, 1.0
      %v727 = vmul.f32 %v726, %v711
      %vm728 = vweird.f32 %v583
      %v729 = vadd.s32 %v712, 3
      %v730 = vand.u32 %v729, 3
      %vm731 = vcmp.lt.s32.totalorder %v730, 2
      %vm732 = vcmp.eq.s32.totalorder %v730, 0
      %v733 = vxor.u32 %v727, 2147483648
      %v734 = vsel %vm732, %v719, %v733
      %vm735 = vcmp.eq.s32.totalorder %v730, 2
      %v736 = vxor.u32 %v719, 2147483648
      %v737 = vsel %vm735, %v736, %v727
      %v738 = vsel %vm731, %v734, %v737
      %v739 = vsel %vm728, nan, %v738
      %v740 = vand.u32 2147483647, %v584
      %vm741 = vcmp.le.f32.partialorder %v740, 0.7853982
      %vm742 = vcmp.lt.s32.totalorder %v584, 0
      %v743 = vand.u32 %v584, 2139095040
      %v744 = vshrl.u32 %v743, 23
      %v745 = vsub.s32 %v744, 127
      %v746 = vand.u32 2147483647, %v584
      %v747 = vand.u32 %v746, 8388607
      %v748 = vor.u32 %v747, 8388608
      %v749 = vsub.s32 0, %v748
      %v750 = vadd.s32 %v745, 1
      %vm751 = vcmp.gt.s32.totalorder %v750, 0
      %v752 = vsel %vm751, %v750, 0
      %v753 = vshrl.u32 %v752, 5
      %v754 = vand.u32 %v752, 31
      %v755 = vsub.s32 32, %v754
      %v756 = vshrl.u32 683565275, %v755
      %v757 = vshll.u32 683565275, %v754
      %v758 = vshrl.u32 2475754826, %v755
      %v759 = vor.u32 %v757, %v758
      %v760 = vshll.u32 2475754826, %v754
      %v761 = vshrl.u32 2131351028, %v755
      %v762 = vor.u32 %v760, %v761
      %v763 = vshll.u32 2131351028, %v754
      %v764 = vshrl.u32 2102212464, %v755
      %v765 = vor.u32 %v763, %v764
      %v766 = vshll.u32 2102212464, %v754
      %v767 = vshrl.u32 920167782, %v755
      %v768 = vor.u32 %v766, %v767
      %v769 = vshll.u32 920167782, %v754
      %v770 = vshrl.u32 1326507024, %v755
      %v771 = vor.u32 %v769, %v770
      %vm772 = vcmp.lt.s32.totalorder %v753, 1
      %vm773 = vcmp.lt.s32.totalorder %v753, 2
      %vm774 = vcmp.lt.s32.totalorder %v753, 3
      %vm775 = vcmp.lt.s32.totalorder %v753, 4
      %v776 = vsel %vm772, %v756, %v759
      %v777 = vsel %vm775, %v765, 2102212464
      %v778 = vsel %vm774, %v762, %v777
      %v779 = vsel %vm773, %v776, %v778
      %v780 = vsel %vm772, %v759, %v762
      %v781 = vsel %vm775, %v768, 920167782
      %v782 = vsel %vm774, %v765, %v781
      %v783 = vsel %vm773, %v780, %v782
      %v784 = vsel %vm772, %v762, %v765
      %v785 = vsel %vm775, %v771, 1326507024
      %v786 = vsel %vm774, %v768, %v785
      %v787 = vsel %vm773, %v784, %v786
      %v788 = vshll.u32 %v748, 8
      %v789 = vand.u32 %v788, 65535
      %v790 = vshrl.u32 %v788, 16
      %v791 = vand.u32 %v787, 65535
      %v792 = vshrl.u32 %v787, 16
      %v793 = vmul.u32 %v789, %v791
      %v794 = vmul.u32 %v789, %v792
      %v795 = vmul.u32 %v790, %v791
      %v796 = vmul.u32 %v790, %v792
      %v797 = vshll.u32 %v794, 16
      %v798 = vshrl.u32 %v794, 16
      %v799 = vshll.u32 %v795, 16
      %v800 = vshrl.u32 %v795, 16
      %vm801 = vc.u32 %v793, %v797
      %v802 = vsel %vm801, 1, 0
      %v803 = vadd.s32 %v793, %v797
      %v804 = vadd.s32 %v796, %v802
      %vm805 = vc.u32 %v803, %v799
      %v806 = vsel %vm805, 1, 0
      %v807 = vadd.s32 %v803, %v799
      %v808 = vadd.s32 %v804, %v806
      %v809 = vadd.s32 %v808, %v798
      %v810 = vadd.s32 %v809, %v800
      %v811 = vand.u32 %v788, 65535
      %v812 = vshrl.u32 %v788, 16
      %v813 = vand.u32 %v783, 65535
      %v814 = vshrl.u32 %v783, 16
      %v815 = vmul.u32 %v811, %v813
      %v816 = vmul.u32 %v811, %v814
      %v817 = vmul.u32 %v812, %v813
      %v818 = vmul.u32 %v812, %v814
      %v819 = vshll.u32 %v816, 16
      %v820 = vshrl.u32 %v816, 16
      %v821 = vshll.u32 %v817, 16
      %v822 = vshrl.u32 %v817, 16
      %vm823 = vc.u32 %v815, %v819
      %v824 = vsel %vm823, 1, 0
      %v825 = vadd.s32 %v815, %v819
      %v826 = vadd.s32 %v818, %v824
      %vm827 = vc.u32 %v825, %v821
      %v828 = vsel %vm827, 1, 0
      %v829 = vadd.s32 %v825, %v821
      %v830 = vadd.s32 %v826, %v828
      %v831 = vadd.s32 %v830, %v820
      %v832 = vadd.s32 %v831, %v822
      %v833 = vmul.u32 %v788, %v779
      %v834 = vadd.s32 %v810, %v829
      %vm835 = vc.u32 %v810, %v829
      %v836 = vadd.s32 %v832, 1
      %v837 = vsel %vm835, %v836, %v832
      %v838 = vadd.s32 %v833, %v837
      %v839 = vadd.s32 %v838, 536870912
      %v840 = vshrl.u32 %v839, 30
      %v841 = vshll.u32 %v840, 30
      %v842 = vsub.s32 %v838, %v841
      %vm843 = vcmp.lt.s32.totalorder %v842, 0
      %v844 = vsub.s32 0, %v842
      %v845 = vsel %vm843, %v844, %v842
      %v846 = vclz %v845
      %v847 = vsub.s32 %v846, 2
      %vm848 = vcmp.gt.s32.totalorder 0, %v847
      %v849 = vsel %vm848, 0, %v847
      %v850 = vsub.s32 32, %v849
      %v851 = vshll.u32 %v842, %v849
      %v852 = vshrl.u32 %v834, %v850
      %v853 = vor.u32 %v851, %v852
      %v854 = vsub.s32 4294967266, %v849
      %v855 = vadd.s32 %v854, 127
      %v856 = vshll.u32 %v855, 23
      %v857 = vor.u32 4788187, %v856
      %v858 = vand.u32 2147483647, %v857
      %v860 = vcvt.s32.f32 %v853
      %v861 = vmul.f32 %v860, %v858
      %v862 = vxor.u32 %v861, 2147483648
      %v863 = vsel %vm742, %v862, %v861
      %v864 = vsub.s32 4, %v840
      %v865 = vsel %vm742, %v864, %v840
      %v866 = vsel %vm741, %v584, %v863
      %v867 = vsel %vm741, 0, %v865
      %v868 = vmul.f32 %v866, %v866
      %v869 = vmul.f32 %v868, -0.001358992
      %v870 = vadd.f32 %v869, 0.041655596
      %v871 = vmul.f32 %v868, %v870
      %v872 = vadd.f32 %v871, -0.4999988
      %v873 = vmul.f32 %v868, %v872
      %v874 = vadd.f32 1.0, %v873
      %v875 = vmul.f32 %v866, %v866
      %v876 = vmul.f32 %v875, -0.00019511016
      %v877 = vadd.f32 %v876, 0.008332121
      %v878 = vmul.f32 %v875, %v877
      %v879 = vadd.f32 %v878, -0.16666654
      %v880 = vmul.f32 %v875, %v879
      %v881 = vadd.f32 %v880, 1.0
      %v882 = vmul.f32 %v881, %v866
      %vm883 = vweird.f32 %v584
      %v884 = vadd.s32 %v867, 3
      %v885 = vand.u32 %v884, 3
      %vm886 = vcmp.lt.s32.totalorder %v885, 2
      %vm887 = vcmp.eq.s32.totalorder %v885, 0
      %v888 = vxor.u32 %v882, 2147483648
      %v889 = vsel %vm887, %v874, %v888
      %vm890 = vcmp.eq.s32.totalorder %v885, 2
      %v891 = vxor.u32 %v874, 2147483648
      %v892 = vsel %vm890, %v891, %v882
      %v893 = vsel %vm886, %v889, %v892
      %v894 = vsel %vm883, nan, %v893
      %v895 = vmul.f32 %v739, %v739
      %v896 = vmul.f32 %v894, %v894
      %897 = vset.pattern.permute.xlu0 1
      %898 = vperm.xlu0 %897, %v577
      %v899 = vpop.permute.xlu0 %898
      %v901 = vmul.f32 %v899, %v895
      %v902 = vmul.f32 %v899, %v896
      %v903 = vadd.f32 %v564, %v901
      %v904 = vadd.f32 %v565, %v902
      %905 = vst [vmem:[#allocation3] sm:$0xff] %v903
      %vm906 = vcmask 97280
      %907 = vst.msk [vmem:[#allocation3 + $0x8] sm:$0xff] %vm906, %v904
      %v908 = vmul.f32 %v581, %v575
      %v909 = vmul.f32 %v581, %v576
      %v910 = vand.u32 2147483647, %v908
      %vm911 = vcmp.le.f32.partialorder %v910, 0.7853982
      %vm912 = vcmp.lt.s32.totalorder %v908, 0
      %v913 = vand.u32 %v908, 2139095040
      %v914 = vshrl.u32 %v913, 23
      %v915 = vsub.s32 %v914, 127
      %v916 = vand.u32 2147483647, %v908
      %v917 = vand.u32 %v916, 8388607
      %v918 = vor.u32 %v917, 8388608
      %v919 = vsub.s32 0, %v918
      %v920 = vadd.s32 %v915, 1
      %vm921 = vcmp.gt.s32.totalorder %v920, 0
      %v922 = vsel %vm921, %v920, 0
      %v923 = vshrl.u32 %v922, 5
      %v924 = vand.u32 %v922, 31
      %v925 = vsub.s32 32, %v924
      %v926 = vshrl.u32 683565275, %v925
      %v927 = vshll.u32 683565275, %v924
      %v928 = vshrl.u32 2475754826, %v925
      %v929 = vor.u32 %v927, %v928
      %v930 = vshll.u32 2475754826, %v924
      %v931 = vshrl.u32 2131351028, %v925
      %v932 = vor.u32 %v930, %v931
      %v933 = vshll.u32 2131351028, %v924
      %v934 = vshrl.u32 2102212464, %v925
      %v935 = vor.u32 %v933, %v934
      %v936 = vshll.u32 2102212464, %v924
      %v937 = vshrl.u32 920167782, %v925
      %v938 = vor.u32 %v936, %v937
      %v939 = vshll.u32 920167782, %v924
      %v940 = vshrl.u32 1326507024, %v925
      %v941 = vor.u32 %v939, %v940
      %vm942 = vcmp.lt.s32.totalorder %v923, 1
      %vm943 = vcmp.lt.s32.totalorder %v923, 2
      %vm944 = vcmp.lt.s32.totalorder %v923, 3
      %vm945 = vcmp.lt.s32.totalorder %v923, 4
      %v946 = vsel %vm942, %v926, %v929
      %v947 = vsel %vm945, %v935, 2102212464
      %v948 = vsel %vm944, %v932, %v947
      %v949 = vsel %vm943, %v946, %v948
      %v950 = vsel %vm942, %v929, %v932
      %v951 = vsel %vm945, %v938, 920167782
      %v952 = vsel %vm944, %v935, %v951
      %v953 = vsel %vm943, %v950, %v952
      %v954 = vsel %vm942, %v932, %v935
      %v955 = vsel %vm945, %v941, 1326507024
      %v956 = vsel %vm944, %v938, %v955
      %v957 = vsel %vm943, %v954, %v956
      %v958 = vshll.u32 %v918, 8
      %v959 = vand.u32 %v958, 65535
      %v960 = vshrl.u32 %v958, 16
      %v961 = vand.u32 %v957, 65535
      %v962 = vshrl.u32 %v957, 16
      %v963 = vmul.u32 %v959, %v961
      %v964 = vmul.u32 %v959, %v962
      %v965 = vmul.u32 %v960, %v961
      %v966 = vmul.u32 %v960, %v962
      %v967 = vshll.u32 %v964, 16
      %v968 = vshrl.u32 %v964, 16
      %v969 = vshll.u32 %v965, 16
      %v970 = vshrl.u32 %v965, 16
      %vm971 = vc.u32 %v963, %v967
      %v972 = vsel %vm971, 1, 0
      %v973 = vadd.s32 %v963, %v967
      %v974 = vadd.s32 %v966, %v972
      %vm975 = vc.u32 %v973, %v969
      %v976 = vsel %vm975, 1, 0
      %v977 = vadd.s32 %v973, %v969
      %v978 = vadd.s32 %v974, %v976
      %v979 = vadd.s32 %v978, %v968
      %v980 = vadd.s32 %v979, %v970
      %v981 = vand.u32 %v958, 65535
      %v982 = vshrl.u32 %v958, 16
      %v983 = vand.u32 %v953, 65535
      %v984 = vshrl.u32 %v953, 16
      %v985 = vmul.u32 %v981, %v983
      %v986 = vmul.u32 %v981, %v984
      %v987 = vmul.u32 %v982, %v983
      %v988 = vmul.u32 %v982, %v984
      %v989 = vshll.u32 %v986, 16
      %v990 = vshrl.u32 %v986, 16
      %v991 = vshll.u32 %v987, 16
      %v992 = vshrl.u32 %v987, 16
      %vm993 = vc.u32 %v985, %v989
      %v994 = vsel %vm993, 1, 0
      %v995 = vadd.s32 %v985, %v989
      %v996 = vadd.s32 %v988, %v994
      %vm997 = vc.u32 %v995, %v991
      %v998 = vsel %vm997, 1, 0
      %v999 = vadd.s32 %v995, %v991
      %v1000 = vadd.s32 %v996, %v998
      %v1001 = vadd.s32 %v1000, %v990
      %v1002 = vadd.s32 %v1001, %v992
      %v1003 = vmul.u32 %v958, %v949
      %v1004 = vadd.s32 %v980, %v999
      %vm1005 = vc.u32 %v980, %v999
      %v1006 = vadd.s32 %v1002, 1
      %v1007 = vsel %vm1005, %v1006, %v1002
      %v1008 = vadd.s32 %v1003, %v1007
      %v1009 = vadd.s32 %v1008, 536870912
      %v1010 = vshrl.u32 %v1009, 30
      %v1011 = vshll.u32 %v1010, 30
      %v1012 = vsub.s32 %v1008, %v1011
      %vm1013 = vcmp.lt.s32.totalorder %v1012, 0
      %v1014 = vsub.s32 0, %v1012
      %v1015 = vsel %vm1013, %v1014, %v1012
      %v1016 = vclz %v1015
      %v1017 = vsub.s32 %v1016, 2
      %vm1018 = vcmp.gt.s32.totalorder 0, %v1017
      %v1019 = vsel %vm1018, 0, %v1017
      %v1020 = vsub.s32 32, %v1019
      %v1021 = vshll.u32 %v1012, %v1019
      %v1022 = vshrl.u32 %v1004, %v1020
      %v1023 = vor.u32 %v1021, %v1022
      %v1024 = vsub.s32 4294967266, %v1019
      %v1025 = vadd.s32 %v1024, 127
      %v1026 = vshll.u32 %v1025, 23
      %v1027 = vor.u32 4788187, %v1026
      %v1028 = vand.u32 2147483647, %v1027
      %v1030 = vcvt.s32.f32 %v1023
      %v1031 = vmul.f32 %v1030, %v1028
      %v1032 = vxor.u32 %v1031, 2147483648
      %v1033 = vsel %vm912, %v1032, %v1031
      %v1034 = vsub.s32 4, %v1010
      %v1035 = vsel %vm912, %v1034, %v1010
      %v1036 = vsel %vm911, %v908, %v1033
      %v1037 = vsel %vm911, 0, %v1035
      %v1038 = vmul.f32 %v1036, %v1036
      %v1039 = vmul.f32 %v1038, -0.001358992
      %v1040 = vadd.f32 %v1039, 0.041655596
      %v1041 = vmul.f32 %v1038, %v1040
      %v1042 = vadd.f32 %v1041, -0.4999988
      %v1043 = vmul.f32 %v1038, %v1042
      %v1044 = vadd.f32 1.0, %v1043
      %v1045 = vmul.f32 %v1036, %v1036
      %v1046 = vmul.f32 %v1045, -0.00019511016
      %v1047 = vadd.f32 %v1046, 0.008332121
      %v1048 = vmul.f32 %v1045, %v1047
      %v1049 = vadd.f32 %v1048, -0.16666654
      %v1050 = vmul.f32 %v1045, %v1049
      %v1051 = vadd.f32 %v1050, 1.0
      %v1052 = vmul.f32 %v1051, %v1036
      %vm1053 = vweird.f32 %v908
      %v1054 = vadd.s32 %v1037, 3
      %v1055 = vand.u32 %v1054, 3
      %vm1056 = vcmp.lt.s32.totalorder %v1055, 2
      %vm1057 = vcmp.eq.s32.totalorder %v1055, 0
      %v1058 = vxor.u32 %v1052, 2147483648
      %v1059 = vsel %vm1057, %v1044, %v1058
      %vm1060 = vcmp.eq.s32.totalorder %v1055, 2
      %v1061 = vxor.u32 %v1044, 2147483648
      %v1062 = vsel %vm1060, %v1061, %v1052
      %v1063 = vsel %vm1056, %v1059, %v1062
      %v1064 = vsel %vm1053, nan, %v1063
      %v1065 = vand.u32 2147483647, %v909
      %vm1066 = vcmp.le.f32.partialorder %v1065, 0.7853982
      %vm1067 = vcmp.lt.s32.totalorder %v909, 0
      %v1068 = vand.u32 %v909, 2139095040
      %v1069 = vshrl.u32 %v1068, 23
      %v1070 = vsub.s32 %v1069, 127
      %v1071 = vand.u32 2147483647, %v909
      %v1072 = vand.u32 %v1071, 8388607
      %v1073 = vor.u32 %v1072, 8388608
      %v1074 = vsub.s32 0, %v1073
      %v1075 = vadd.s32 %v1070, 1
      %vm1076 = vcmp.gt.s32.totalorder %v1075, 0
      %v1077 = vsel %vm1076, %v1075, 0
      %v1078 = vshrl.u32 %v1077, 5
      %v1079 = vand.u32 %v1077, 31
      %v1080 = vsub.s32 32, %v1079
      %v1081 = vshrl.u32 683565275, %v1080
      %v1082 = vshll.u32 683565275, %v1079
      %v1083 = vshrl.u32 2475754826, %v1080
      %v1084 = vor.u32 %v1082, %v1083
      %v1085 = vshll.u32 2475754826, %v1079
      %v1086 = vshrl.u32 2131351028, %v1080
      %v1087 = vor.u32 %v1085, %v1086
      %v1088 = vshll.u32 2131351028, %v1079
      %v1089 = vshrl.u32 2102212464, %v1080
      %v1090 = vor.u32 %v1088, %v1089
      %v1091 = vshll.u32 2102212464, %v1079
      %v1092 = vshrl.u32 920167782, %v1080
      %v1093 = vor.u32 %v1091, %v1092
      %v1094 = vshll.u32 920167782, %v1079
      %v1095 = vshrl.u32 1326507024, %v1080
      %v1096 = vor.u32 %v1094, %v1095
      %vm1097 = vcmp.lt.s32.totalorder %v1078, 1
      %vm1098 = vcmp.lt.s32.totalorder %v1078, 2
      %vm1099 = vcmp.lt.s32.totalorder %v1078, 3
      %vm1100 = vcmp.lt.s32.totalorder %v1078, 4
      %v1101 = vsel %vm1097, %v1081, %v1084
      %v1102 = vsel %vm1100, %v1090, 2102212464
      %v1103 = vsel %vm1099, %v1087, %v1102
      %v1104 = vsel %vm1098, %v1101, %v1103
      %v1105 = vsel %vm1097, %v1084, %v1087
      %v1106 = vsel %vm1100, %v1093, 920167782
      %v1107 = vsel %vm1099, %v1090, %v1106
      %v1108 = vsel %vm1098, %v1105, %v1107
      %v1109 = vsel %vm1097, %v1087, %v1090
      %v1110 = vsel %vm1100, %v1096, 1326507024
      %v1111 = vsel %vm1099, %v1093, %v1110
      %v1112 = vsel %vm1098, %v1109, %v1111
      %v1113 = vshll.u32 %v1073, 8
      %v1114 = vand.u32 %v1113, 65535
      %v1115 = vshrl.u32 %v1113, 16
      %v1116 = vand.u32 %v1112, 65535
      %v1117 = vshrl.u32 %v1112, 16
      %v1118 = vmul.u32 %v1114, %v1116
      %v1119 = vmul.u32 %v1114, %v1117
      %v1120 = vmul.u32 %v1115, %v1116
      %v1121 = vmul.u32 %v1115, %v1117
      %v1122 = vshll.u32 %v1119, 16
      %v1123 = vshrl.u32 %v1119, 16
      %v1124 = vshll.u32 %v1120, 16
      %v1125 = vshrl.u32 %v1120, 16
      %vm1126 = vc.u32 %v1118, %v1122
      %v1127 = vsel %vm1126, 1, 0
      %v1128 = vadd.s32 %v1118, %v1122
      %v1129 = vadd.s32 %v1121, %v1127
      %vm1130 = vc.u32 %v1128, %v1124
      %v1131 = vsel %vm1130, 1, 0
      %v1132 = vadd.s32 %v1128, %v1124
      %v1133 = vadd.s32 %v1129, %v1131
      %v1134 = vadd.s32 %v1133, %v1123
      %v1135 = vadd.s32 %v1134, %v1125
      %v1136 = vand.u32 %v1113, 65535
      %v1137 = vshrl.u32 %v1113, 16
      %v1138 = vand.u32 %v1108, 65535
      %v1139 = vshrl.u32 %v1108, 16
      %v1140 = vmul.u32 %v1136, %v1138
      %v1141 = vmul.u32 %v1136, %v1139
      %v1142 = vmul.u32 %v1137, %v1138
      %v1143 = vmul.u32 %v1137, %v1139
      %v1144 = vshll.u32 %v1141, 16
      %v1145 = vshrl.u32 %v1141, 16
      %v1146 = vshll.u32 %v1142, 16
      %v1147 = vshrl.u32 %v1142, 16
      %vm1148 = vc.u32 %v1140, %v1144
      %v1149 = vsel %vm1148, 1, 0
      %v1150 = vadd.s32 %v1140, %v1144
      %v1151 = vadd.s32 %v1143, %v1149
      %vm1152 = vc.u32 %v1150, %v1146
      %v1153 = vsel %vm1152, 1, 0
      %v1154 = vadd.s32 %v1150, %v1146
      %v1155 = vadd.s32 %v1151, %v1153
      %v1156 = vadd.s32 %v1155, %v1145
      %v1157 = vadd.s32 %v1156, %v1147
      %v1158 = vmul.u32 %v1113, %v1104
      %v1159 = vadd.s32 %v1135, %v1154
      %vm1160 = vc.u32 %v1135, %v1154
      %v1161 = vadd.s32 %v1157, 1
      %v1162 = vsel %vm1160, %v1161, %v1157
      %v1163 = vadd.s32 %v1158, %v1162
      %v1164 = vadd.s32 %v1163, 536870912
      %v1165 = vshrl.u32 %v1164, 30
      %v1166 = vshll.u32 %v1165, 30
      %v1167 = vsub.s32 %v1163, %v1166
      %vm1168 = vcmp.lt.s32.totalorder %v1167, 0
      %v1169 = vsub.s32 0, %v1167
      %v1170 = vsel %vm1168, %v1169, %v1167
      %v1171 = vclz %v1170
      %v1172 = vsub.s32 %v1171, 2
      %vm1173 = vcmp.gt.s32.totalorder 0, %v1172
      %v1174 = vsel %vm1173, 0, %v1172
      %v1175 = vsub.s32 32, %v1174
      %v1176 = vshll.u32 %v1167, %v1174
      %v1177 = vshrl.u32 %v1159, %v1175
      %v1178 = vor.u32 %v1176, %v1177
      %v1179 = vsub.s32 4294967266, %v1174
      %v1180 = vadd.s32 %v1179, 127
      %v1181 = vshll.u32 %v1180, 23
      %v1182 = vor.u32 4788187, %v1181
      %v1183 = vand.u32 2147483647, %v1182
      %v1185 = vcvt.s32.f32 %v1178
      %v1186 = vmul.f32 %v1185, %v1183
      %v1187 = vxor.u32 %v1186, 2147483648
      %v1188 = vsel %vm1067, %v1187, %v1186
      %v1189 = vsub.s32 4, %v1165
      %v1190 = vsel %vm1067, %v1189, %v1165
      %v1191 = vsel %vm1066, %v909, %v1188
      %v1192 = vsel %vm1066, 0, %v1190
      %v1193 = vmul.f32 %v1191, %v1191
      %v1194 = vmul.f32 %v1193, -0.001358992
      %v1195 = vadd.f32 %v1194, 0.041655596
      %v1196 = vmul.f32 %v1193, %v1195
      %v1197 = vadd.f32 %v1196, -0.4999988
      %v1198 = vmul.f32 %v1193, %v1197
      %v1199 = vadd.f32 1.0, %v1198
      %v1200 = vmul.f32 %v1191, %v1191
      %v1201 = vmul.f32 %v1200, -0.00019511016
      %v1202 = vadd.f32 %v1201, 0.008332121
      %v1203 = vmul.f32 %v1200, %v1202
      %v1204 = vadd.f32 %v1203, -0.16666654
      %v1205 = vmul.f32 %v1200, %v1204
      %v1206 = vadd.f32 %v1205, 1.0
      %v1207 = vmul.f32 %v1206, %v1191
      %vm1208 = vweird.f32 %v909
      %v1209 = vadd.s32 %v1192, 3
      %v1210 = vand.u32 %v1209, 3
      %vm1211 = vcmp.lt.s32.totalorder %v1210, 2
      %vm1212 = vcmp.eq.s32.totalorder %v1210, 0
      %v1213 = vxor.u32 %v1207, 2147483648
      %v1214 = vsel %vm1212, %v1199, %v1213
      %vm1215 = vcmp.eq.s32.totalorder %v1210, 2
      %v1216 = vxor.u32 %v1199, 2147483648
      %v1217 = vsel %vm1215, %v1216, %v1207
      %v1218 = vsel %vm1211, %v1214, %v1217
      %v1219 = vsel %vm1208, nan, %v1218
      %v1220 = vmul.f32 %v1064, %v1064
      %v1221 = vmul.f32 %v1219, %v1219
      %v1222 = vmul.f32 %v899, %v1220
      %v1223 = vmul.f32 %v899, %v1221
      %v1224 = vadd.f32 %v575, %v1222
      %v1225 = vadd.f32 %v576, %v1223
      %1228 = vrot.lane.b32.xlu0 %v1224, 127
      %v1229 = vpop.permute.xlu0 %1228
      %1230 = vrot.lane.b32.xlu0 %v1225, 127
      %v1231 = vpop.permute.xlu0 %1230
      %v1232 = vsel %vm470, %v1229, %v1231
      %1235 = vst [vmem:[#allocation4] sm:$0xff] %v1232
      %1236 = vst.msk [vmem:[#allocation4 + $0x8] sm:$0xff] %vm906, %v1231
      // Predicated region
      $region53: #{amp_layer_forward.2} parent=43 // pred_check
        %p1237 = pneg %p411
      $region54: #{amp_layer_forward.2} parent=43 // pred_check_branch
        %1239 = sbr.rel (%p1237) target = $region56
      $region55: #{amp_layer_forward.2} parent=43 // pred_region
        %v1240 = vld [vmem:[#allocation3] sm:$0xff]
        %1242 = vset.pattern.permute.xlu0 6
        %1243 = vperm.xlu0 %1242, %v1240
        %v1244 = vpop.permute.xlu0 %1243
        %vm1246 = vcmask 48128
        %1247 = vst.msk [vmem:[#allocation3] sm:$0xff] %vm1246, %v1244
        %1248 = vst.msk [vmem:[#allocation4] sm:$0xff] %vm1246, %v1244
      $region56: #{amp_layer_forward.2} parent=43 // pred_fallthru
        _
      // Predicated region
      $region57: #{amp_layer_forward.2} parent=43 // pred_check
        %p1249 = pneg %p389
      $region58: #{amp_layer_forward.2} parent=43 // pred_check_branch
        %1251 = sbr.rel (%p1249) target = $region60
      $region59: #{amp_layer_forward.2} parent=43 // pred_region
        %s1252 = ssub.s32 %s387, 6
        %v1253 = vlaneseq
        %v1254 = vand.u32 %v1253, 127
        %v1255 = vadd.s32 %v1254, 128
        %v1256 = vstv %s1252
        %v1257 = vadd.s32 %v1256, %v1254
        %v1258 = vadd.s32 %v1256, %v1255
        %v1259 = vld [vmem:[#allocation4] sm:$0xff]
        %v1260 = vld [vmem:[#allocation4 + $0x8] sm:$0xff]
        %vm1261 = vcmp.eq.s32.totalorder %v1257, 299
        %vm1262 = vcmp.eq.s32.totalorder %v1258, 299
        %v1263 = vsel %vm1261, 1, 0
        %v1264 = vsel %vm1262, 1, 0
        %vm1265 = vcmp.eq.s32.totalorder %v1263, 1
        %vm1266 = vcmp.eq.s32.totalorder %v1264, 1
        %v1267 = vsel %vm1265, %v1259, 0.0
        %v1268 = vsel %vm1266, %v1260, 0.0
        %v1269 = vsel %vm906, %v1268, 0.0
        %v1270 = vadd.f32 %v1267, %v1269
        %1271 = vadd.xlane.f32.xlu0 %v1270
        %v1272 = vpop.xlane.xlu0 %1271
        %vm1273 = vcmp.gt.s32.totalorder %v1257, 299
        %vm1274 = vcmp.gt.s32.totalorder %v1258, 299
        %v1275 = vld [vmem:[#allocation3] sm:$0xff]
        %v1276 = vld [vmem:[#allocation3 + $0x8] sm:$0xff]
        %v1277 = vsel %vm1273, 1, 0
        %v1278 = vsel %vm1274, 1, 0
        %vm1279 = vcmp.eq.s32.totalorder %v1277, 1
        %vm1280 = vcmp.eq.s32.totalorder %v1278, 1
        %v1281 = vsel %vm1279, %v1272, %v1275
        %v1282 = vsel %vm1280, %v1272, %v1276
        %1283 = vst [vmem:[#allocation3] sm:$0xff] %v1281
        %1284 = vst.msk [vmem:[#allocation3 + $0x8] sm:$0xff] %vm906, %v1282
        %v1285 = vsel %vm1279, %v1272, %v1259
        %v1286 = vsel %vm1280, %v1272, %v1260
        %1287 = vst [vmem:[#allocation4] sm:$0xff] %v1285
        %1288 = vst.msk [vmem:[#allocation4 + $0x8] sm:$0xff] %vm906, %v1286
      $region60: #{amp_layer_forward.2} parent=43 // pred_fallthru
        _
      %v1289 = vld [vmem:[#allocation4] sm:$0xff]
      %v1290 = vld [vmem:[#allocation4 + $0x8] sm:$0xff]
      %v1291 = vmul.f32 %v1289, 0.0020289666
      %v1292 = vmul.f32 %v1290, 0.0020289666
      %v1293 = vld [vmem:[#allocation3] sm:$0xff]
      %v1294 = vld [vmem:[#allocation3 + $0x8] sm:$0xff]
      %v1295 = vmul.f32 %v1293, 0.009389464
      %v1296 = vmul.f32 %v1294, 0.009389464
      %1299 = vrot.lane.b32.xlu0 %v1295, 127
      %v1300 = vpop.permute.xlu0 %1299
      %1301 = vrot.lane.b32.xlu0 %v1296, 127
      %v1302 = vpop.permute.xlu0 %1301
      %v1303 = vsel %vm470, %v1300, %v1302
      %v1306 = vadd.f32 %v1291, %v1303
      %v1307 = vadd.f32 %v1292, %v1302
      %v1308 = vmul.f32 %v1289, -0.025543464
      %v1309 = vmul.f32 %v1290, -0.025543464
      %1312 = vrot.lane.b32.xlu0 %v1308, 127
      %v1313 = vpop.permute.xlu0 %1312
      %1314 = vrot.lane.b32.xlu0 %v1309, 127
      %v1315 = vpop.permute.xlu0 %1314
      %v1316 = vsel %vm470, %v1313, %v1315
      %v1319 = vadd.f32 %v1306, %v1316
      %v1320 = vadd.f32 %v1307, %v1315
      %v1321 = vmul.f32 %v1293, -0.057657376
      %v1322 = vmul.f32 %v1294, -0.057657376
      %1325 = vrot.lane.b32.xlu0 %v1321, 126
      %v1326 = vpop.permute.xlu0 %1325
      %1327 = vrot.lane.b32.xlu0 %v1322, 126
      %v1328 = vpop.permute.xlu0 %1327
      %v1329 = vsel %vm497, %v1326, %v1328
      %v1332 = vadd.f32 %v1319, %v1329
      %v1333 = vadd.f32 %v1320, %v1328
      %v1334 = vmul.f32 %v1289, 0.12857261
      %v1335 = vmul.f32 %v1290, 0.12857261
      %1338 = vrot.lane.b32.xlu0 %v1334, 126
      %v1339 = vpop.permute.xlu0 %1338
      %1340 = vrot.lane.b32.xlu0 %v1335, 126
      %v1341 = vpop.permute.xlu0 %1340
      %v1342 = vsel %vm497, %v1339, %v1341
      %v1345 = vadd.f32 %v1332, %v1342
      %v1346 = vadd.f32 %v1333, %v1341
      %v1347 = vmul.f32 %v1293, 0.4432098
      %v1348 = vmul.f32 %v1294, 0.4432098
      %1351 = vrot.lane.b32.xlu0 %v1347, 125
      %v1352 = vpop.permute.xlu0 %1351
      %1353 = vrot.lane.b32.xlu0 %v1348, 125
      %v1354 = vpop.permute.xlu0 %1353
      %v1355 = vsel %vm520, %v1352, %v1354
      %v1358 = vadd.f32 %v1345, %v1355
      %v1359 = vadd.f32 %v1346, %v1354
      %v1360 = vmul.f32 %v1289, 0.4432098
      %v1361 = vmul.f32 %v1290, 0.4432098
      %1364 = vrot.lane.b32.xlu0 %v1360, 125
      %v1365 = vpop.permute.xlu0 %1364
      %1366 = vrot.lane.b32.xlu0 %v1361, 125
      %v1367 = vpop.permute.xlu0 %1366
      %v1368 = vsel %vm520, %v1365, %v1367
      %v1371 = vadd.f32 %v1358, %v1368
      %v1372 = vadd.f32 %v1359, %v1367
      %v1373 = vmul.f32 %v1293, 0.12857261
      %v1374 = vmul.f32 %v1294, 0.12857261
      %1377 = vrot.lane.b32.xlu0 %v1373, 124
      %v1378 = vpop.permute.xlu0 %1377
      %1379 = vrot.lane.b32.xlu0 %v1374, 124
      %v1380 = vpop.permute.xlu0 %1379
      %v1381 = vsel %vm539, %v1378, %v1380
      %v1384 = vadd.f32 %v1371, %v1381
      %v1385 = vadd.f32 %v1372, %v1380
      %v1386 = vmul.f32 %v1289, -0.057657376
      %v1387 = vmul.f32 %v1290, -0.057657376
      %1390 = vrot.lane.b32.xlu0 %v1386, 124
      %v1391 = vpop.permute.xlu0 %1390
      %1392 = vrot.lane.b32.xlu0 %v1387, 124
      %v1393 = vpop.permute.xlu0 %1392
      %v1394 = vsel %vm539, %v1391, %v1393
      %v1397 = vadd.f32 %v1384, %v1394
      %v1398 = vadd.f32 %v1385, %v1393
      %v1399 = vmul.f32 %v1293, -0.025543464
      %v1400 = vmul.f32 %v1294, -0.025543464
      %1403 = vrot.lane.b32.xlu0 %v1399, 123
      %v1404 = vpop.permute.xlu0 %1403
      %1405 = vrot.lane.b32.xlu0 %v1400, 123
      %v1406 = vpop.permute.xlu0 %1405
      %v1407 = vsel %vm560, %v1404, %v1406
      %v1410 = vadd.f32 %v1397, %v1407
      %v1411 = vadd.f32 %v1398, %v1406
      %v1412 = vmul.f32 %v1289, 0.009389464
      %v1413 = vmul.f32 %v1290, 0.009389464
      %1416 = vrot.lane.b32.xlu0 %v1412, 123
      %v1417 = vpop.permute.xlu0 %1416
      %1418 = vrot.lane.b32.xlu0 %v1413, 123
      %v1419 = vpop.permute.xlu0 %1418
      %v1420 = vsel %vm560, %v1417, %v1419
      %v1423 = vadd.f32 %v1410, %v1420
      %v1424 = vadd.f32 %v1411, %v1419
      %v1425 = vmul.f32 %v1293, 0.0020289666
      %v1426 = vmul.f32 %v1294, 0.0020289666
      %1429 = vrot.lane.b32.xlu0 %v1425, 122
      %v1430 = vpop.permute.xlu0 %1429
      %1431 = vrot.lane.b32.xlu0 %v1426, 122
      %v1432 = vpop.permute.xlu0 %1431
      %vm1433 = vcmask 998400
      %v1434 = vsel %vm1433, %v1430, %v1432
      %v1437 = vadd.f32 %v1423, %v1434
      %v1438 = vadd.f32 %v1424, %v1432
      %1439 = vst [vmem:[#allocation5] sm:$0xff] %v1437
      %vm1440 = vcmask 48128
      %1441 = vst.msk [vmem:[#allocation5 + $0x8] sm:$0xff] %vm1440, %v1438
      // Predicated region
      $region61: #{amp_layer_forward.2} parent=43 // pred_check
        %p1442 = pneg %p411
      $region62: #{amp_layer_forward.2} parent=43 // pred_check_branch
        %1444 = sbr.rel (%p1442) target = $region64
      $region63: #{amp_layer_forward.2} parent=43 // pred_region
        %vm1445 = vcmask 23552
        %1446 = vst.msk [vmem:[#allocation5] sm:$0xff] %vm1445, 0.0
      $region64: #{amp_layer_forward.2} parent=43 // pred_fallthru
        _
      // Predicated region
      $region65: #{amp_layer_forward.2} parent=43 // pred_check
        %p1447 = pneg %p389
      $region66: #{amp_layer_forward.2} parent=43 // pred_check_branch
        %1449 = sbr.rel (%p1447) target = $region68
      $region67: #{amp_layer_forward.2} parent=43 // pred_region
        %s1450 = ssub.s32 %s387, 3
        %v1451 = vlaneseq
        %v1452 = vand.u32 %v1451, 127
        %v1453 = vadd.s32 %v1452, 128
        %v1454 = vstv %s1450
        %v1455 = vadd.s32 %v1454, %v1452
        %v1456 = vadd.s32 %v1454, %v1453
        %vm1457 = vcmp.gt.s32.totalorder %v1455, 299
        %vm1458 = vcmp.gt.s32.totalorder %v1456, 299
        %v1459 = vld [vmem:[#allocation5] sm:$0xff]
        %v1460 = vld [vmem:[#allocation5 + $0x8] sm:$0xff]
        %v1461 = vsel %vm1457, 1, 0
        %v1462 = vsel %vm1458, 1, 0
        %vm1463 = vcmp.eq.s32.totalorder %v1461, 1
        %vm1464 = vcmp.eq.s32.totalorder %v1462, 1
        %v1465 = vsel %vm1463, 0.0, %v1459
        %v1466 = vsel %vm1464, 0.0, %v1460
        %1467 = vst [vmem:[#allocation5] sm:$0xff] %v1465
        %1468 = vst.msk [vmem:[#allocation5 + $0x8] sm:$0xff] %vm1440, %v1466
      $region68: #{amp_layer_forward.2} parent=43 // pred_fallthru
        _
      %v1469 = vld [vmem:[%s4] sm:$0xff]
      %v1470 = vld [vmem:[#allocation5] sm:$0xff]
      %s1471 = scalar_lea.vmem %s4, 8
      %v1472 = vld [vmem:[%s1471] sm:$0xff]
      %v1473 = vld [vmem:[#allocation5 + $0x8] sm:$0xff]
      %1476 = vrot.lane.b32.xlu0 %v1470, 125
      %v1477 = vpop.permute.xlu0 %1476
      %1478 = vrot.lane.b32.xlu0 %v1473, 125
      %v1479 = vpop.permute.xlu0 %1478
      %v1480 = vsel %vm520, %v1477, %v1479
      %vm1482 = vcmask 64512
      %v1484 = vsel %vm1482, %v1472, 0
      %1486 = vmatpush.msra.mxu0 0.0
      %1487 = vmatpush.msra.mxu0 0.0
      %1488 = vmatpush.msra.mxu0 0.0
      %1489 = vmatpush.msra.mxu0 0.0
      %1490 = vmatpush.msra.mxu0 0.0
      %1491 = vmatpush.msra.mxu0 0.0
      %1492 = vmatpush.msra.mxu0 0.0
      %1493 = vmatpush.msra.mxu0 0.0
      %1494 = vmatpush.msra.mxu0 0.0
      %1495 = vmatpush.msra.mxu0 0.0
      %1496 = vmatpush.msra.mxu0 0.0
      %1497 = vmatpush.msra.mxu0 0.0
      %1498 = vmatpush.msra.mxu0 0.0
      %1499 = vmatpush.msra.mxu0 0.0
      %1500 = vmatpush.msra.mxu0 0.0
      %1501 = vmatpush.msra.mxu0 %v1480
      %1502 = vmatmul.f32.gmra.mxu0 %v1484
      %v1503 = vpop.f32.mrf.mxu0
      %v1504 = vadd.f32 0.0, %v1503
      %1505 = vdwg.mxu0
      %v1507 = vsel %vm1482, %v1469, 0
      %1509 = vmatpush.msra.mxu0 0.0
      %1510 = vmatpush.msra.mxu0 0.0
      %1511 = vmatpush.msra.mxu0 0.0
      %1512 = vmatpush.msra.mxu0 0.0
      %1513 = vmatpush.msra.mxu0 0.0
      %1514 = vmatpush.msra.mxu0 0.0
      %1515 = vmatpush.msra.mxu0 0.0
      %1516 = vmatpush.msra.mxu0 0.0
      %1517 = vmatpush.msra.mxu0 0.0
      %1518 = vmatpush.msra.mxu0 0.0
      %1519 = vmatpush.msra.mxu0 0.0
      %1520 = vmatpush.msra.mxu0 0.0
      %1521 = vmatpush.msra.mxu0 0.0
      %1522 = vmatpush.msra.mxu0 0.0
      %1523 = vmatpush.msra.mxu0 0.0
      %1524 = vmatpush.msra.mxu0 %v1470
      %1525 = vmatmul.f32.gmra.mxu0 %v1507
      %v1526 = vpop.f32.mrf.mxu0
      %v1527 = vadd.f32 %v1504, %v1526
      %1528 = vdwg.mxu0
      %s1529 = scalar_lea.vmem %s4, 16
      %v1530 = vld [vmem:[%s1529] sm:$0xff]
      %1531 = vrot.lane.b32.xlu0 %v1470, 122
      %v1532 = vpop.permute.xlu0 %1531
      %1533 = vrot.lane.b32.xlu0 %v1473, 122
      %v1534 = vpop.permute.xlu0 %1533
      %v1535 = vsel %vm1433, %v1532, %v1534
      %v1538 = vsel %vm1482, %v1530, 0
      %1540 = vmatpush.msra.mxu0 0.0
      %1541 = vmatpush.msra.mxu0 0.0
      %1542 = vmatpush.msra.mxu0 0.0
      %1543 = vmatpush.msra.mxu0 0.0
      %1544 = vmatpush.msra.mxu0 0.0
      %1545 = vmatpush.msra.mxu0 0.0
      %1546 = vmatpush.msra.mxu0 0.0
      %1547 = vmatpush.msra.mxu0 0.0
      %1548 = vmatpush.msra.mxu0 0.0
      %1549 = vmatpush.msra.mxu0 0.0
      %1550 = vmatpush.msra.mxu0 0.0
      %1551 = vmatpush.msra.mxu0 0.0
      %1552 = vmatpush.msra.mxu0 0.0
      %1553 = vmatpush.msra.mxu0 0.0
      %1554 = vmatpush.msra.mxu0 0.0
      %1555 = vmatpush.msra.mxu0 %v1535
      %1556 = vmatmul.f32.gmra.mxu0 %v1538
      %v1557 = vpop.f32.mrf.mxu0
      %v1558 = vadd.f32 0.0, %v1557
      %1559 = vdwg.mxu0
      %v1560 = vadd.f32 %v1527, %v1558
      %v1561 = vld [vmem:[%s5] sm:$0xff]
      %1563 = vset.pattern.permute.xlu0 0
      %1564 = vperm.xlu0 %1563, %v1561
      %v1565 = vpop.permute.xlu0 %1564
      %v1567 = vadd.f32 %v1560, %v1565
      %1568 = vst [vmem:[%s386] sm:$0xff] %v1567
      %p1569 = scmp.lt.s32.totalorder %s21, 1
      %s1570 = scalar_select %p1569, %s21, 1
      %p1571 = scmp.lt.s32.totalorder %s22, 2
      %s1572 = scalar_select %p1571, %s22, 2
      %s1573 = smul.addr %s1570, 3
      %s1574 = sadd.s32 %s1572, %s1573
      %s1575 = smul.addr %s1574, 8
      %s1576 = scalar_lea.vmem %s6, %s1575
      // Predicated region
      $region69: #{amp_layer_forward.2} parent=43 // pred_check
        %p1577 = pneg %p208
      $region70: #{amp_layer_forward.2} parent=43 // pred_check_branch
        %1579 = sbr.rel (%p1577) target = $region72
      $region71: #{amp_layer_forward.2} parent=43 // pred_region
        _
      $region72: #{amp_layer_forward.2} parent=43 // pred_fallthru
        _
    $region44: #{amp_layer_forward.2} parent=5 // pred_fallthru
      _
    %p1580 = scmp.le.s32.totalorder 2, %s12
    // Predicated region
    $region73: #{amp_layer_forward.2} parent=5 // pred_check
      %p1581 = pneg %p1580
    $region74: #{amp_layer_forward.2} parent=5 // pred_check_branch
      %1583 = sbr.rel (%p1581) target = $region76
    $region75: #{amp_layer_forward.2} parent=5 // pred_region
      %s1584 = ssub.s32 %s12, 2
      // Predicated region
      $region77: #{amp_layer_forward.2} parent=75 // pred_check
        %p1585 = pneg %p214
      $region78: #{amp_layer_forward.2} parent=75 // pred_check_branch
        %1587 = sbr.rel (%p1585) target = $region80
      $region79: #{amp_layer_forward.2} parent=75 // pred_region
        %p1588 = scmp.lt.s32.totalorder %s23, 1
        %s1589 = scalar_select %p1588, %s23, 1
        %p1590 = scmp.lt.s32.totalorder %s24, 2
        %s1591 = scalar_select %p1590, %s24, 2
        %s1592 = smul.addr %s1589, 3
        %s1593 = sadd.s32 %s1591, %s1592
        %s1594 = smul.addr %s1593, 8
        %s1595 = scalar_lea.vmem %s6, %s1594
      $region80: #{amp_layer_forward.2} parent=75 // pred_fallthru
        _
    $region76: #{amp_layer_forward.2} parent=5 // pred_fallthru
      _
  $region6: #{amp_layer_forward.2} parent=0 // loop_footer
    %s16 = sadd.s32 1, %s12
  $region7: #{amp_layer_forward.2} parent=0 // loop_footer_branch
    %11 = sbr.rel target = $region3
  $region8: #{amp_layer_forward.2} parent=0 // loop_exit
    _

// kernel: amp_layer_forward.3
$region0: #{amp_layer_forward.3}
  #allocation0 [shape = 'u32[]', space=smem, size = 0x4, offset = 0x4, fixed_abs, tag = 'smem constant byte address 0x4 - core index']
  #allocation1 [shape = 'u32[72,128]{1,0:T(1,128)}', space=vmem, size = 0x9000, scoped, tag = 'internal scratch']
  #allocation2 [shape = 'f32[8,142]{1,0:T(8,128)}', space=vmem, size = 0x2000, scoped, tag = 'scratch operand']
  #allocation3 [shape = 'f32[8,136]{1,0:T(8,128)}', space=vmem, size = 0x2000, scoped, tag = 'scratch operand']
  #allocation4 [shape = 'f32[8,136]{1,0:T(8,128)}', space=vmem, size = 0x2000, scoped, tag = 'scratch operand']
  #allocation5 [shape = 'f32[8,130]{1,0:T(8,128)}', space=vmem, size = 0x2000, scoped, tag = 'scratch operand']
  %s0 = inlined_call_operand.vmem [shape: f32[2,8,384], index: 0, kind: input, shape index: {}, may-alias: {0,1,2}]
  %s1 = inlined_call_operand.vmem [shape: f32[2,8,384], index: 1, kind: input, shape index: {}, may-alias: {0,1,2}]
  %s2 = inlined_call_operand.vmem [shape: f32[2,8,384], index: 2, kind: input, shape index: {}, may-alias: {0,1,2}]
  %s3 = inlined_call_operand.vmem [shape: f32[8,2], index: 3, kind: input, shape index: {}]
  %s4 = inlined_call_operand.vmem [shape: f32[3,8,8], index: 4, kind: input, shape index: {}]
  %s5 = inlined_call_operand.vmem [shape: f32[8,1], index: 5, kind: input, shape index: {}]
  %s6 = inlined_call_operand.vmem [shape: f32[2,8,384], index: 6, kind: input, shape index: {}]
  %s7 = inlined_call_operand.hbm [shape: f32[2,8,384], index: 7, kind: output, shape index: {}]
  %s8 = sld [smem:[#allocation0]]
  $region85: #{amp_layer_forward.3} parent=0
    _
  %s10 = ssub.s32 1, %s8
  %s11 = scalar_select 0, %s10, %s8
  $region1: #{amp_layer_forward.3} parent=0
    #allocation6 [shape = 'u8[8192]{0}', space=vmem, size = 0x2000, scoped, tag = 'output window, operand 0']
    #allocation7 [shape = 's32[2]{0}', space=sflag, size = 0x8, scoped, tag = 'scoped memory for amp_layer_forward.3']
    %12 = vsyncpa [#allocation7], 0
    %s13 = scalar_lea.sflag [#allocation7], 1
    %14 = vsyncpa %s13, 0
    loop: start=0, step=1, limit=8
    $region2: #{amp_layer_forward.3} parent=1 // loop_pre_header
      _
    $region3: #{amp_layer_forward.3} parent=1 // loop_header
      %s16 = sphi 0, %s20
      %p17 = scmp.ge.s32.totalorder %s16, 8
      %s23 = sphi 0, %s35
      %s24 = sphi 0, %s31
      %s25 = sphi 0, %s23
      %s26 = sphi 0, %s24
      %s27 = sphi 0, %s25
      %s28 = sphi 0, %s26
      %s46 = sphi 0, %s48
      %s49 = sphi 0, %s46
      %s50 = sphi 0, %s49
      %s66 = sphi 0, %s50
      %s74 = sphi 0, %s76
      %s77 = sphi 0, %s74
      %s78 = sphi 0, %s77
      %s94 = sphi 0, %s78
      %s108 = sphi 0, %s110
      %s111 = sphi 0, %s108
      %s112 = sphi 0, %s111
      %s128 = sphi 0, %s112
      %s132 = sphi 0, %s132
      %s134 = sphi 0, %s132
      %s135 = sphi 0, %s134
      %s149 = sphi 0, %s135
      %s153 = sphi 0, %s153
      %s155 = sphi 0, %s153
      %s156 = sphi 0, %s155
      %s170 = sphi 0, %s156
      %s174 = sphi 0, %s174
      %s176 = sphi 0, %s174
      %s177 = sphi 0, %s176
      %s191 = sphi 0, %s177
      %s199 = sphi 0, %s201
      %s202 = sphi 0, %s199
      %s203 = sphi 0, %s202
      %s219 = sphi 0, %s203
      %s227 = sphi 0, %s229
      %s230 = sphi 0, %s227
      %s231 = sphi 0, %s230
      %s247 = sphi 0, %s231
    $region4: #{amp_layer_forward.3} parent=1 // loop_header_branch
      %19 = sbr.rel (%p17) target = $region8
    $region5: #{amp_layer_forward.3} parent=1 // loop_body
      %s21 = ssub.s32 %s16, 1
      %s22 = ssub.s32 %s16, 2
      %s29 = sadd.s32 1, %s24
      %p30 = scmp.ge.s32.totalorder %s29, 3
      %s31 = scalar_select %p30, 0, %s29
      %s32 = sadd.s32 1, %s23
      %s33 = scalar_select %p30, %s32, %s23
      %p34 = scmp.ge.s32.totalorder %s33, 2
      %s35 = scalar_select %p34, 0, %s33
      %s36 = ssub.s32 %s24, 1
      %p37 = scmp.gt.s32.totalorder %s36, 0
      %s38 = scalar_select %p37, %s36, 0
      %s39 = ssub.s32 %s31, 1
      %p40 = scmp.gt.s32.totalorder %s39, 0
      %s41 = scalar_select %p40, %s39, 0
      %s42 = ssub.s32 %s23, %s35
      %s43 = ssub.s32 %s38, %s41
      %s44 = sor.u32 %s42, %s43
      %p45 = scmp.eq.s32.totalorder %s44, 0
      %s47 = sadd.s32 %s46, 1
      %s48 = scalar_select %p45, %s46, %s47
      %p51 = pneg %p45
      %p52 = scmp.eq.s32.totalorder %s16, 5
      %p53 = por %p51, %p52
      %p54 = scmp.ne.s32.totalorder %s46, %s49
      %p55 = scmp.eq.s32.totalorder %s16, 0
      %p56 = por %p54, %p55
      %p57 = scmp.ne.s32.totalorder %s46, %s49
      %p58 = scmp.eq.s32.totalorder %s21, 5
      %p59 = por %p57, %p58
      %p60 = scmp.ne.s32.totalorder %s49, %s50
      %p61 = scmp.eq.s32.totalorder %s21, 0
      %p62 = por %p60, %p61
      %p63 = scmp.ne.s32.totalorder %s49, %s50
      %p64 = scmp.eq.s32.totalorder %s22, 5
      %p65 = por %p63, %p64
      %p67 = scmp.ne.s32.totalorder %s50, %s66
      %p68 = scmp.eq.s32.totalorder %s22, 0
      %p69 = por %p67, %p68
      %s70 = ssub.s32 %s23, %s35
      %s71 = ssub.s32 %s24, %s31
      %s72 = sor.u32 %s70, %s71
      %p73 = scmp.eq.s32.totalorder %s72, 0
      %s75 = sadd.s32 %s74, 1
      %s76 = scalar_select %p73, %s74, %s75
      %p79 = pneg %p73
      %p80 = scmp.eq.s32.totalorder %s16, 5
      %p81 = por %p79, %p80
      %p82 = scmp.ne.s32.totalorder %s74, %s77
      %p83 = scmp.eq.s32.totalorder %s16, 0
      %p84 = por %p82, %p83
      %p85 = scmp.ne.s32.totalorder %s74, %s77
      %p86 = scmp.eq.s32.totalorder %s21, 5
      %p87 = por %p85, %p86
      %p88 = scmp.ne.s32.totalorder %s77, %s78
      %p89 = scmp.eq.s32.totalorder %s21, 0
      %p90 = por %p88, %p89
      %p91 = scmp.ne.s32.totalorder %s77, %s78
      %p92 = scmp.eq.s32.totalorder %s22, 5
      %p93 = por %p91, %p92
      %p95 = scmp.ne.s32.totalorder %s78, %s94
      %p96 = scmp.eq.s32.totalorder %s22, 0
      %p97 = por %p95, %p96
      %s98 = sadd.s32 %s24, 1
      %p99 = scmp.lt.s32.totalorder %s98, 2
      %s100 = scalar_select %p99, %s98, 2
      %s101 = sadd.s32 %s31, 1
      %p102 = scmp.lt.s32.totalorder %s101, 2
      %s103 = scalar_select %p102, %s101, 2
      %s104 = ssub.s32 %s23, %s35
      %s105 = ssub.s32 %s100, %s103
      %s106 = sor.u32 %s104, %s105
      %p107 = scmp.eq.s32.totalorder %s106, 0
      %s109 = sadd.s32 %s108, 1
      %s110 = scalar_select %p107, %s108, %s109
      %p113 = pneg %p107
      %p114 = scmp.eq.s32.totalorder %s16, 5
      %p115 = por %p113, %p114
      %p116 = scmp.ne.s32.totalorder %s108, %s111
      %p117 = scmp.eq.s32.totalorder %s16, 0
      %p118 = por %p116, %p117
      %p119 = scmp.ne.s32.totalorder %s108, %s111
      %p120 = scmp.eq.s32.totalorder %s21, 5
      %p121 = por %p119, %p120
      %p122 = scmp.ne.s32.totalorder %s111, %s112
      %p123 = scmp.eq.s32.totalorder %s21, 0
      %p124 = por %p122, %p123
      %p125 = scmp.ne.s32.totalorder %s111, %s112
      %p126 = scmp.eq.s32.totalorder %s22, 5
      %p127 = por %p125, %p126
      %p129 = scmp.ne.s32.totalorder %s112, %s128
      %p130 = scmp.eq.s32.totalorder %s22, 0
      %p131 = por %p129, %p130
      %s133 = sadd.s32 %s132, 1
      %p136 = scmp.eq.s32.totalorder %s16, 5
      %p137 = scmp.ne.s32.totalorder %s132, %s134
      %p138 = scmp.eq.s32.totalorder %s16, 0
      %p139 = por %p137, %p138
      %p140 = scmp.ne.s32.totalorder %s132, %s134
      %p141 = scmp.eq.s32.totalorder %s21, 5
      %p142 = por %p140, %p141
      %p143 = scmp.ne.s32.totalorder %s134, %s135
      %p144 = scmp.eq.s32.totalorder %s21, 0
      %p145 = por %p143, %p144
      %p146 = scmp.ne.s32.totalorder %s134, %s135
      %p147 = scmp.eq.s32.totalorder %s22, 5
      %p148 = por %p146, %p147
      %p150 = scmp.ne.s32.totalorder %s135, %s149
      %p151 = scmp.eq.s32.totalorder %s22, 0
      %p152 = por %p150, %p151
      %s154 = sadd.s32 %s153, 1
      %p157 = scmp.eq.s32.totalorder %s16, 5
      %p158 = scmp.ne.s32.totalorder %s153, %s155
      %p159 = scmp.eq.s32.totalorder %s16, 0
      %p160 = por %p158, %p159
      %p161 = scmp.ne.s32.totalorder %s153, %s155
      %p162 = scmp.eq.s32.totalorder %s21, 5
      %p163 = por %p161, %p162
      %p164 = scmp.ne.s32.totalorder %s155, %s156
      %p165 = scmp.eq.s32.totalorder %s21, 0
      %p166 = por %p164, %p165
      %p167 = scmp.ne.s32.totalorder %s155, %s156
      %p168 = scmp.eq.s32.totalorder %s22, 5
      %p169 = por %p167, %p168
      %p171 = scmp.ne.s32.totalorder %s156, %s170
      %p172 = scmp.eq.s32.totalorder %s22, 0
      %p173 = por %p171, %p172
      %s175 = sadd.s32 %s174, 1
      %p178 = scmp.eq.s32.totalorder %s16, 5
      %p179 = scmp.ne.s32.totalorder %s174, %s176
      %p180 = scmp.eq.s32.totalorder %s16, 0
      %p181 = por %p179, %p180
      %p182 = scmp.ne.s32.totalorder %s174, %s176
      %p183 = scmp.eq.s32.totalorder %s21, 5
      %p184 = por %p182, %p183
      %p185 = scmp.ne.s32.totalorder %s176, %s177
      %p186 = scmp.eq.s32.totalorder %s21, 0
      %p187 = por %p185, %p186
      %p188 = scmp.ne.s32.totalorder %s176, %s177
      %p189 = scmp.eq.s32.totalorder %s22, 5
      %p190 = por %p188, %p189
      %p192 = scmp.ne.s32.totalorder %s177, %s191
      %p193 = scmp.eq.s32.totalorder %s22, 0
      %p194 = por %p192, %p193
      %s195 = ssub.s32 %s23, %s35
      %s196 = ssub.s32 %s24, %s31
      %s197 = sor.u32 %s195, %s196
      %p198 = scmp.eq.s32.totalorder %s197, 0
      %s200 = sadd.s32 %s199, 1
      %s201 = scalar_select %p198, %s199, %s200
      %p204 = pneg %p198
      %p205 = scmp.eq.s32.totalorder %s16, 5
      %p206 = por %p204, %p205
      %p207 = scmp.ne.s32.totalorder %s199, %s202
      %p208 = scmp.eq.s32.totalorder %s16, 0
      %p209 = por %p207, %p208
      %p210 = scmp.ne.s32.totalorder %s199, %s202
      %p211 = scmp.eq.s32.totalorder %s21, 5
      %p212 = por %p210, %p211
      %p213 = scmp.ne.s32.totalorder %s202, %s203
      %p214 = scmp.eq.s32.totalorder %s21, 0
      %p215 = por %p213, %p214
      %p216 = scmp.ne.s32.totalorder %s202, %s203
      %p217 = scmp.eq.s32.totalorder %s22, 5
      %p218 = por %p216, %p217
      %p220 = scmp.ne.s32.totalorder %s203, %s219
      %p221 = scmp.eq.s32.totalorder %s22, 0
      %p222 = por %p220, %p221
      %s223 = ssub.s32 %s23, %s35
      %s224 = ssub.s32 %s24, %s31
      %s225 = sor.u32 %s223, %s224
      %p226 = scmp.eq.s32.totalorder %s225, 0
      %s228 = sadd.s32 %s227, 1
      %s229 = scalar_select %p226, %s227, %s228
      %p232 = pneg %p226
      %p233 = scmp.eq.s32.totalorder %s16, 5
      %p234 = por %p232, %p233
      %p235 = scmp.ne.s32.totalorder %s227, %s230
      %p236 = scmp.eq.s32.totalorder %s16, 0
      %p237 = por %p235, %p236
      %p238 = scmp.ne.s32.totalorder %s227, %s230
      %p239 = scmp.eq.s32.totalorder %s21, 5
      %p240 = por %p238, %p239
      %p241 = scmp.ne.s32.totalorder %s230, %s231
      %p242 = scmp.eq.s32.totalorder %s21, 0
      %p243 = por %p241, %p242
      %p244 = scmp.ne.s32.totalorder %s230, %s231
      %p245 = scmp.eq.s32.totalorder %s22, 5
      %p246 = por %p244, %p245
      %p248 = scmp.ne.s32.totalorder %s231, %s247
      %p249 = scmp.eq.s32.totalorder %s22, 0
      %p250 = por %p248, %p249
      %p251 = scmp.le.s32.totalorder 1, %s16
      %p252 = scmp.lt.s32.totalorder %s16, 7
      %p253 = pnand %p251, %p252
      %p254 = pneg %p253
      // Predicated region
      $region9: #{amp_layer_forward.3} parent=5 // pred_check
        _
      $region10: #{amp_layer_forward.3} parent=5 // pred_check_branch
        %256 = sbr.rel (%p253) target = $region12
      $region11: #{amp_layer_forward.3} parent=5 // pred_region
        %s257 = ssub.s32 %s16, 1
        // Predicated region
        $region13: #{amp_layer_forward.3} parent=11 // pred_check
          %p258 = pneg %p145
        $region14: #{amp_layer_forward.3} parent=11 // pred_check_branch
          %260 = sbr.rel (%p258) target = $region16
        $region15: #{amp_layer_forward.3} parent=11 // pred_region
          _
        $region16: #{amp_layer_forward.3} parent=11 // pred_fallthru
          _
        // Predicated region
        $region17: #{amp_layer_forward.3} parent=11 // pred_check
          %p261 = pneg %p166
        $region18: #{amp_layer_forward.3} parent=11 // pred_check_branch
          %263 = sbr.rel (%p261) target = $region20
        $region19: #{amp_layer_forward.3} parent=11 // pred_region
          _
        $region20: #{amp_layer_forward.3} parent=11 // pred_fallthru
          _
        // Predicated region
        $region21: #{amp_layer_forward.3} parent=11 // pred_check
          %p264 = pneg %p187
        $region22: #{amp_layer_forward.3} parent=11 // pred_check_branch
          %266 = sbr.rel (%p264) target = $region24
        $region23: #{amp_layer_forward.3} parent=11 // pred_region
          _
        $region24: #{amp_layer_forward.3} parent=11 // pred_fallthru
          _
      $region12: #{amp_layer_forward.3} parent=5 // pred_fallthru
        _
      %p267 = scmp.lt.s32.totalorder %s16, 6
      // Predicated region
      $region25: #{amp_layer_forward.3} parent=5 // pred_check
        %p268 = pneg %p267
      $region26: #{amp_layer_forward.3} parent=5 // pred_check_branch
        %270 = sbr.rel (%p268) target = $region28
      $region27: #{amp_layer_forward.3} parent=5 // pred_region
        // Predicated region
        $region29: #{amp_layer_forward.3} parent=27 // pred_check
          %p271 = pneg %p56
        $region30: #{amp_layer_forward.3} parent=27 // pred_check_branch
          %273 = sbr.rel (%p271) target = $region32
        $region31: #{amp_layer_forward.3} parent=27 // pred_region
          %s274 = ssub.s32 %s24, 1
          %p275 = scmp.gt.s32.totalorder %s274, 0
          %s276 = scalar_select %p275, %s274, 0
          %p277 = scmp.lt.s32.totalorder %s23, 1
          %s278 = scalar_select %p277, %s23, 1
          %p279 = scmp.lt.s32.totalorder %s276, 2
          %s280 = scalar_select %p279, %s276, 2
          %s281 = smul.addr %s278, 3
          %s282 = sadd.s32 %s280, %s281
          %s283 = smul.addr %s282, 8
          %s284 = scalar_lea.vmem %s0, %s283
          %s285 = ssub.s32 %s24, 1
          %p286 = scmp.gt.s32.totalorder %s285, 0
          %s287 = scalar_select %p286, %s285, 0
        $region32: #{amp_layer_forward.3} parent=27 // pred_fallthru
          _
        // Predicated region
        $region33: #{amp_layer_forward.3} parent=27 // pred_check
          %p288 = pneg %p84
        $region34: #{amp_layer_forward.3} parent=27 // pred_check_branch
          %290 = sbr.rel (%p288) target = $region36
        $region35: #{amp_layer_forward.3} parent=27 // pred_region
          %p291 = scmp.lt.s32.totalorder %s23, 1
          %s292 = scalar_select %p291, %s23, 1
          %p293 = scmp.lt.s32.totalorder %s24, 2
          %s294 = scalar_select %p293, %s24, 2
          %s295 = smul.addr %s292, 3
          %s296 = sadd.s32 %s294, %s295
          %s297 = smul.addr %s296, 8
          %s298 = scalar_lea.vmem %s1, %s297
        $region36: #{amp_layer_forward.3} parent=27 // pred_fallthru
          _
        // Predicated region
        $region37: #{amp_layer_forward.3} parent=27 // pred_check
          %p299 = pneg %p118
        $region38: #{amp_layer_forward.3} parent=27 // pred_check_branch
          %301 = sbr.rel (%p299) target = $region40
        $region39: #{amp_layer_forward.3} parent=27 // pred_region
          %s302 = sadd.s32 %s24, 1
          %p303 = scmp.lt.s32.totalorder %s302, 2
          %s304 = scalar_select %p303, %s302, 2
          %p305 = scmp.lt.s32.totalorder %s23, 1
          %s306 = scalar_select %p305, %s23, 1
          %p307 = scmp.lt.s32.totalorder %s304, 2
          %s308 = scalar_select %p307, %s304, 2
          %s309 = smul.addr %s306, 3
          %s310 = sadd.s32 %s308, %s309
          %s311 = smul.addr %s310, 8
          %s312 = scalar_lea.vmem %s2, %s311
          %s313 = sadd.s32 %s24, 1
          %p314 = scmp.lt.s32.totalorder %s313, 2
          %s315 = scalar_select %p314, %s313, 2
        $region40: #{amp_layer_forward.3} parent=27 // pred_fallthru
          _
        // Predicated region
        $region41: #{amp_layer_forward.3} parent=27 // pred_check
          %p316 = pneg %p209
        $region42: #{amp_layer_forward.3} parent=27 // pred_check_branch
          %318 = sbr.rel (%p316) target = $region44
        $region43: #{amp_layer_forward.3} parent=27 // pred_region
          %p319 = scmp.lt.s32.totalorder %s23, 1
          %s320 = scalar_select %p319, %s23, 1
          %p321 = scmp.lt.s32.totalorder %s24, 2
          %s322 = scalar_select %p321, %s24, 2
          %s323 = smul.addr %s320, 3
          %s324 = sadd.s32 %s322, %s323
          %s325 = smul.addr %s324, 8
          %s326 = scalar_lea.vmem %s6, %s325
        $region44: #{amp_layer_forward.3} parent=27 // pred_fallthru
          _
      $region28: #{amp_layer_forward.3} parent=5 // pred_fallthru
        _
      %p327 = scmp.le.s32.totalorder 1, %s16
      %p328 = scmp.lt.s32.totalorder %s16, 7
      %p329 = pnand %p327, %p328
      %p330 = pneg %p329
      // Predicated region
      $region45: #{amp_layer_forward.3} parent=5 // pred_check
        _
      $region46: #{amp_layer_forward.3} parent=5 // pred_check_branch
        %332 = sbr.rel (%p329) target = $region48
      $region47: #{amp_layer_forward.3} parent=5 // pred_region
        %s333 = ssub.s32 %s16, 1
        %s334 = ssub.s32 %s26, 1
        %p335 = scmp.gt.s32.totalorder %s334, 0
        %s336 = scalar_select %p335, %s334, 0
        %p337 = scmp.lt.s32.totalorder %s25, 1
        %s338 = scalar_select %p337, %s25, 1
        %p339 = scmp.lt.s32.totalorder %s336, 2
        %s340 = scalar_select %p339, %s336, 2
        %s341 = smul.addr %s338, 3
        %s342 = sadd.s32 %s340, %s341
        %s343 = smul.addr %s342, 8
        %s344 = scalar_lea.vmem %s0, %s343
        %p345 = pneg %p62
        %p346 = pneg %p59
        %p347 = scmp.lt.s32.totalorder %s25, 1
        %s348 = scalar_select %p347, %s25, 1
        %p349 = scmp.lt.s32.totalorder %s26, 2
        %s350 = scalar_select %p349, %s26, 2
        %s351 = smul.addr %s348, 3
        %s352 = sadd.s32 %s350, %s351
        %s353 = smul.addr %s352, 8
        %s354 = scalar_lea.vmem %s1, %s353
        %p355 = pneg %p90
        %p356 = pneg %p87
        %s357 = sadd.s32 %s26, 1
        %p358 = scmp.lt.s32.totalorder %s357, 2
        %s359 = scalar_select %p358, %s357, 2
        %p360 = scmp.lt.s32.totalorder %s25, 1
        %s361 = scalar_select %p360, %s25, 1
        %p362 = scmp.lt.s32.totalorder %s359, 2
        %s363 = scalar_select %p362, %s359, 2
        %s364 = smul.addr %s361, 3
        %s365 = sadd.s32 %s363, %s364
        %s366 = smul.addr %s365, 8
        %s367 = scalar_lea.vmem %s2, %s366
        %p368 = pneg %p124
        %p369 = pneg %p121
        %p370 = pneg %p145
        %p371 = pneg %p142
        %p372 = pneg %p166
        %p373 = pneg %p163
        %p374 = pneg %p187
        %p375 = pneg %p184
        %p376 = scmp.lt.s32.totalorder %s25, 1
        %s377 = scalar_select %p376, %s25, 1
        %p378 = scmp.lt.s32.totalorder %s26, 2
        %s379 = scalar_select %p378, %s26, 2
        %s380 = smul.addr %s377, 3
        %s381 = sadd.s32 %s379, %s380
        %s382 = smul.addr %s381, 8
        %s383 = scalar_lea.vmem %s6, %s382
        %p384 = pneg %p215
        %p385 = pneg %p212
        %p386 = pneg %p243
        %p387 = pneg %p240
        %s388 = sand.u32 %s230, 1
        %s389 = scalar_lea.sflag [#allocation7], %s388
        %s390 = sand.u32 %s230, 1
        %s391 = smul.addr %s390, 8
        %s392 = scalar_lea.vmem [#allocation6], %s391
        %s393 = ssub.s32 %s26, 1
        %p394 = scmp.gt.s32.totalorder %s393, 0
        %s395 = scalar_select %p394, %s393, 0
        %p396 = scmp.lt.s32.totalorder %s25, 1
        %s397 = scalar_select %p396, %s25, 1
        %p398 = scmp.lt.s32.totalorder %s395, 2
        %s399 = scalar_select %p398, %s395, 2
        %s400 = smul.addr %s397, 3
        %s401 = sadd.s32 %s399, %s400
        %s402 = smul.addr %s401, 8
        %s403 = scalar_lea.vmem %s0, %s402
        %s404 = ssub.s32 %s26, 1
        %p405 = scmp.gt.s32.totalorder %s404, 0
        %s406 = scalar_select %p405, %s404, 0
        %p407 = scmp.lt.s32.totalorder %s25, 1
        %s408 = scalar_select %p407, %s25, 1
        %p409 = scmp.lt.s32.totalorder %s26, 2
        %s410 = scalar_select %p409, %s26, 2
        %s411 = smul.addr %s408, 3
        %s412 = sadd.s32 %s410, %s411
        %s413 = smul.addr %s412, 8
        %s414 = scalar_lea.vmem %s1, %s413
        %s415 = sadd.s32 %s26, 1
        %p416 = scmp.lt.s32.totalorder %s415, 2
        %s417 = scalar_select %p416, %s415, 2
        %p418 = scmp.lt.s32.totalorder %s25, 1
        %s419 = scalar_select %p418, %s25, 1
        %p420 = scmp.lt.s32.totalorder %s417, 2
        %s421 = scalar_select %p420, %s417, 2
        %s422 = smul.addr %s419, 3
        %s423 = sadd.s32 %s421, %s422
        %s424 = smul.addr %s423, 8
        %s425 = scalar_lea.vmem %s2, %s424
        %s426 = sadd.s32 %s26, 1
        %p427 = scmp.lt.s32.totalorder %s426, 2
        %s428 = scalar_select %p427, %s426, 2
        %p429 = scmp.lt.s32.totalorder %s25, 1
        %s430 = scalar_select %p429, %s25, 1
        %p431 = scmp.lt.s32.totalorder %s26, 2
        %s432 = scalar_select %p431, %s26, 2
        %s433 = smul.addr %s430, 3
        %s434 = sadd.s32 %s432, %s433
        %s435 = smul.addr %s434, 8
        %s436 = scalar_lea.vmem %s6, %s435
        %s437 = smul.u32 %s26, 128
        %s438 = sadd.s32 %s437, 134
        %p439 = scmp.ge.s32.totalorder %s438, 300
        %v440 = vld [vmem:[%s403] sm:$0xff]
        %v441 = vld [vmem:[%s414] sm:$0xff]
        %v442 = vld [vmem:[%s425] sm:$0xff]
        %444 = vrot.lane.b32.xlu0 %v440, 7
        %v445 = vpop.permute.xlu0 %444
        %448 = vrot.lane.b32.xlu0 %v441, 7
        %v449 = vpop.permute.xlu0 %448
        %452 = vrot.lane.b32.xlu0 %v442, 7
        %v453 = vpop.permute.xlu0 %452
        %vm455 = vcmask 56320
        %v456 = vsel %vm455, %v445, %v449
        %v457 = vsel %vm455, %v449, %v453
        %458 = vst [vmem:[#allocation2] sm:$0xff] %v456
        %vm459 = vcmask 113664
        %460 = vst.msk [vmem:[#allocation2 + $0x8] sm:$0xff] %vm459, %v457
        %p461 = scmp.eq.s32.totalorder %s26, 0
        // Predicated region
        $region49: #{amp_layer_forward.3} parent=47 // pred_check
          %p462 = pneg %p461
        $region50: #{amp_layer_forward.3} parent=47 // pred_check_branch
          %464 = sbr.rel (%p462) target = $region52
        $region51: #{amp_layer_forward.3} parent=47 // pred_region
          %v465 = vld [vmem:[#allocation2] sm:$0xff]
          %467 = vset.pattern.permute.xlu0 7
          %468 = vperm.xlu0 %467, %v465
          %v469 = vpop.permute.xlu0 %468
          %471 = vst.msk [vmem:[#allocation2] sm:$0xff] %vm455, %v469
        $region52: #{amp_layer_forward.3} parent=47 // pred_fallthru
          _
        // Predicated region
        $region53: #{amp_layer_forward.3} parent=47 // pred_check
          %p472 = pneg %p439
        $region54: #{amp_layer_forward.3} parent=47 // pred_check_branch
          %474 = sbr.rel (%p472) target = $region56
        $region55: #{amp_layer_forward.3} parent=47 // pred_region
          %s475 = ssub.s32 %s437, 7
          %v476 = vlaneseq
          %v477 = vand.u32 %v476, 127
          %v478 = vadd.s32 %v477, 128
          %v479 = vstv %s475
          %v480 = vadd.s32 %v479, %v477
          %v481 = vadd.s32 %v479, %v478
          %v482 = vld [vmem:[#allocation2] sm:$0xff]
          %v483 = vld [vmem:[#allocation2 + $0x8] sm:$0xff]
          %vm484 = vcmp.eq.s32.totalorder %v480, 299
          %vm485 = vcmp.eq.s32.totalorder %v481, 299
          %v486 = vsel %vm484, 1, 0
          %v487 = vsel %vm485, 1, 0
          %vm488 = vcmp.eq.s32.totalorder %v486, 1
          %vm489 = vcmp.eq.s32.totalorder %v487, 1
          %v490 = vsel %vm488, %v482, 0.0
          %v491 = vsel %vm489, %v483, 0.0
          %v492 = vsel %vm459, %v491, 0.0
          %v493 = vadd.f32 %v490, %v492
          %494 = vadd.xlane.f32.xlu0 %v493
          %v495 = vpop.xlane.xlu0 %494
          %vm496 = vcmp.gt.s32.totalorder %v480, 299
          %vm497 = vcmp.gt.s32.totalorder %v481, 299
          %v498 = vsel %vm496, 1, 0
          %v499 = vsel %vm497, 1, 0
          %vm500 = vcmp.eq.s32.totalorder %v498, 1
          %vm501 = vcmp.eq.s32.totalorder %v499, 1
          %v502 = vsel %vm500, %v495, %v482
          %v503 = vsel %vm501, %v495, %v483
          %504 = vst [vmem:[#allocation2] sm:$0xff] %v502
          %505 = vst.msk [vmem:[#allocation2 + $0x8] sm:$0xff] %vm459, %v503
        $region56: #{amp_layer_forward.3} parent=47 // pred_fallthru
          _
        %v506 = vld [vmem:[#allocation2] sm:$0xff]
        %v507 = vld [vmem:[#allocation2 + $0x8] sm:$0xff]
        %v508 = vmul.f32 %v506, 0.004057933
        %v509 = vmul.f32 %v507, 0.004057933
        %v510 = vmul.f32 %v506, 0.018778928
        %v511 = vmul.f32 %v507, 0.018778928
        %v512 = vmul.f32 %v506, -0.05108693
        %v513 = vmul.f32 %v507, -0.05108693
        %516 = vrot.lane.b32.xlu0 %v512, 127
        %v517 = vpop.permute.xlu0 %516
        %518 = vrot.lane.b32.xlu0 %v513, 127
        %v519 = vpop.permute.xlu0 %518
        %vm520 = vcmask 1039360
        %v521 = vsel %vm520, %v517, %v519
        %v524 = vadd.f32 %v508, %v521
        %v525 = vadd.f32 %v509, %v519
        %v526 = vmul.f32 %v506, -0.11531475
        %v527 = vmul.f32 %v507, -0.11531475
        %530 = vrot.lane.b32.xlu0 %v526, 127
        %v531 = vpop.permute.xlu0 %530
        %532 = vrot.lane.b32.xlu0 %v527, 127
        %v533 = vpop.permute.xlu0 %532
        %v534 = vsel %vm520, %v531, %v533
        %v537 = vadd.f32 %v510, %v534
        %v538 = vadd.f32 %v511, %v533
        %v539 = vmul.f32 %v506, 0.25714523
        %v540 = vmul.f32 %v507, 0.25714523
        %543 = vrot.lane.b32.xlu0 %v539, 126
        %v544 = vpop.permute.xlu0 %543
        %545 = vrot.lane.b32.xlu0 %v540, 126
        %v546 = vpop.permute.xlu0 %545
        %vm547 = vcmask 1031168
        %v548 = vsel %vm547, %v544, %v546
        %v551 = vadd.f32 %v524, %v548
        %v552 = vadd.f32 %v525, %v546
        %v553 = vmul.f32 %v506, 0.8864196
        %v554 = vmul.f32 %v507, 0.8864196
        %557 = vrot.lane.b32.xlu0 %v553, 126
        %v558 = vpop.permute.xlu0 %557
        %559 = vrot.lane.b32.xlu0 %v554, 126
        %v560 = vpop.permute.xlu0 %559
        %v561 = vsel %vm547, %v558, %v560
        %v564 = vadd.f32 %v537, %v561
        %v565 = vadd.f32 %v538, %v560
        %566 = vrot.lane.b32.xlu0 %v553, 125
        %v567 = vpop.permute.xlu0 %566
        %568 = vrot.lane.b32.xlu0 %v554, 125
        %v569 = vpop.permute.xlu0 %568
        %vm570 = vcmask 1022976
        %v571 = vsel %vm570, %v567, %v569
        %v574 = vadd.f32 %v551, %v571
        %v575 = vadd.f32 %v552, %v569
        %576 = vrot.lane.b32.xlu0 %v539, 125
        %v577 = vpop.permute.xlu0 %576
        %578 = vrot.lane.b32.xlu0 %v540, 125
        %v579 = vpop.permute.xlu0 %578
        %v580 = vsel %vm570, %v577, %v579
        %v583 = vadd.f32 %v564, %v580
        %v584 = vadd.f32 %v565, %v579
        %585 = vrot.lane.b32.xlu0 %v526, 124
        %v586 = vpop.permute.xlu0 %585
        %587 = vrot.lane.b32.xlu0 %v527, 124
        %v588 = vpop.permute.xlu0 %587
        %vm589 = vcmask 1014784
        %v590 = vsel %vm589, %v586, %v588
        %v593 = vadd.f32 %v574, %v590
        %v594 = vadd.f32 %v575, %v588
        %595 = vrot.lane.b32.xlu0 %v512, 124
        %v596 = vpop.permute.xlu0 %595
        %597 = vrot.lane.b32.xlu0 %v513, 124
        %v598 = vpop.permute.xlu0 %597
        %v599 = vsel %vm589, %v596, %v598
        %v602 = vadd.f32 %v583, %v599
        %v603 = vadd.f32 %v584, %v598
        %606 = vrot.lane.b32.xlu0 %v510, 123
        %v607 = vpop.permute.xlu0 %606
        %608 = vrot.lane.b32.xlu0 %v511, 123
        %v609 = vpop.permute.xlu0 %608
        %vm610 = vcmask 1006592
        %v611 = vsel %vm610, %v607, %v609
        %v614 = vadd.f32 %v593, %v611
        %v615 = vadd.f32 %v594, %v609
        %618 = vrot.lane.b32.xlu0 %v508, 123
        %v619 = vpop.permute.xlu0 %618
        %620 = vrot.lane.b32.xlu0 %v509, 123
        %v621 = vpop.permute.xlu0 %620
        %v622 = vsel %vm610, %v619, %v621
        %v625 = vadd.f32 %v602, %v622
        %v626 = vadd.f32 %v603, %v621
        %v627 = vld [vmem:[%s3] sm:$0xff]
        %629 = vset.pattern.permute.xlu0 0
        %630 = vperm.xlu0 %629, %v627
        %v631 = vpop.permute.xlu0 %630
        %v633 = vmul.f32 %v631, %v614
        %v634 = vmul.f32 %v631, %v615
        %v635 = vand.u32 2147483647, %v633
        %vm636 = vcmp.le.f32.partialorder %v635, 0.7853982
        %vm637 = vcmp.lt.s32.totalorder %v633, 0
        %v638 = vand.u32 %v633, 2139095040
        %v639 = vshrl.u32 %v638, 23
        %v640 = vsub.s32 %v639, 127
        %v641 = vand.u32 2147483647, %v633
        %v642 = vand.u32 %v641, 8388607
        %v643 = vor.u32 %v642, 8388608
        %v644 = vsub.s32 0, %v643
        %v645 = vadd.s32 %v640, 1
        %vm646 = vcmp.gt.s32.totalorder %v645, 0
        %v647 = vsel %vm646, %v645, 0
        %v648 = vshrl.u32 %v647, 5
        %v649 = vand.u32 %v647, 31
        %v650 = vsub.s32 32, %v649
        %v651 = vshrl.u32 683565275, %v650
        %v652 = vshll.u32 683565275, %v649
        %v653 = vshrl.u32 2475754826, %v650
        %v654 = vor.u32 %v652, %v653
        %v655 = vshll.u32 2475754826, %v649
        %v656 = vshrl.u32 2131351028, %v650
        %v657 = vor.u32 %v655, %v656
        %v658 = vshll.u32 2131351028, %v649
        %v659 = vshrl.u32 2102212464, %v650
        %v660 = vor.u32 %v658, %v659
        %v661 = vshll.u32 2102212464, %v649
        %v662 = vshrl.u32 920167782, %v650
        %v663 = vor.u32 %v661, %v662
        %v664 = vshll.u32 920167782, %v649
        %v665 = vshrl.u32 1326507024, %v650
        %v666 = vor.u32 %v664, %v665
        %vm667 = vcmp.lt.s32.totalorder %v648, 1
        %vm668 = vcmp.lt.s32.totalorder %v648, 2
        %vm669 = vcmp.lt.s32.totalorder %v648, 3
        %vm670 = vcmp.lt.s32.totalorder %v648, 4
        %v671 = vsel %vm667, %v651, %v654
        %v672 = vsel %vm670, %v660, 2102212464
        %v673 = vsel %vm669, %v657, %v672
        %v674 = vsel %vm668, %v671, %v673
        %v675 = vsel %vm667, %v654, %v657
        %v676 = vsel %vm670, %v663, 920167782
        %v677 = vsel %vm669, %v660, %v676
        %v678 = vsel %vm668, %v675, %v677
        %v679 = vsel %vm667, %v657, %v660
        %v680 = vsel %vm670, %v666, 1326507024
        %v681 = vsel %vm669, %v663, %v680
        %v682 = vsel %vm668, %v679, %v681
        %v683 = vshll.u32 %v643, 8
        %v684 = vand.u32 %v683, 65535
        %v685 = vshrl.u32 %v683, 16
        %v686 = vand.u32 %v682, 65535
        %v687 = vshrl.u32 %v682, 16
        %v688 = vmul.u32 %v684, %v686
        %v689 = vmul.u32 %v684, %v687
        %v690 = vmul.u32 %v685, %v686
        %v691 = vmul.u32 %v685, %v687
        %v692 = vshll.u32 %v689, 16
        %v693 = vshrl.u32 %v689, 16
        %v694 = vshll.u32 %v690, 16
        %v695 = vshrl.u32 %v690, 16
        %vm696 = vc.u32 %v688, %v692
        %v697 = vsel %vm696, 1, 0
        %v698 = vadd.s32 %v688, %v692
        %v699 = vadd.s32 %v691, %v697
        %vm700 = vc.u32 %v698, %v694
        %v701 = vsel %vm700, 1, 0
        %v702 = vadd.s32 %v698, %v694
        %v703 = vadd.s32 %v699, %v701
        %v704 = vadd.s32 %v703, %v693
        %v705 = vadd.s32 %v704, %v695
        %v706 = vand.u32 %v683, 65535
        %v707 = vshrl.u32 %v683, 16
        %v708 = vand.u32 %v678, 65535
        %v709 = vshrl.u32 %v678, 16
        %v710 = vmul.u32 %v706, %v708
        %v711 = vmul.u32 %v706, %v709
        %v712 = vmul.u32 %v707, %v708
        %v713 = vmul.u32 %v707, %v709
        %v714 = vshll.u32 %v711, 16
        %v715 = vshrl.u32 %v711, 16
        %v716 = vshll.u32 %v712, 16
        %v717 = vshrl.u32 %v712, 16
        %vm718 = vc.u32 %v710, %v714
        %v719 = vsel %vm718, 1, 0
        %v720 = vadd.s32 %v710, %v714
        %v721 = vadd.s32 %v713, %v719
        %vm722 = vc.u32 %v720, %v716
        %v723 = vsel %vm722, 1, 0
        %v724 = vadd.s32 %v720, %v716
        %v725 = vadd.s32 %v721, %v723
        %v726 = vadd.s32 %v725, %v715
        %v727 = vadd.s32 %v726, %v717
        %v728 = vmul.u32 %v683, %v674
        %v729 = vadd.s32 %v705, %v724
        %vm730 = vc.u32 %v705, %v724
        %v731 = vadd.s32 %v727, 1
        %v732 = vsel %vm730, %v731, %v727
        %v733 = vadd.s32 %v728, %v732
        %v734 = vadd.s32 %v733, 536870912
        %v735 = vshrl.u32 %v734, 30
        %v736 = vshll.u32 %v735, 30
        %v737 = vsub.s32 %v733, %v736
        %vm738 = vcmp.lt.s32.totalorder %v737, 0
        %v739 = vsub.s32 0, %v737
        %v740 = vsel %vm738, %v739, %v737
        %v741 = vclz %v740
        %v742 = vsub.s32 %v741, 2
        %vm743 = vcmp.gt.s32.totalorder 0, %v742
        %v744 = vsel %vm743, 0, %v742
        %v745 = vsub.s32 32, %v744
        %v746 = vshll.u32 %v737, %v744
        %v747 = vshrl.u32 %v729, %v745
        %v748 = vor.u32 %v746, %v747
        %v749 = vsub.s32 4294967266, %v744
        %v750 = vadd.s32 %v749, 127
        %v751 = vshll.u32 %v750, 23
        %v752 = vor.u32 4788187, %v751
        %v753 = vand.u32 2147483647, %v752
        %v755 = vcvt.s32.f32 %v748
        %v756 = vmul.f32 %v755, %v753
        %v757 = vxor.u32 %v756, 2147483648
        %v758 = vsel %vm637, %v757, %v756
        %v759 = vsub.s32 4, %v735
        %v760 = vsel %vm637, %v759, %v735
        %v761 = vsel %vm636, %v633, %v758
        %v762 = vsel %vm636, 0, %v760
        %v763 = vmul.f32 %v761, %v761
        %v764 = vmul.f32 %v763, -0.001358992
        %v765 = vadd.f32 %v764, 0.041655596
        %v766 = vmul.f32 %v763, %v765
        %v767 = vadd.f32 %v766, -0.4999988
        %v768 = vmul.f32 %v763, %v767
        %v769 = vadd.f32 1.0, %v768
        %v770 = vmul.f32 %v761, %v761
        %v771 = vmul.f32 %v770, -0.00019511016
        %v772 = vadd.f32 %v771, 0.008332121
        %v773 = vmul.f32 %v770, %v772
        %v774 = vadd.f32 %v773, -0.16666654
        %v775 = vmul.f32 %v770, %v774
        %v776 = vadd.f32 %v775, 1.0
        %v777 = vmul.f32 %v776, %v761
        %vm778 = vweird.f32 %v633
        %v779 = vadd.s32 %v762, 3
        %v780 = vand.u32 %v779, 3
        %vm781 = vcmp.lt.s32.totalorder %v780, 2
        %vm782 = vcmp.eq.s32.totalorder %v780, 0
        %v783 = vxor.u32 %v777, 2147483648
        %v784 = vsel %vm782, %v769, %v783
        %vm785 = vcmp.eq.s32.totalorder %v780, 2
        %v786 = vxor.u32 %v769, 2147483648
        %v787 = vsel %vm785, %v786, %v777
        %v788 = vsel %vm781, %v784, %v787
        %v789 = vsel %vm778, nan, %v788
        %v790 = vand.u32 2147483647, %v634
        %vm791 = vcmp.le.f32.partialorder %v790, 0.7853982
        %vm792 = vcmp.lt.s32.totalorder %v634, 0
        %v793 = vand.u32 %v634, 2139095040
        %v794 = vshrl.u32 %v793, 23
        %v795 = vsub.s32 %v794, 127
        %v796 = vand.u32 2147483647, %v634
        %v797 = vand.u32 %v796, 8388607
        %v798 = vor.u32 %v797, 8388608
        %v799 = vsub.s32 0, %v798
        %v800 = vadd.s32 %v795, 1
        %vm801 = vcmp.gt.s32.totalorder %v800, 0
        %v802 = vsel %vm801, %v800, 0
        %v803 = vshrl.u32 %v802, 5
        %v804 = vand.u32 %v802, 31
        %v805 = vsub.s32 32, %v804
        %v806 = vshrl.u32 683565275, %v805
        %v807 = vshll.u32 683565275, %v804
        %v808 = vshrl.u32 2475754826, %v805
        %v809 = vor.u32 %v807, %v808
        %v810 = vshll.u32 2475754826, %v804
        %v811 = vshrl.u32 2131351028, %v805
        %v812 = vor.u32 %v810, %v811
        %v813 = vshll.u32 2131351028, %v804
        %v814 = vshrl.u32 2102212464, %v805
        %v815 = vor.u32 %v813, %v814
        %v816 = vshll.u32 2102212464, %v804
        %v817 = vshrl.u32 920167782, %v805
        %v818 = vor.u32 %v816, %v817
        %v819 = vshll.u32 920167782, %v804
        %v820 = vshrl.u32 1326507024, %v805
        %v821 = vor.u32 %v819, %v820
        %vm822 = vcmp.lt.s32.totalorder %v803, 1
        %vm823 = vcmp.lt.s32.totalorder %v803, 2
        %vm824 = vcmp.lt.s32.totalorder %v803, 3
        %vm825 = vcmp.lt.s32.totalorder %v803, 4
        %v826 = vsel %vm822, %v806, %v809
        %v827 = vsel %vm825, %v815, 2102212464
        %v828 = vsel %vm824, %v812, %v827
        %v829 = vsel %vm823, %v826, %v828
        %v830 = vsel %vm822, %v809, %v812
        %v831 = vsel %vm825, %v818, 920167782
        %v832 = vsel %vm824, %v815, %v831
        %v833 = vsel %vm823, %v830, %v832
        %v834 = vsel %vm822, %v812, %v815
        %v835 = vsel %vm825, %v821, 1326507024
        %v836 = vsel %vm824, %v818, %v835
        %v837 = vsel %vm823, %v834, %v836
        %v838 = vshll.u32 %v798, 8
        %v839 = vand.u32 %v838, 65535
        %v840 = vshrl.u32 %v838, 16
        %v841 = vand.u32 %v837, 65535
        %v842 = vshrl.u32 %v837, 16
        %v843 = vmul.u32 %v839, %v841
        %v844 = vmul.u32 %v839, %v842
        %v845 = vmul.u32 %v840, %v841
        %v846 = vmul.u32 %v840, %v842
        %v847 = vshll.u32 %v844, 16
        %v848 = vshrl.u32 %v844, 16
        %v849 = vshll.u32 %v845, 16
        %v850 = vshrl.u32 %v845, 16
        %vm851 = vc.u32 %v843, %v847
        %v852 = vsel %vm851, 1, 0
        %v853 = vadd.s32 %v843, %v847
        %v854 = vadd.s32 %v846, %v852
        %vm855 = vc.u32 %v853, %v849
        %v856 = vsel %vm855, 1, 0
        %v857 = vadd.s32 %v853, %v849
        %v858 = vadd.s32 %v854, %v856
        %v859 = vadd.s32 %v858, %v848
        %v860 = vadd.s32 %v859, %v850
        %v861 = vand.u32 %v838, 65535
        %v862 = vshrl.u32 %v838, 16
        %v863 = vand.u32 %v833, 65535
        %v864 = vshrl.u32 %v833, 16
        %v865 = vmul.u32 %v861, %v863
        %v866 = vmul.u32 %v861, %v864
        %v867 = vmul.u32 %v862, %v863
        %v868 = vmul.u32 %v862, %v864
        %v869 = vshll.u32 %v866, 16
        %v870 = vshrl.u32 %v866, 16
        %v871 = vshll.u32 %v867, 16
        %v872 = vshrl.u32 %v867, 16
        %vm873 = vc.u32 %v865, %v869
        %v874 = vsel %vm873, 1, 0
        %v875 = vadd.s32 %v865, %v869
        %v876 = vadd.s32 %v868, %v874
        %vm877 = vc.u32 %v875, %v871
        %v878 = vsel %vm877, 1, 0
        %v879 = vadd.s32 %v875, %v871
        %v880 = vadd.s32 %v876, %v878
        %v881 = vadd.s32 %v880, %v870
        %v882 = vadd.s32 %v881, %v872
        %v883 = vmul.u32 %v838, %v829
        %v884 = vadd.s32 %v860, %v879
        %vm885 = vc.u32 %v860, %v879
        %v886 = vadd.s32 %v882, 1
        %v887 = vsel %vm885, %v886, %v882
        %v888 = vadd.s32 %v883, %v887
        %v889 = vadd.s32 %v888, 536870912
        %v890 = vshrl.u32 %v889, 30
        %v891 = vshll.u32 %v890, 30
        %v892 = vsub.s32 %v888, %v891
        %vm893 = vcmp.lt.s32.totalorder %v892, 0
        %v894 = vsub.s32 0, %v892
        %v895 = vsel %vm893, %v894, %v892
        %v896 = vclz %v895
        %v897 = vsub.s32 %v896, 2
        %vm898 = vcmp.gt.s32.totalorder 0, %v897
        %v899 = vsel %vm898, 0, %v897
        %v900 = vsub.s32 32, %v899
        %v901 = vshll.u32 %v892, %v899
        %v902 = vshrl.u32 %v884, %v900
        %v903 = vor.u32 %v901, %v902
        %v904 = vsub.s32 4294967266, %v899
        %v905 = vadd.s32 %v904, 127
        %v906 = vshll.u32 %v905, 23
        %v907 = vor.u32 4788187, %v906
        %v908 = vand.u32 2147483647, %v907
        %v910 = vcvt.s32.f32 %v903
        %v911 = vmul.f32 %v910, %v908
        %v912 = vxor.u32 %v911, 2147483648
        %v913 = vsel %vm792, %v912, %v911
        %v914 = vsub.s32 4, %v890
        %v915 = vsel %vm792, %v914, %v890
        %v916 = vsel %vm791, %v634, %v913
        %v917 = vsel %vm791, 0, %v915
        %v918 = vmul.f32 %v916, %v916
        %v919 = vmul.f32 %v918, -0.001358992
        %v920 = vadd.f32 %v919, 0.041655596
        %v921 = vmul.f32 %v918, %v920
        %v922 = vadd.f32 %v921, -0.4999988
        %v923 = vmul.f32 %v918, %v922
        %v924 = vadd.f32 1.0, %v923
        %v925 = vmul.f32 %v916, %v916
        %v926 = vmul.f32 %v925, -0.00019511016
        %v927 = vadd.f32 %v926, 0.008332121
        %v928 = vmul.f32 %v925, %v927
        %v929 = vadd.f32 %v928, -0.16666654
        %v930 = vmul.f32 %v925, %v929
        %v931 = vadd.f32 %v930, 1.0
        %v932 = vmul.f32 %v931, %v916
        %vm933 = vweird.f32 %v634
        %v934 = vadd.s32 %v917, 3
        %v935 = vand.u32 %v934, 3
        %vm936 = vcmp.lt.s32.totalorder %v935, 2
        %vm937 = vcmp.eq.s32.totalorder %v935, 0
        %v938 = vxor.u32 %v932, 2147483648
        %v939 = vsel %vm937, %v924, %v938
        %vm940 = vcmp.eq.s32.totalorder %v935, 2
        %v941 = vxor.u32 %v924, 2147483648
        %v942 = vsel %vm940, %v941, %v932
        %v943 = vsel %vm936, %v939, %v942
        %v944 = vsel %vm933, nan, %v943
        %v945 = vmul.f32 %v789, %v789
        %v946 = vmul.f32 %v944, %v944
        %947 = vset.pattern.permute.xlu0 1
        %948 = vperm.xlu0 %947, %v627
        %v949 = vpop.permute.xlu0 %948
        %v951 = vmul.f32 %v949, %v945
        %v952 = vmul.f32 %v949, %v946
        %v953 = vadd.f32 %v614, %v951
        %v954 = vadd.f32 %v615, %v952
        %955 = vst [vmem:[#allocation3] sm:$0xff] %v953
        %vm956 = vcmask 64512
        %957 = vst.msk [vmem:[#allocation3 + $0x8] sm:$0xff] %vm956, %v954
        %v958 = vmul.f32 %v631, %v625
        %v959 = vmul.f32 %v631, %v626
        %v960 = vand.u32 2147483647, %v958
        %vm961 = vcmp.le.f32.partialorder %v960, 0.7853982
        %vm962 = vcmp.lt.s32.totalorder %v958, 0
        %v963 = vand.u32 %v958, 2139095040
        %v964 = vshrl.u32 %v963, 23
        %v965 = vsub.s32 %v964, 127
        %v966 = vand.u32 2147483647, %v958
        %v967 = vand.u32 %v966, 8388607
        %v968 = vor.u32 %v967, 8388608
        %v969 = vsub.s32 0, %v968
        %v970 = vadd.s32 %v965, 1
        %vm971 = vcmp.gt.s32.totalorder %v970, 0
        %v972 = vsel %vm971, %v970, 0
        %v973 = vshrl.u32 %v972, 5
        %v974 = vand.u32 %v972, 31
        %v975 = vsub.s32 32, %v974
        %v976 = vshrl.u32 683565275, %v975
        %v977 = vshll.u32 683565275, %v974
        %v978 = vshrl.u32 2475754826, %v975
        %v979 = vor.u32 %v977, %v978
        %v980 = vshll.u32 2475754826, %v974
        %v981 = vshrl.u32 2131351028, %v975
        %v982 = vor.u32 %v980, %v981
        %v983 = vshll.u32 2131351028, %v974
        %v984 = vshrl.u32 2102212464, %v975
        %v985 = vor.u32 %v983, %v984
        %v986 = vshll.u32 2102212464, %v974
        %v987 = vshrl.u32 920167782, %v975
        %v988 = vor.u32 %v986, %v987
        %v989 = vshll.u32 920167782, %v974
        %v990 = vshrl.u32 1326507024, %v975
        %v991 = vor.u32 %v989, %v990
        %vm992 = vcmp.lt.s32.totalorder %v973, 1
        %vm993 = vcmp.lt.s32.totalorder %v973, 2
        %vm994 = vcmp.lt.s32.totalorder %v973, 3
        %vm995 = vcmp.lt.s32.totalorder %v973, 4
        %v996 = vsel %vm992, %v976, %v979
        %v997 = vsel %vm995, %v985, 2102212464
        %v998 = vsel %vm994, %v982, %v997
        %v999 = vsel %vm993, %v996, %v998
        %v1000 = vsel %vm992, %v979, %v982
        %v1001 = vsel %vm995, %v988, 920167782
        %v1002 = vsel %vm994, %v985, %v1001
        %v1003 = vsel %vm993, %v1000, %v1002
        %v1004 = vsel %vm992, %v982, %v985
        %v1005 = vsel %vm995, %v991, 1326507024
        %v1006 = vsel %vm994, %v988, %v1005
        %v1007 = vsel %vm993, %v1004, %v1006
        %v1008 = vshll.u32 %v968, 8
        %v1009 = vand.u32 %v1008, 65535
        %v1010 = vshrl.u32 %v1008, 16
        %v1011 = vand.u32 %v1007, 65535
        %v1012 = vshrl.u32 %v1007, 16
        %v1013 = vmul.u32 %v1009, %v1011
        %v1014 = vmul.u32 %v1009, %v1012
        %v1015 = vmul.u32 %v1010, %v1011
        %v1016 = vmul.u32 %v1010, %v1012
        %v1017 = vshll.u32 %v1014, 16
        %v1018 = vshrl.u32 %v1014, 16
        %v1019 = vshll.u32 %v1015, 16
        %v1020 = vshrl.u32 %v1015, 16
        %vm1021 = vc.u32 %v1013, %v1017
        %v1022 = vsel %vm1021, 1, 0
        %v1023 = vadd.s32 %v1013, %v1017
        %v1024 = vadd.s32 %v1016, %v1022
        %vm1025 = vc.u32 %v1023, %v1019
        %v1026 = vsel %vm1025, 1, 0
        %v1027 = vadd.s32 %v1023, %v1019
        %v1028 = vadd.s32 %v1024, %v1026
        %v1029 = vadd.s32 %v1028, %v1018
        %v1030 = vadd.s32 %v1029, %v1020
        %v1031 = vand.u32 %v1008, 65535
        %v1032 = vshrl.u32 %v1008, 16
        %v1033 = vand.u32 %v1003, 65535
        %v1034 = vshrl.u32 %v1003, 16
        %v1035 = vmul.u32 %v1031, %v1033
        %v1036 = vmul.u32 %v1031, %v1034
        %v1037 = vmul.u32 %v1032, %v1033
        %v1038 = vmul.u32 %v1032, %v1034
        %v1039 = vshll.u32 %v1036, 16
        %v1040 = vshrl.u32 %v1036, 16
        %v1041 = vshll.u32 %v1037, 16
        %v1042 = vshrl.u32 %v1037, 16
        %vm1043 = vc.u32 %v1035, %v1039
        %v1044 = vsel %vm1043, 1, 0
        %v1045 = vadd.s32 %v1035, %v1039
        %v1046 = vadd.s32 %v1038, %v1044
        %vm1047 = vc.u32 %v1045, %v1041
        %v1048 = vsel %vm1047, 1, 0
        %v1049 = vadd.s32 %v1045, %v1041
        %v1050 = vadd.s32 %v1046, %v1048
        %v1051 = vadd.s32 %v1050, %v1040
        %v1052 = vadd.s32 %v1051, %v1042
        %v1053 = vmul.u32 %v1008, %v999
        %v1054 = vadd.s32 %v1030, %v1049
        %vm1055 = vc.u32 %v1030, %v1049
        %v1056 = vadd.s32 %v1052, 1
        %v1057 = vsel %vm1055, %v1056, %v1052
        %v1058 = vadd.s32 %v1053, %v1057
        %v1059 = vadd.s32 %v1058, 536870912
        %v1060 = vshrl.u32 %v1059, 30
        %v1061 = vshll.u32 %v1060, 30
        %v1062 = vsub.s32 %v1058, %v1061
        %vm1063 = vcmp.lt.s32.totalorder %v1062, 0
        %v1064 = vsub.s32 0, %v1062
        %v1065 = vsel %vm1063, %v1064, %v1062
        %v1066 = vclz %v1065
        %v1067 = vsub.s32 %v1066, 2
        %vm1068 = vcmp.gt.s32.totalorder 0, %v1067
        %v1069 = vsel %vm1068, 0, %v1067
        %v1070 = vsub.s32 32, %v1069
        %v1071 = vshll.u32 %v1062, %v1069
        %v1072 = vshrl.u32 %v1054, %v1070
        %v1073 = vor.u32 %v1071, %v1072
        %v1074 = vsub.s32 4294967266, %v1069
        %v1075 = vadd.s32 %v1074, 127
        %v1076 = vshll.u32 %v1075, 23
        %v1077 = vor.u32 4788187, %v1076
        %v1078 = vand.u32 2147483647, %v1077
        %v1080 = vcvt.s32.f32 %v1073
        %v1081 = vmul.f32 %v1080, %v1078
        %v1082 = vxor.u32 %v1081, 2147483648
        %v1083 = vsel %vm962, %v1082, %v1081
        %v1084 = vsub.s32 4, %v1060
        %v1085 = vsel %vm962, %v1084, %v1060
        %v1086 = vsel %vm961, %v958, %v1083
        %v1087 = vsel %vm961, 0, %v1085
        %v1088 = vmul.f32 %v1086, %v1086
        %v1089 = vmul.f32 %v1088, -0.001358992
        %v1090 = vadd.f32 %v1089, 0.041655596
        %v1091 = vmul.f32 %v1088, %v1090
        %v1092 = vadd.f32 %v1091, -0.4999988
        %v1093 = vmul.f32 %v1088, %v1092
        %v1094 = vadd.f32 1.0, %v1093
        %v1095 = vmul.f32 %v1086, %v1086
        %v1096 = vmul.f32 %v1095, -0.00019511016
        %v1097 = vadd.f32 %v1096, 0.008332121
        %v1098 = vmul.f32 %v1095, %v1097
        %v1099 = vadd.f32 %v1098, -0.16666654
        %v1100 = vmul.f32 %v1095, %v1099
        %v1101 = vadd.f32 %v1100, 1.0
        %v1102 = vmul.f32 %v1101, %v1086
        %vm1103 = vweird.f32 %v958
        %v1104 = vadd.s32 %v1087, 3
        %v1105 = vand.u32 %v1104, 3
        %vm1106 = vcmp.lt.s32.totalorder %v1105, 2
        %vm1107 = vcmp.eq.s32.totalorder %v1105, 0
        %v1108 = vxor.u32 %v1102, 2147483648
        %v1109 = vsel %vm1107, %v1094, %v1108
        %vm1110 = vcmp.eq.s32.totalorder %v1105, 2
        %v1111 = vxor.u32 %v1094, 2147483648
        %v1112 = vsel %vm1110, %v1111, %v1102
        %v1113 = vsel %vm1106, %v1109, %v1112
        %v1114 = vsel %vm1103, nan, %v1113
        %v1115 = vand.u32 2147483647, %v959
        %vm1116 = vcmp.le.f32.partialorder %v1115, 0.7853982
        %vm1117 = vcmp.lt.s32.totalorder %v959, 0
        %v1118 = vand.u32 %v959, 2139095040
        %v1119 = vshrl.u32 %v1118, 23
        %v1120 = vsub.s32 %v1119, 127
        %v1121 = vand.u32 2147483647, %v959
        %v1122 = vand.u32 %v1121, 8388607
        %v1123 = vor.u32 %v1122, 8388608
        %v1124 = vsub.s32 0, %v1123
        %v1125 = vadd.s32 %v1120, 1
        %vm1126 = vcmp.gt.s32.totalorder %v1125, 0
        %v1127 = vsel %vm1126, %v1125, 0
        %v1128 = vshrl.u32 %v1127, 5
        %v1129 = vand.u32 %v1127, 31
        %v1130 = vsub.s32 32, %v1129
        %v1131 = vshrl.u32 683565275, %v1130
        %v1132 = vshll.u32 683565275, %v1129
        %v1133 = vshrl.u32 2475754826, %v1130
        %v1134 = vor.u32 %v1132, %v1133
        %v1135 = vshll.u32 2475754826, %v1129
        %v1136 = vshrl.u32 2131351028, %v1130
        %v1137 = vor.u32 %v1135, %v1136
        %v1138 = vshll.u32 2131351028, %v1129
        %v1139 = vshrl.u32 2102212464, %v1130
        %v1140 = vor.u32 %v1138, %v1139
        %v1141 = vshll.u32 2102212464, %v1129
        %v1142 = vshrl.u32 920167782, %v1130
        %v1143 = vor.u32 %v1141, %v1142
        %v1144 = vshll.u32 920167782, %v1129
        %v1145 = vshrl.u32 1326507024, %v1130
        %v1146 = vor.u32 %v1144, %v1145
        %vm1147 = vcmp.lt.s32.totalorder %v1128, 1
        %vm1148 = vcmp.lt.s32.totalorder %v1128, 2
        %vm1149 = vcmp.lt.s32.totalorder %v1128, 3
        %vm1150 = vcmp.lt.s32.totalorder %v1128, 4
        %v1151 = vsel %vm1147, %v1131, %v1134
        %v1152 = vsel %vm1150, %v1140, 2102212464
        %v1153 = vsel %vm1149, %v1137, %v1152
        %v1154 = vsel %vm1148, %v1151, %v1153
        %v1155 = vsel %vm1147, %v1134, %v1137
        %v1156 = vsel %vm1150, %v1143, 920167782
        %v1157 = vsel %vm1149, %v1140, %v1156
        %v1158 = vsel %vm1148, %v1155, %v1157
        %v1159 = vsel %vm1147, %v1137, %v1140
        %v1160 = vsel %vm1150, %v1146, 1326507024
        %v1161 = vsel %vm1149, %v1143, %v1160
        %v1162 = vsel %vm1148, %v1159, %v1161
        %v1163 = vshll.u32 %v1123, 8
        %v1164 = vand.u32 %v1163, 65535
        %v1165 = vshrl.u32 %v1163, 16
        %v1166 = vand.u32 %v1162, 65535
        %v1167 = vshrl.u32 %v1162, 16
        %v1168 = vmul.u32 %v1164, %v1166
        %v1169 = vmul.u32 %v1164, %v1167
        %v1170 = vmul.u32 %v1165, %v1166
        %v1171 = vmul.u32 %v1165, %v1167
        %v1172 = vshll.u32 %v1169, 16
        %v1173 = vshrl.u32 %v1169, 16
        %v1174 = vshll.u32 %v1170, 16
        %v1175 = vshrl.u32 %v1170, 16
        %vm1176 = vc.u32 %v1168, %v1172
        %v1177 = vsel %vm1176, 1, 0
        %v1178 = vadd.s32 %v1168, %v1172
        %v1179 = vadd.s32 %v1171, %v1177
        %vm1180 = vc.u32 %v1178, %v1174
        %v1181 = vsel %vm1180, 1, 0
        %v1182 = vadd.s32 %v1178, %v1174
        %v1183 = vadd.s32 %v1179, %v1181
        %v1184 = vadd.s32 %v1183, %v1173
        %v1185 = vadd.s32 %v1184, %v1175
        %v1186 = vand.u32 %v1163, 65535
        %v1187 = vshrl.u32 %v1163, 16
        %v1188 = vand.u32 %v1158, 65535
        %v1189 = vshrl.u32 %v1158, 16
        %v1190 = vmul.u32 %v1186, %v1188
        %v1191 = vmul.u32 %v1186, %v1189
        %v1192 = vmul.u32 %v1187, %v1188
        %v1193 = vmul.u32 %v1187, %v1189
        %v1194 = vshll.u32 %v1191, 16
        %v1195 = vshrl.u32 %v1191, 16
        %v1196 = vshll.u32 %v1192, 16
        %v1197 = vshrl.u32 %v1192, 16
        %vm1198 = vc.u32 %v1190, %v1194
        %v1199 = vsel %vm1198, 1, 0
        %v1200 = vadd.s32 %v1190, %v1194
        %v1201 = vadd.s32 %v1193, %v1199
        %vm1202 = vc.u32 %v1200, %v1196
        %v1203 = vsel %vm1202, 1, 0
        %v1204 = vadd.s32 %v1200, %v1196
        %v1205 = vadd.s32 %v1201, %v1203
        %v1206 = vadd.s32 %v1205, %v1195
        %v1207 = vadd.s32 %v1206, %v1197
        %v1208 = vmul.u32 %v1163, %v1154
        %v1209 = vadd.s32 %v1185, %v1204
        %vm1210 = vc.u32 %v1185, %v1204
        %v1211 = vadd.s32 %v1207, 1
        %v1212 = vsel %vm1210, %v1211, %v1207
        %v1213 = vadd.s32 %v1208, %v1212
        %v1214 = vadd.s32 %v1213, 536870912
        %v1215 = vshrl.u32 %v1214, 30
        %v1216 = vshll.u32 %v1215, 30
        %v1217 = vsub.s32 %v1213, %v1216
        %vm1218 = vcmp.lt.s32.totalorder %v1217, 0
        %v1219 = vsub.s32 0, %v1217
        %v1220 = vsel %vm1218, %v1219, %v1217
        %v1221 = vclz %v1220
        %v1222 = vsub.s32 %v1221, 2
        %vm1223 = vcmp.gt.s32.totalorder 0, %v1222
        %v1224 = vsel %vm1223, 0, %v1222
        %v1225 = vsub.s32 32, %v1224
        %v1226 = vshll.u32 %v1217, %v1224
        %v1227 = vshrl.u32 %v1209, %v1225
        %v1228 = vor.u32 %v1226, %v1227
        %v1229 = vsub.s32 4294967266, %v1224
        %v1230 = vadd.s32 %v1229, 127
        %v1231 = vshll.u32 %v1230, 23
        %v1232 = vor.u32 4788187, %v1231
        %v1233 = vand.u32 2147483647, %v1232
        %v1235 = vcvt.s32.f32 %v1228
        %v1236 = vmul.f32 %v1235, %v1233
        %v1237 = vxor.u32 %v1236, 2147483648
        %v1238 = vsel %vm1117, %v1237, %v1236
        %v1239 = vsub.s32 4, %v1215
        %v1240 = vsel %vm1117, %v1239, %v1215
        %v1241 = vsel %vm1116, %v959, %v1238
        %v1242 = vsel %vm1116, 0, %v1240
        %v1243 = vmul.f32 %v1241, %v1241
        %v1244 = vmul.f32 %v1243, -0.001358992
        %v1245 = vadd.f32 %v1244, 0.041655596
        %v1246 = vmul.f32 %v1243, %v1245
        %v1247 = vadd.f32 %v1246, -0.4999988
        %v1248 = vmul.f32 %v1243, %v1247
        %v1249 = vadd.f32 1.0, %v1248
        %v1250 = vmul.f32 %v1241, %v1241
        %v1251 = vmul.f32 %v1250, -0.00019511016
        %v1252 = vadd.f32 %v1251, 0.008332121
        %v1253 = vmul.f32 %v1250, %v1252
        %v1254 = vadd.f32 %v1253, -0.16666654
        %v1255 = vmul.f32 %v1250, %v1254
        %v1256 = vadd.f32 %v1255, 1.0
        %v1257 = vmul.f32 %v1256, %v1241
        %vm1258 = vweird.f32 %v959
        %v1259 = vadd.s32 %v1242, 3
        %v1260 = vand.u32 %v1259, 3
        %vm1261 = vcmp.lt.s32.totalorder %v1260, 2
        %vm1262 = vcmp.eq.s32.totalorder %v1260, 0
        %v1263 = vxor.u32 %v1257, 2147483648
        %v1264 = vsel %vm1262, %v1249, %v1263
        %vm1265 = vcmp.eq.s32.totalorder %v1260, 2
        %v1266 = vxor.u32 %v1249, 2147483648
        %v1267 = vsel %vm1265, %v1266, %v1257
        %v1268 = vsel %vm1261, %v1264, %v1267
        %v1269 = vsel %vm1258, nan, %v1268
        %v1270 = vmul.f32 %v1114, %v1114
        %v1271 = vmul.f32 %v1269, %v1269
        %v1272 = vmul.f32 %v949, %v1270
        %v1273 = vmul.f32 %v949, %v1271
        %v1274 = vadd.f32 %v625, %v1272
        %v1275 = vadd.f32 %v626, %v1273
        %1278 = vrot.lane.b32.xlu0 %v1274, 127
        %v1279 = vpop.permute.xlu0 %1278
        %1280 = vrot.lane.b32.xlu0 %v1275, 127
        %v1281 = vpop.permute.xlu0 %1280
        %v1282 = vsel %vm520, %v1279, %v1281
        %1285 = vst [vmem:[#allocation4] sm:$0xff] %v1282
        %1286 = vst.msk [vmem:[#allocation4 + $0x8] sm:$0xff] %vm956, %v1281
        // Predicated region
        $region57: #{amp_layer_forward.3} parent=47 // pred_check
          %p1287 = pneg %p461
        $region58: #{amp_layer_forward.3} parent=47 // pred_check_branch
          %1289 = sbr.rel (%p1287) target = $region60
        $region59: #{amp_layer_forward.3} parent=47 // pred_region
          %v1290 = vld [vmem:[#allocation3] sm:$0xff]
          %1292 = vset.pattern.permute.xlu0 4
          %1293 = vperm.xlu0 %1292, %v1290
          %v1294 = vpop.permute.xlu0 %1293
          %vm1296 = vcmask 31744
          %1297 = vst.msk [vmem:[#allocation3] sm:$0xff] %vm1296, %v1294
          %1298 = vst.msk [vmem:[#allocation4] sm:$0xff] %vm1296, %v1294
        $region60: #{amp_layer_forward.3} parent=47 // pred_fallthru
          _
        // Predicated region
        $region61: #{amp_layer_forward.3} parent=47 // pred_check
          %p1299 = pneg %p439
        $region62: #{amp_layer_forward.3} parent=47 // pred_check_branch
          %1301 = sbr.rel (%p1299) target = $region64
        $region63: #{amp_layer_forward.3} parent=47 // pred_region
          %s1302 = ssub.s32 %s437, 4
          %v1303 = vlaneseq
          %v1304 = vand.u32 %v1303, 127
          %v1305 = vadd.s32 %v1304, 128
          %v1306 = vstv %s1302
          %v1307 = vadd.s32 %v1306, %v1304
          %v1308 = vadd.s32 %v1306, %v1305
          %v1309 = vld [vmem:[#allocation4] sm:$0xff]
          %v1310 = vld [vmem:[#allocation4 + $0x8] sm:$0xff]
          %vm1311 = vcmp.eq.s32.totalorder %v1307, 299
          %vm1312 = vcmp.eq.s32.totalorder %v1308, 299
          %v1313 = vsel %vm1311, 1, 0
          %v1314 = vsel %vm1312, 1, 0
          %vm1315 = vcmp.eq.s32.totalorder %v1313, 1
          %vm1316 = vcmp.eq.s32.totalorder %v1314, 1
          %v1317 = vsel %vm1315, %v1309, 0.0
          %v1318 = vsel %vm1316, %v1310, 0.0
          %v1319 = vsel %vm956, %v1318, 0.0
          %v1320 = vadd.f32 %v1317, %v1319
          %1321 = vadd.xlane.f32.xlu0 %v1320
          %v1322 = vpop.xlane.xlu0 %1321
          %vm1323 = vcmp.gt.s32.totalorder %v1307, 299
          %vm1324 = vcmp.gt.s32.totalorder %v1308, 299
          %v1325 = vld [vmem:[#allocation3] sm:$0xff]
          %v1326 = vld [vmem:[#allocation3 + $0x8] sm:$0xff]
          %v1327 = vsel %vm1323, 1, 0
          %v1328 = vsel %vm1324, 1, 0
          %vm1329 = vcmp.eq.s32.totalorder %v1327, 1
          %vm1330 = vcmp.eq.s32.totalorder %v1328, 1
          %v1331 = vsel %vm1329, %v1322, %v1325
          %v1332 = vsel %vm1330, %v1322, %v1326
          %1333 = vst [vmem:[#allocation3] sm:$0xff] %v1331
          %1334 = vst.msk [vmem:[#allocation3 + $0x8] sm:$0xff] %vm956, %v1332
          %v1335 = vsel %vm1329, %v1322, %v1309
          %v1336 = vsel %vm1330, %v1322, %v1310
          %1337 = vst [vmem:[#allocation4] sm:$0xff] %v1335
          %1338 = vst.msk [vmem:[#allocation4 + $0x8] sm:$0xff] %vm956, %v1336
        $region64: #{amp_layer_forward.3} parent=47 // pred_fallthru
          _
        %v1339 = vld [vmem:[#allocation4] sm:$0xff]
        %v1340 = vld [vmem:[#allocation4 + $0x8] sm:$0xff]
        %v1341 = vmul.f32 %v1339, 0.0020289666
        %v1342 = vmul.f32 %v1340, 0.0020289666
        %v1343 = vld [vmem:[#allocation3] sm:$0xff]
        %v1344 = vld [vmem:[#allocation3 + $0x8] sm:$0xff]
        %v1345 = vmul.f32 %v1343, 0.009389464
        %v1346 = vmul.f32 %v1344, 0.009389464
        %1349 = vrot.lane.b32.xlu0 %v1345, 127
        %v1350 = vpop.permute.xlu0 %1349
        %1351 = vrot.lane.b32.xlu0 %v1346, 127
        %v1352 = vpop.permute.xlu0 %1351
        %v1353 = vsel %vm520, %v1350, %v1352
        %v1356 = vadd.f32 %v1341, %v1353
        %v1357 = vadd.f32 %v1342, %v1352
        %v1358 = vmul.f32 %v1339, -0.025543464
        %v1359 = vmul.f32 %v1340, -0.025543464
        %1362 = vrot.lane.b32.xlu0 %v1358, 127
        %v1363 = vpop.permute.xlu0 %1362
        %1364 = vrot.lane.b32.xlu0 %v1359, 127
        %v1365 = vpop.permute.xlu0 %1364
        %v1366 = vsel %vm520, %v1363, %v1365
        %v1369 = vadd.f32 %v1356, %v1366
        %v1370 = vadd.f32 %v1357, %v1365
        %v1371 = vmul.f32 %v1343, -0.057657376
        %v1372 = vmul.f32 %v1344, -0.057657376
        %1375 = vrot.lane.b32.xlu0 %v1371, 126
        %v1376 = vpop.permute.xlu0 %1375
        %1377 = vrot.lane.b32.xlu0 %v1372, 126
        %v1378 = vpop.permute.xlu0 %1377
        %v1379 = vsel %vm547, %v1376, %v1378
        %v1382 = vadd.f32 %v1369, %v1379
        %v1383 = vadd.f32 %v1370, %v1378
        %v1384 = vmul.f32 %v1339, 0.12857261
        %v1385 = vmul.f32 %v1340, 0.12857261
        %1388 = vrot.lane.b32.xlu0 %v1384, 126
        %v1389 = vpop.permute.xlu0 %1388
        %1390 = vrot.lane.b32.xlu0 %v1385, 126
        %v1391 = vpop.permute.xlu0 %1390
        %v1392 = vsel %vm547, %v1389, %v1391
        %v1395 = vadd.f32 %v1382, %v1392
        %v1396 = vadd.f32 %v1383, %v1391
        %v1397 = vmul.f32 %v1343, 0.4432098
        %v1398 = vmul.f32 %v1344, 0.4432098
        %1401 = vrot.lane.b32.xlu0 %v1397, 125
        %v1402 = vpop.permute.xlu0 %1401
        %1403 = vrot.lane.b32.xlu0 %v1398, 125
        %v1404 = vpop.permute.xlu0 %1403
        %v1405 = vsel %vm570, %v1402, %v1404
        %v1408 = vadd.f32 %v1395, %v1405
        %v1409 = vadd.f32 %v1396, %v1404
        %v1410 = vmul.f32 %v1339, 0.4432098
        %v1411 = vmul.f32 %v1340, 0.4432098
        %1414 = vrot.lane.b32.xlu0 %v1410, 125
        %v1415 = vpop.permute.xlu0 %1414
        %1416 = vrot.lane.b32.xlu0 %v1411, 125
        %v1417 = vpop.permute.xlu0 %1416
        %v1418 = vsel %vm570, %v1415, %v1417
        %v1421 = vadd.f32 %v1408, %v1418
        %v1422 = vadd.f32 %v1409, %v1417
        %v1423 = vmul.f32 %v1343, 0.12857261
        %v1424 = vmul.f32 %v1344, 0.12857261
        %1427 = vrot.lane.b32.xlu0 %v1423, 124
        %v1428 = vpop.permute.xlu0 %1427
        %1429 = vrot.lane.b32.xlu0 %v1424, 124
        %v1430 = vpop.permute.xlu0 %1429
        %v1431 = vsel %vm589, %v1428, %v1430
        %v1434 = vadd.f32 %v1421, %v1431
        %v1435 = vadd.f32 %v1422, %v1430
        %v1436 = vmul.f32 %v1339, -0.057657376
        %v1437 = vmul.f32 %v1340, -0.057657376
        %1440 = vrot.lane.b32.xlu0 %v1436, 124
        %v1441 = vpop.permute.xlu0 %1440
        %1442 = vrot.lane.b32.xlu0 %v1437, 124
        %v1443 = vpop.permute.xlu0 %1442
        %v1444 = vsel %vm589, %v1441, %v1443
        %v1447 = vadd.f32 %v1434, %v1444
        %v1448 = vadd.f32 %v1435, %v1443
        %v1449 = vmul.f32 %v1343, -0.025543464
        %v1450 = vmul.f32 %v1344, -0.025543464
        %1453 = vrot.lane.b32.xlu0 %v1449, 123
        %v1454 = vpop.permute.xlu0 %1453
        %1455 = vrot.lane.b32.xlu0 %v1450, 123
        %v1456 = vpop.permute.xlu0 %1455
        %v1457 = vsel %vm610, %v1454, %v1456
        %v1460 = vadd.f32 %v1447, %v1457
        %v1461 = vadd.f32 %v1448, %v1456
        %v1462 = vmul.f32 %v1339, 0.009389464
        %v1463 = vmul.f32 %v1340, 0.009389464
        %1466 = vrot.lane.b32.xlu0 %v1462, 123
        %v1467 = vpop.permute.xlu0 %1466
        %1468 = vrot.lane.b32.xlu0 %v1463, 123
        %v1469 = vpop.permute.xlu0 %1468
        %v1470 = vsel %vm610, %v1467, %v1469
        %v1473 = vadd.f32 %v1460, %v1470
        %v1474 = vadd.f32 %v1461, %v1469
        %v1475 = vmul.f32 %v1343, 0.0020289666
        %v1476 = vmul.f32 %v1344, 0.0020289666
        %1479 = vrot.lane.b32.xlu0 %v1475, 122
        %v1480 = vpop.permute.xlu0 %1479
        %1481 = vrot.lane.b32.xlu0 %v1476, 122
        %v1482 = vpop.permute.xlu0 %1481
        %vm1483 = vcmask 998400
        %v1484 = vsel %vm1483, %v1480, %v1482
        %v1487 = vadd.f32 %v1473, %v1484
        %v1488 = vadd.f32 %v1474, %v1482
        %1489 = vst [vmem:[#allocation5] sm:$0xff] %v1487
        %vm1490 = vcmask 15360
        %1491 = vst.msk [vmem:[#allocation5 + $0x8] sm:$0xff] %vm1490, %v1488
        // Predicated region
        $region65: #{amp_layer_forward.3} parent=47 // pred_check
          %p1492 = pneg %p461
        $region66: #{amp_layer_forward.3} parent=47 // pred_check_branch
          %1494 = sbr.rel (%p1492) target = $region68
        $region67: #{amp_layer_forward.3} parent=47 // pred_region
          %vm1495 = vcmask 7168
          %1496 = vst.msk [vmem:[#allocation5] sm:$0xff] %vm1495, 0.0
        $region68: #{amp_layer_forward.3} parent=47 // pred_fallthru
          _
        // Predicated region
        $region69: #{amp_layer_forward.3} parent=47 // pred_check
          %p1497 = pneg %p439
        $region70: #{amp_layer_forward.3} parent=47 // pred_check_branch
          %1499 = sbr.rel (%p1497) target = $region72
        $region71: #{amp_layer_forward.3} parent=47 // pred_region
          %s1500 = ssub.s32 %s437, 1
          %v1501 = vlaneseq
          %v1502 = vand.u32 %v1501, 127
          %v1503 = vadd.s32 %v1502, 128
          %v1504 = vstv %s1500
          %v1505 = vadd.s32 %v1504, %v1502
          %v1506 = vadd.s32 %v1504, %v1503
          %vm1507 = vcmp.gt.s32.totalorder %v1505, 299
          %vm1508 = vcmp.gt.s32.totalorder %v1506, 299
          %v1509 = vld [vmem:[#allocation5] sm:$0xff]
          %v1510 = vld [vmem:[#allocation5 + $0x8] sm:$0xff]
          %v1511 = vsel %vm1507, 1, 0
          %v1512 = vsel %vm1508, 1, 0
          %vm1513 = vcmp.eq.s32.totalorder %v1511, 1
          %vm1514 = vcmp.eq.s32.totalorder %v1512, 1
          %v1515 = vsel %vm1513, 0.0, %v1509
          %v1516 = vsel %vm1514, 0.0, %v1510
          %1517 = vst [vmem:[#allocation5] sm:$0xff] %v1515
          %1518 = vst.msk [vmem:[#allocation5 + $0x8] sm:$0xff] %vm1490, %v1516
        $region72: #{amp_layer_forward.3} parent=47 // pred_fallthru
          _
        %v1519 = vld [vmem:[%s4] sm:$0xff]
        %v1520 = vld [vmem:[#allocation5] sm:$0xff]
        %s1521 = scalar_lea.vmem %s4, 8
        %v1522 = vld [vmem:[%s1521] sm:$0xff]
        %v1523 = vld [vmem:[#allocation5 + $0x8] sm:$0xff]
        %1526 = vrot.lane.b32.xlu0 %v1520, 127
        %v1527 = vpop.permute.xlu0 %1526
        %1528 = vrot.lane.b32.xlu0 %v1523, 127
        %v1529 = vpop.permute.xlu0 %1528
        %v1530 = vsel %vm520, %v1527, %v1529
        %v1533 = vsel %vm956, %v1522, 0
        %1535 = vmatpush.msra.mxu0 0.0
        %1536 = vmatpush.msra.mxu0 0.0
        %1537 = vmatpush.msra.mxu0 0.0
        %1538 = vmatpush.msra.mxu0 0.0
        %1539 = vmatpush.msra.mxu0 0.0
        %1540 = vmatpush.msra.mxu0 0.0
        %1541 = vmatpush.msra.mxu0 0.0
        %1542 = vmatpush.msra.mxu0 0.0
        %1543 = vmatpush.msra.mxu0 0.0
        %1544 = vmatpush.msra.mxu0 0.0
        %1545 = vmatpush.msra.mxu0 0.0
        %1546 = vmatpush.msra.mxu0 0.0
        %1547 = vmatpush.msra.mxu0 0.0
        %1548 = vmatpush.msra.mxu0 0.0
        %1549 = vmatpush.msra.mxu0 0.0
        %1550 = vmatpush.msra.mxu0 %v1530
        %1551 = vmatmul.f32.gmra.mxu0 %v1533
        %v1552 = vpop.f32.mrf.mxu0
        %v1553 = vadd.f32 0.0, %v1552
        %1554 = vdwg.mxu0
        %v1556 = vsel %vm956, %v1519, 0
        %1558 = vmatpush.msra.mxu0 0.0
        %1559 = vmatpush.msra.mxu0 0.0
        %1560 = vmatpush.msra.mxu0 0.0
        %1561 = vmatpush.msra.mxu0 0.0
        %1562 = vmatpush.msra.mxu0 0.0
        %1563 = vmatpush.msra.mxu0 0.0
        %1564 = vmatpush.msra.mxu0 0.0
        %1565 = vmatpush.msra.mxu0 0.0
        %1566 = vmatpush.msra.mxu0 0.0
        %1567 = vmatpush.msra.mxu0 0.0
        %1568 = vmatpush.msra.mxu0 0.0
        %1569 = vmatpush.msra.mxu0 0.0
        %1570 = vmatpush.msra.mxu0 0.0
        %1571 = vmatpush.msra.mxu0 0.0
        %1572 = vmatpush.msra.mxu0 0.0
        %1573 = vmatpush.msra.mxu0 %v1520
        %1574 = vmatmul.f32.gmra.mxu0 %v1556
        %v1575 = vpop.f32.mrf.mxu0
        %v1576 = vadd.f32 %v1553, %v1575
        %1577 = vdwg.mxu0
        %s1578 = scalar_lea.vmem %s4, 16
        %v1579 = vld [vmem:[%s1578] sm:$0xff]
        %1580 = vrot.lane.b32.xlu0 %v1520, 126
        %v1581 = vpop.permute.xlu0 %1580
        %1582 = vrot.lane.b32.xlu0 %v1523, 126
        %v1583 = vpop.permute.xlu0 %1582
        %v1584 = vsel %vm547, %v1581, %v1583
        %v1587 = vsel %vm956, %v1579, 0
        %1589 = vmatpush.msra.mxu0 0.0
        %1590 = vmatpush.msra.mxu0 0.0
        %1591 = vmatpush.msra.mxu0 0.0
        %1592 = vmatpush.msra.mxu0 0.0
        %1593 = vmatpush.msra.mxu0 0.0
        %1594 = vmatpush.msra.mxu0 0.0
        %1595 = vmatpush.msra.mxu0 0.0
        %1596 = vmatpush.msra.mxu0 0.0
        %1597 = vmatpush.msra.mxu0 0.0
        %1598 = vmatpush.msra.mxu0 0.0
        %1599 = vmatpush.msra.mxu0 0.0
        %1600 = vmatpush.msra.mxu0 0.0
        %1601 = vmatpush.msra.mxu0 0.0
        %1602 = vmatpush.msra.mxu0 0.0
        %1603 = vmatpush.msra.mxu0 0.0
        %1604 = vmatpush.msra.mxu0 %v1584
        %1605 = vmatmul.f32.gmra.mxu0 %v1587
        %v1606 = vpop.f32.mrf.mxu0
        %v1607 = vadd.f32 0.0, %v1606
        %1608 = vdwg.mxu0
        %v1609 = vadd.f32 %v1576, %v1607
        %v1610 = vld [vmem:[%s5] sm:$0xff]
        %1612 = vset.pattern.permute.xlu0 0
        %1613 = vperm.xlu0 %1612, %v1610
        %v1614 = vpop.permute.xlu0 %1613
        %v1616 = vadd.f32 %v1609, %v1614
        %v1617 = vld [vmem:[%s436] sm:$0xff]
        %v1618 = vadd.f32 %v1616, %v1617
        %1619 = vst [vmem:[%s392] sm:$0xff] %v1618
        %s1620 = sand.u32 %s230, 1
        %s1621 = scalar_lea.sflag [#allocation7], %s1620
        %s1622 = sand.u32 %s230, 1
        %s1623 = smul.addr %s1622, 8
        %s1624 = scalar_lea.vmem [#allocation6], %s1623
        // Predicated region
        $region73: #{amp_layer_forward.3} parent=47 // pred_check
          %p1625 = pneg %p240
        $region74: #{amp_layer_forward.3} parent=47 // pred_check_branch
          %1627 = sbr.rel (%p1625) target = $region76
        $region75: #{amp_layer_forward.3} parent=47 // pred_region
          %1629 = vsyncadd %s1621, 0
          %s1630 = smul.addr %s25, 3
          %s1631 = sadd.s32 %s26, %s1630
          %s1632 = smul.addr %s1631, 8
          %s1633 = scalar_lea.hbm %s7, %s1632
          %s1635 = sshll.u32 %s1624, 4
          %s1636 = int_to_ptr.vmem [resolvable:$true] %s1635
          %s1637 = sshll.u32 %s1633, 4
          %s1638 = int_to_ptr.hbm [resolvable:$true] %s1637
          %1640 = dma.vmem_to_hbm [thread:$0]  %s1636, 128, %s1638, %s1621
        $region76: #{amp_layer_forward.3} parent=47 // pred_fallthru
          _
      $region48: #{amp_layer_forward.3} parent=5 // pred_fallthru
        _
      %p1641 = scmp.le.s32.totalorder 2, %s16
      // Predicated region
      $region77: #{amp_layer_forward.3} parent=5 // pred_check
        %p1642 = pneg %p1641
      $region78: #{amp_layer_forward.3} parent=5 // pred_check_branch
        %1644 = sbr.rel (%p1642) target = $region80
      $region79: #{amp_layer_forward.3} parent=5 // pred_region
        %s1645 = ssub.s32 %s16, 2
        // Predicated region
        $region81: #{amp_layer_forward.3} parent=79 // pred_check
          %p1646 = pneg %p246
        $region82: #{amp_layer_forward.3} parent=79 // pred_check_branch
          %1648 = sbr.rel (%p1646) target = $region84
        $region83: #{amp_layer_forward.3} parent=79 // pred_region
          %s1649 = sand.u32 %s231, 1
          %s1650 = scalar_lea.sflag [#allocation7], %s1649
          %s1651 = sand.u32 %s231, 1
          %s1652 = smul.addr %s1651, 8
          %s1653 = scalar_lea.vmem [#allocation6], %s1652
          %1655 = dma.done %s1650, 128
        $region84: #{amp_layer_forward.3} parent=79 // pred_fallthru
          _
      $region80: #{amp_layer_forward.3} parent=5 // pred_fallthru
        _
    $region6: #{amp_layer_forward.3} parent=1 // loop_footer
      %s20 = sadd.s32 1, %s16
    $region7: #{amp_layer_forward.3} parent=1 // loop_footer_branch
      %15 = sbr.rel target = $region3
    $region8: #{amp_layer_forward.3} parent=1 // loop_exit
      _
    %1656 = vsyncpa [#allocation7], 1
    %s1657 = scalar_lea.sflag [#allocation7], 1
    %1658 = vsyncpa %s1657, 1

</llo_original>
